<compile_context>
chip_gen: v6e
topology: v6e:2x2x1
jax: 0.10.0
libtpu: 0.0.40
codegen_flags: <defaults>
</compile_context>

<pallas_src>
import jax
import jax.numpy as jnp
import numpy as np
from jax.experimental import pallas as pl
from jax.experimental.pallas import tpu as pltpu

# ----------------------------- config (mirrors config.json) ------------------
FEATURE_DIM = 16
EMBED_DIM = 32
NUM_HEADS = 4
NUM_LAYERS = 2
FFN_DIM = 64
OUTPUT_DIM = 8

FEATURE_NUM = 8          # tokens coming from `features`
CONTEXT_NUM = 4          # tokens coming from `context_embedding`

HEAD_DIM = EMBED_DIM // NUM_HEADS          # 8
N_TOKENS = FEATURE_NUM + CONTEXT_NUM       # 12

# ----------------------------- per-grid-step folding -------------------------
BATCH_PER_STEP = 4                         # problems folded into one grid step
BF = BATCH_PER_STEP * FEATURE_NUM          # 32 folded feature tokens / step
BC = BATCH_PER_STEP * CONTEXT_NUM          # 16 folded context tokens / step
BN = BATCH_PER_STEP * N_TOKENS             # 48 folded integration tokens / step
HBF = NUM_HEADS * BF                       # 128 (head, token) score rows / step
ACT_ROWS = BF + BC                         # 48 rows of the per-step activation slab
INTEG_ROWS = BF + BC + 8                   # 56 (h | ctx | ones+zero pad)

LN_EPS = 1e-5
RMS_EPS = float(jnp.finfo(jnp.float32).eps)   # nn.RMSNorm(eps=None) default

# ----------------------------- packed parameter layout -----------------------
# per-layer matrix pack  lw : [L, 160, 96] bf16   (all matrices pre-transposed)
LW_QKV = 0      # rows   0: 32, cols 0:96  -> W_in^T   (q columns pre-scaled)
LW_OUT = 32     # rows  32: 64, cols 0:32  -> W_out^T
LW_FF1 = 64     # rows  64: 96, cols 0:64  -> W_ff1^T
LW_FF2 = 96     # rows  96:160, cols 0:32  -> W_ff2^T
LW_ROWS, LW_COLS = 160, 3 * EMBED_DIM

# per-layer vector rows (inside the f32 consts pack, 8 rows per layer)
LV_BIN, LV_BOUT, LV_LN1W, LV_LN1B, LV_BFF1, LV_BFF2, LV_LN2W, LV_LN2B = range(8)

# consts pack (f32, [C_ROWS, 96]) — biases/LN params, masks, tail matrices
C_LV = 0                                   # 16 rows: per-layer vectors
C_MASK = C_LV + 8 * NUM_LAYERS             # 16 : 128 rows, cols 0:32 hmask, 32:64 amask
C_WAUG = C_MASK + HBF                      # 144: 48 rows block-diag ctx-int weight (+bias col)
C_MEAN = C_WAUG + BN                       # 192: token-mean matrix (1/N entries)
C_EMBW = C_MEAN + 8                        # 200: emb_w^T zero-padded to [32, 32]
C_OUTW = C_EMBW + EMBED_DIM                # 232: out_w^T [32, 8]
C_VEC = C_OUTW + EMBED_DIM                 # 264: row0 emb_b, row1 rms_w, row2 out_b
C_PAD = C_VEC + 8                          # 272: row0 = ones (bias row for W_aug), rest 0
C_ROWS = C_PAD + 8                         # 280
C_COLS = 3 * EMBED_DIM                     # 96


# ----------------------------- Pallas kernel ---------------------------------
def _layer_norm(x, w, b):
    mu = jnp.mean(x, axis=-1, keepdims=True)
    var = jnp.mean((x - mu) ** 2, axis=-1, keepdims=True)
    return (x - mu) * jax.lax.rsqrt(var + LN_EPS) * w + b


def ist_kernel(act_ref, lw_ref, consts_ref, o_ref, integ_scr):
    f32 = jnp.float32
    bf16 = jnp.bfloat16

    # ---- resident constants (host-built masks; hoisted out of the layer loop) ----
    hmask = consts_ref[C_MASK:C_MASK + HBF, 0:EMBED_DIM]                    # [128,32] {0,1}
    amask = consts_ref[C_MASK:C_MASK + HBF, EMBED_DIM:2 * EMBED_DIM]        # [128,32] additive
    vecs = consts_ref[C_VEC:C_VEC + 8, :]                                   # aligned [8,96]
    emb_b = vecs[0:1, 0:EMBED_DIM]
    rms_w = vecs[1:2, 0:EMBED_DIM]
    out_b = vecs[2:3, 0:OUTPUT_DIM]

    feat = act_ref[0:BF, :]                                                 # [32,32] (lanes 16:32 = 0)
    ctx = act_ref[BF:BF + BC, :]                                            # [16,32]

    # ---- feature embedding (off the per-layer critical chain -> keep f32) ----
    h = jnp.dot(feat, consts_ref[C_EMBW:C_EMBW + EMBED_DIM, 0:EMBED_DIM],
                preferred_element_type=f32) + emb_b                         # [BF, E]

    for l in range(NUM_LAYERS):                                             # static unroll
        lvl = consts_ref[C_LV + 8 * l:C_LV + 8 * l + 8, :]                  # [8, 96] aligned

        # ---- fused multi-head self-attention (all heads + all folded problems) ----
        qkv = jnp.dot(h.astype(bf16), lw_ref[l, LW_QKV:LW_QKV + EMBED_DIM, :],
                      preferred_element_type=f32) + lvl[LV_BIN:LV_BIN + 1, :]    # [BF, 3E]
        q = qkv[:, 0:EMBED_DIM]                       # 1/sqrt(hd) folded into weights
        k = qkv[:, EMBED_DIM:2 * EMBED_DIM]
        v = qkv[:, 2 * EMBED_DIM:3 * EMBED_DIM]

        # replicate q into (head, token) rows, head-mask the lanes.
        # (sublane concat chosen over broadcast+reshape for lowering robustness)
        q_wide = jnp.concatenate([q, q, q, q], axis=0) * hmask              # [HBF, E] f32
        # ONE score matmul (bf16 operands, f32 accum) + additive batch mask
        s = jax.lax.dot_general(q_wide.astype(bf16), k.astype(bf16),
                                (((1,), (1,)), ((), ())),
                                preferred_element_type=f32) + amask         # [HBF, BF]
        m = jnp.max(s, axis=-1, keepdims=True)
        e = jnp.exp(s - m)                                                  # f32 softmax numerator
        inv = pl.reciprocal(jnp.sum(e, axis=-1, keepdims=True), approx=True)  # EUP, [HBF,1]
        # PV matmul on unnormalized probs; normalization + head-lane mask after
        aw = jnp.dot(e.astype(bf16), v.astype(bf16),
                     preferred_element_type=f32) * (hmask * inv)            # [HBF, E]
        attn = (aw[0:BF, :] + aw[BF:2 * BF, :]
                + aw[2 * BF:3 * BF, :] + aw[3 * BF:4 * BF, :])              # [BF, E] heads concat

        sa = jnp.dot(attn.astype(bf16), lw_ref[l, LW_OUT:LW_OUT + EMBED_DIM, 0:EMBED_DIM],
                     preferred_element_type=f32) + lvl[LV_BOUT:LV_BOUT + 1, 0:EMBED_DIM]
        h = _layer_norm(h + sa,
                        lvl[LV_LN1W:LV_LN1W + 1, 0:EMBED_DIM],
                        lvl[LV_LN1B:LV_LN1B + 1, 0:EMBED_DIM])

        # ---- feed-forward (ReLU) ----
        ff = jnp.dot(h.astype(bf16), lw_ref[l, LW_FF1:LW_FF1 + EMBED_DIM, 0:FFN_DIM],
                     preferred_element_type=f32) + lvl[LV_BFF1:LV_BFF1 + 1, 0:FFN_DIM]
        ff = jnp.maximum(ff, 0.0)
        ff = jnp.dot(ff.astype(bf16), lw_ref[l, LW_FF2:LW_FF2 + FFN_DIM, 0:EMBED_DIM],
                     preferred_element_type=f32) + lvl[LV_BFF2:LV_BFF2 + 1, 0:EMBED_DIM]
        h = _layer_norm(h + ff,
                        lvl[LV_LN2W:LV_LN2W + 1, 0:EMBED_DIM],
                        lvl[LV_LN2B:LV_LN2B + 1, 0:EMBED_DIM])

    # ---- context integration over the token axis (no in-kernel transposes) ----
    # VMEM scratch slab [h | ctx | ones-row + zero pad]; bias folded into W_aug column.
    integ_scr[0:BF, :] = h
    integ_scr[BF:BF + BC, :] = ctx
    integ_scr[BF + BC:INTEG_ROWS, :] = consts_ref[C_PAD:C_PAD + 8, 0:EMBED_DIM]
    t = jnp.dot(consts_ref[C_WAUG:C_WAUG + BN, 0:INTEG_ROWS], integ_scr[...],
                preferred_element_type=f32)                                 # [BN, E]
    t = jnp.maximum(t, 0.0)
    agg = jnp.dot(consts_ref[C_MEAN:C_MEAN + BATCH_PER_STEP, 0:BN], t,
                  preferred_element_type=f32)                               # [B_step, E]

    # ---- RMSNorm + output projection ----
    ms = jnp.mean(agg * agg, axis=-1, keepdims=True)
    normed = agg * jax.lax.rsqrt(ms + RMS_EPS) * rms_w
    out = jnp.dot(normed, consts_ref[C_OUTW:C_OUTW + EMBED_DIM, 0:OUTPUT_DIM],
                  preferred_element_type=f32) + out_b
    o_ref[...] = out                                                        # [B_step, O]


# ----------------------------- host-side parameter packing -------------------
def pack_params(P):
    scale = 1.0 / float(np.sqrt(HEAD_DIM))

    lw = np.zeros((NUM_LAYERS, LW_ROWS, LW_COLS), np.float32)
    consts = np.zeros((C_ROWS, C_COLS), np.float32)

    for l in range(NUM_LAYERS):
        win_t = np.asarray(P["inproj_w"][l]).T.copy()                  # [E, 3E]
        win_t[:, :EMBED_DIM] *= scale                                  # fold q scaling
        bin_ = np.asarray(P["inproj_b"][l]).reshape(-1).copy()
        bin_[:EMBED_DIM] *= scale
        lw[l, LW_QKV:LW_QKV + EMBED_DIM, :] = win_t
        lw[l, LW_OUT:LW_OUT + EMBED_DIM, 0:EMBED_DIM] = np.asarray(P["outproj_w"][l]).T
        lw[l, LW_FF1:LW_FF1 + EMBED_DIM, 0:FFN_DIM] = np.asarray(P["ff1_w"][l]).T
        lw[l, LW_FF2:LW_FF2 + FFN_DIM, 0:EMBED_DIM] = np.asarray(P["ff2_w"][l]).T

        base = C_LV + 8 * l
        consts[base + LV_BIN, :] = bin_
        consts[base + LV_BOUT, 0:EMBED_DIM] = np.asarray(P["outproj_b"][l]).reshape(-1)
        consts[base + LV_LN1W, 0:EMBED_DIM] = np.asarray(P["ln1_w"][l]).reshape(-1)
        consts[base + LV_LN1B, 0:EMBED_DIM] = np.asarray(P["ln1_b"][l]).reshape(-1)
        consts[base + LV_BFF1, 0:FFN_DIM] = np.asarray(P["ff1_b"][l]).reshape(-1)
        consts[base + LV_BFF2, 0:EMBED_DIM] = np.asarray(P["ff2_b"][l]).reshape(-1)
        consts[base + LV_LN2W, 0:EMBED_DIM] = np.asarray(P["ln2_w"][l]).reshape(-1)
        consts[base + LV_LN2B, 0:EMBED_DIM] = np.asarray(P["ln2_b"][l]).reshape(-1)

    # head mask / additive same-batch mask, precomputed on the host
    rows = np.arange(HBF)
    lanes = np.arange(EMBED_DIM)
    consts[C_MASK:C_MASK + HBF, 0:EMBED_DIM] = (
        (lanes[None, :] // HEAD_DIM) == (rows[:, None] // BF)).astype(np.float32)
    keys = np.arange(BF)
    same_batch = ((rows[:, None] % BF) // FEATURE_NUM) == (keys[None, :] // FEATURE_NUM)
    consts[C_MASK:C_MASK + HBF, EMBED_DIM:2 * EMBED_DIM] = np.where(same_batch, 0.0, -1e30)

    # block-diagonal context-integration weight in folded token order
    # [h(b=0..B-1) | ctx(b=0..B-1)]; bias folded into column BF+BC (the ones row).
    ctx_w = np.asarray(P["ctx_w"])
    ctx_b = np.asarray(P["ctx_b"]).reshape(-1)
    for b in range(BATCH_PER_STEP):
        for n_out in range(N_TOKENS):
            row = C_WAUG + b * N_TOKENS + n_out
            for n_in in range(N_TOKENS):
                if n_in < FEATURE_NUM:
                    col = b * FEATURE_NUM + n_in
                else:
                    col = BF + b * CONTEXT_NUM + (n_in - FEATURE_NUM)
                consts[row, col] = ctx_w[n_out, n_in]
            consts[row, BF + BC] = ctx_b[n_out]
        consts[C_MEAN + b, b * N_TOKENS:(b + 1) * N_TOKENS] = 1.0 / N_TOKENS

    consts[C_EMBW:C_EMBW + FEATURE_DIM, 0:EMBED_DIM] = np.asarray(P["emb_w"]).T
    consts[C_OUTW:C_OUTW + EMBED_DIM, 0:OUTPUT_DIM] = np.asarray(P["out_w"]).T
    consts[C_VEC + 0, 0:EMBED_DIM] = np.asarray(P["emb_b"]).reshape(-1)
    consts[C_VEC + 1, 0:EMBED_DIM] = np.asarray(P["rms_w"]).reshape(-1)
    consts[C_VEC + 2, 0:OUTPUT_DIM] = np.asarray(P["out_b"]).reshape(-1)
    consts[C_PAD + 0, 0:EMBED_DIM] = 1.0      # ones row picked by W_aug bias column

    return jnp.asarray(lw, dtype=jnp.bfloat16), jnp.asarray(consts, dtype=jnp.float32)


# ----------------------------- wrapper ----------------------------------------
def integral_special_transformer(features, context, packs):
    """features: [B, F, Dfeat] f32; context: [B, C, E] f32 -> [B, O] f32."""
    lw, consts = packs
    total_b = features.shape[0]
    assert features.shape == (total_b, FEATURE_NUM, FEATURE_DIM)
    assert context.shape == (total_b, CONTEXT_NUM, EMBED_DIM)
    assert total_b % BATCH_PER_STEP == 0
    steps = total_b // BATCH_PER_STEP

    # fold BATCH_PER_STEP problems into the sublanes of one grid step; merge
    # feat + ctx into one per-step activation slab (single per-step DMA stream).
    feat = features.reshape(steps, BF, FEATURE_DIM)
    feat = jnp.pad(feat, ((0, 0), (0, 0), (0, EMBED_DIM - FEATURE_DIM)))
    ctx = context.reshape(steps, BC, EMBED_DIM)
    act = jnp.concatenate([feat, ctx], axis=1)                         # [steps, 48, 32]

    out = pl.pallas_call(
        ist_kernel,
        out_shape=jax.ShapeDtypeStruct((steps, BATCH_PER_STEP, OUTPUT_DIM), jnp.float32),
        grid_spec=pltpu.PrefetchScalarGridSpec(
            num_scalar_prefetch=0,
            grid=(steps,),
            in_specs=[
                # per-step activations
                pl.BlockSpec((None, ACT_ROWS, EMBED_DIM), lambda r: (r, 0, 0)),
                # VMEM-resident weight packs (constant block index -> DMA'd once)
                pl.BlockSpec((NUM_LAYERS, LW_ROWS, LW_COLS), lambda r: (0, 0, 0)),
                pl.BlockSpec((C_ROWS, C_COLS), lambda r: (0, 0)),
            ],
            out_specs=pl.BlockSpec((None, BATCH_PER_STEP, OUTPUT_DIM), lambda r: (r, 0, 0)),
            scratch_shapes=[pltpu.VMEM((INTEG_ROWS, EMBED_DIM), jnp.float32)],
        ),
        compiler_params=pltpu.CompilerParams(dimension_semantics=("parallel",)),
    )(act, lw, consts)
    return out.reshape(total_b, OUTPUT_DIM)


# ----------------------------- pure-JAX reference ----------------------------
def ref_forward(features, context, P):
    def ln(x, w, b):
        mu = x.mean(-1, keepdims=True)
        var = ((x - mu) ** 2).mean(-1, keepdims=True)
        return (x - mu) / jnp.sqrt(var + LN_EPS) * w + b

    h = features @ P["emb_w"].T + P["emb_b"].reshape(-1)
    for l in range(NUM_LAYERS):
        qkv = h @ P["inproj_w"][l].T + P["inproj_b"][l].reshape(-1)
        q, k, v = jnp.split(qkv, 3, axis=-1)

        def split_heads(x):
            Bb, S, _ = x.shape
            return x.reshape(Bb, S, NUM_HEADS, HEAD_DIM).transpose(0, 2, 1, 3)

        qh, kh, vh = map(split_heads, (q, k, v))
        scores = jnp.einsum("bhqd,bhkd->bhqk", qh, kh) / jnp.sqrt(float(HEAD_DIM))
        probs = jax.nn.softmax(scores, axis=-1)
        attn = jnp.einsum("bhqk,bhkd->bhqd", probs, vh).transpose(0, 2, 1, 3).reshape(h.shape)
        sa = attn @ P["outproj_w"][l].T + P["outproj_b"][l].reshape(-1)
        h = ln(h + sa, P["ln1_w"][l].reshape(-1), P["ln1_b"][l].reshape(-1))
        ff = jax.nn.relu(h @ P["ff1_w"][l].T + P["ff1_b"][l].reshape(-1))
        ff = ff @ P["ff2_w"][l].T + P["ff2_b"][l].reshape(-1)
        h = ln(h + ff, P["ln2_w"][l].reshape(-1), P["ln2_b"][l].reshape(-1))

    integ = jnp.concatenate([h, context], axis=1)                       # [B, N, E]
    t = jnp.swapaxes(integ, 1, 2)                                       # [B, E, N]
    t = jax.nn.relu(t @ P["ctx_w"].T + P["ctx_b"].reshape(-1))
    t = jnp.swapaxes(t, 1, 2)                                           # [B, N, E]
    agg = t.mean(axis=1)                                                # [B, E]
    normed = agg * jax.lax.rsqrt((agg ** 2).mean(-1, keepdims=True) + RMS_EPS) * P["rms_w"].reshape(-1)
    return normed @ P["out_w"].T + P["out_b"].reshape(-1)


# ----------------------------- params & main ---------------------------------
def make_params(key):
    ks = jax.random.split(key, 20)
    n = lambda k, shape, s=0.05: (s * jax.random.normal(k, shape)).astype(jnp.float32)
    return {
        "emb_w": n(ks[0], (EMBED_DIM, FEATURE_DIM)),
        "emb_b": n(ks[1], (1, EMBED_DIM)),
        "inproj_w": n(ks[2], (NUM_LAYERS, 3 * EMBED_DIM, EMBED_DIM)),
        "inproj_b": n(ks[3], (NUM_LAYERS, 1, 3 * EMBED_DIM)),
        "outproj_w": n(ks[4], (NUM_LAYERS, EMBED_DIM, EMBED_DIM)),
        "outproj_b": n(ks[5], (NUM_LAYERS, 1, EMBED_DIM)),
        "ln1_w": 1.0 + n(ks[6], (NUM_LAYERS, 1, EMBED_DIM), 0.1),
        "ln1_b": n(ks[7], (NUM_LAYERS, 1, EMBED_DIM), 0.1),
        "ln2_w": 1.0 + n(ks[8], (NUM_LAYERS, 1, EMBED_DIM), 0.1),
        "ln2_b": n(ks[9], (NUM_LAYERS, 1, EMBED_DIM), 0.1),
        "ff1_w": n(ks[10], (NUM_LAYERS, FFN_DIM, EMBED_DIM)),
        "ff1_b": n(ks[11], (NUM_LAYERS, 1, FFN_DIM)),
        "ff2_w": n(ks[12], (NUM_LAYERS, EMBED_DIM, FFN_DIM)),
        "ff2_b": n(ks[13], (NUM_LAYERS, 1, EMBED_DIM)),
        "ctx_w": n(ks[14], (N_TOKENS, N_TOKENS)),
        "ctx_b": n(ks[15], (1, N_TOKENS)),
        "rms_w": 1.0 + n(ks[16], (1, EMBED_DIM), 0.1),
        "out_w": n(ks[17], (OUTPUT_DIM, EMBED_DIM)),
        "out_b": n(ks[18], (1, OUTPUT_DIM)),
    }


if __name__ == "__main__":
    key = jax.random.PRNGKey(0)
    k_feat, k_ctx, k_par = jax.random.split(key, 3)

    TOTAL_BATCH = 8                                   # 2 grid steps of 4 folded problems
    features = jax.random.normal(k_feat, (TOTAL_BATCH, FEATURE_NUM, FEATURE_DIM), jnp.float32)
    context = jax.random.normal(k_ctx, (TOTAL_BATCH, CONTEXT_NUM, EMBED_DIM), jnp.float32)
    params = make_params(k_par)
    packs = pack_params(params)

    fwd = jax.jit(integral_special_transformer)
    out = jax.block_until_ready(fwd(features, context, packs))

    ref = jax.block_until_ready(ref_forward(features, context, params))
    assert out.shape == (TOTAL_BATCH, OUTPUT_DIM)
    # bf16 MXU operands + approx reciprocal -> compare with a relaxed tolerance
    assert jnp.allclose(out, ref, rtol=2e-2, atol=2e-2), (out, ref)

    # TODO(synk): dropout layers are treated as eval-mode identity (no RNG path).
    print("KERNEL_OK")
</pallas_src>

<mosaic_0001>
module attributes {stable_mosaic.version = 11 : i64} {
  func.func @ist_kernel(%arg0: i32, %arg1: memref<1x48x32xf32, #tpu.memory_space<vmem>>, %arg2: memref<2x160x96xbf16, #tpu.memory_space<vmem>>, %arg3: memref<280x96xf32, #tpu.memory_space<vmem>>, %arg4: memref<1x4x8xf32, #tpu.memory_space<vmem>>, %arg5: memref<56x32xf32, #tpu.memory_space<vmem>>) attributes {dimension_semantics = [#tpu.dimension_semantics<parallel>], iteration_bounds = array<i64: 2>, scalar_prefetch = 0 : i64, scratch_operands = 1 : i64, tpu.core_type = #tpu.core_type<tc>, window_params = [{transform_indices = @transform_0, window_bounds = array<i64: 1, 48, 32>}, {pipeline_mode = #tpu.pipeline_mode<synchronous>, transform_indices = @transform_1, window_bounds = array<i64: 2, 160, 96>}, {pipeline_mode = #tpu.pipeline_mode<synchronous>, transform_indices = @transform_2, window_bounds = array<i64: 280, 96>}, {transform_indices = @transform_3, window_bounds = array<i64: 1, 4, 8>}]} {
    %c16 = arith.constant 16 : index
    %c0 = arith.constant 0 : index
    %0 = vector.load %arg3[%c16, %c0] : memref<280x96xf32, #tpu.memory_space<vmem>>, vector<128x32xf32>
    %c16_0 = arith.constant 16 : index
    %c32 = arith.constant 32 : index
    %1 = vector.load %arg3[%c16_0, %c32] : memref<280x96xf32, #tpu.memory_space<vmem>>, vector<128x32xf32>
    %c264 = arith.constant 264 : index
    %c0_1 = arith.constant 0 : index
    %2 = vector.load %arg3[%c264, %c0_1] : memref<280x96xf32, #tpu.memory_space<vmem>>, vector<8x96xf32>
    %3 = vector.extract_strided_slice %2 {offsets = [0, 0], sizes = [1, 32], strides = [1, 1]} : vector<8x96xf32> to vector<1x32xf32>
    %4 = vector.extract_strided_slice %2 {offsets = [1, 0], sizes = [1, 32], strides = [1, 1]} : vector<8x96xf32> to vector<1x32xf32>
    %5 = vector.extract_strided_slice %2 {offsets = [2, 0], sizes = [1, 8], strides = [1, 1]} : vector<8x96xf32> to vector<1x8xf32>
    %c0_2 = arith.constant 0 : index
    %c0_3 = arith.constant 0 : index
    %c0_4 = arith.constant 0 : index
    %6 = vector.load %arg1[%c0_2, %c0_3, %c0_4] : memref<1x48x32xf32, #tpu.memory_space<vmem>>, vector<1x32x32xf32>
    %7 = vector.shape_cast %6 : vector<1x32x32xf32> to vector<32x32xf32>
    %c0_5 = arith.constant 0 : index
    %c32_6 = arith.constant 32 : index
    %c0_7 = arith.constant 0 : index
    %8 = vector.load %arg1[%c0_5, %c32_6, %c0_7] : memref<1x48x32xf32, #tpu.memory_space<vmem>>, vector<1x16x32xf32>
    %9 = vector.shape_cast %8 : vector<1x16x32xf32> to vector<16x32xf32>
    %c200 = arith.constant 200 : index
    %c0_8 = arith.constant 0 : index
    %10 = vector.load %arg3[%c200, %c0_8] : memref<280x96xf32, #tpu.memory_space<vmem>>, vector<32x32xf32>
    %cst = arith.constant dense<0.000000e+00> : vector<32x32xf32>
    %11 = tpu.matmul %7, %10, %cst {dimension_numbers = #tpu.dot_dimension_numbers<[1], [0], [0], [1], [0, 0, 1, 1], [], []>} : vector<32x32xf32>, vector<32x32xf32>, vector<32x32xf32> -> vector<32x32xf32>
    %12 = vector.broadcast %3 : vector<1x32xf32> to vector<32x32xf32>
    %13 = arith.addf %11, %12 : vector<32x32xf32>
    %c0_9 = arith.constant 0 : index
    %c0_10 = arith.constant 0 : index
    %14 = vector.load %arg3[%c0_9, %c0_10] : memref<280x96xf32, #tpu.memory_space<vmem>>, vector<8x96xf32>
    %15 = arith.truncf %13 : vector<32x32xf32> to vector<32x32xbf16>
    %c0_11 = arith.constant 0 : index
    %c0_12 = arith.constant 0 : index
    %c0_13 = arith.constant 0 : index
    %16 = vector.load %arg2[%c0_11, %c0_12, %c0_13] : memref<2x160x96xbf16, #tpu.memory_space<vmem>>, vector<1x32x96xbf16>
    %17 = vector.shape_cast %16 : vector<1x32x96xbf16> to vector<32x96xbf16>
    %cst_14 = arith.constant dense<0.000000e+00> : vector<32x96xf32>
    %18 = tpu.matmul %15, %17, %cst_14 {dimension_numbers = #tpu.dot_dimension_numbers<[1], [0], [0], [1], [0, 0, 1, 1], [], []>} : vector<32x32xbf16>, vector<32x96xbf16>, vector<32x96xf32> -> vector<32x96xf32>
    %19 = vector.extract_strided_slice %14 {offsets = [0, 0], sizes = [1, 96], strides = [1, 1]} : vector<8x96xf32> to vector<1x96xf32>
    %20 = vector.broadcast %19 : vector<1x96xf32> to vector<32x96xf32>
    %21 = arith.addf %18, %20 : vector<32x96xf32>
    %22 = vector.extract_strided_slice %21 {offsets = [0, 0], sizes = [32, 32], strides = [1, 1]} : vector<32x96xf32> to vector<32x32xf32>
    %23 = vector.extract_strided_slice %21 {offsets = [0, 32], sizes = [32, 32], strides = [1, 1]} : vector<32x96xf32> to vector<32x32xf32>
    %24 = vector.extract_strided_slice %21 {offsets = [0, 64], sizes = [32, 32], strides = [1, 1]} : vector<32x96xf32> to vector<32x32xf32>
    %25 = tpu.concatenate %22, %22, %22, %22 in 0 : vector<32x32xf32>, vector<32x32xf32>, vector<32x32xf32>, vector<32x32xf32> -> vector<128x32xf32>
    %26 = arith.mulf %25, %0 : vector<128x32xf32>
    %27 = arith.truncf %26 : vector<128x32xf32> to vector<128x32xbf16>
    %28 = arith.truncf %23 : vector<32x32xf32> to vector<32x32xbf16>
    %cst_15 = arith.constant dense<0.000000e+00> : vector<128x32xf32>
    %29 = tpu.matmul %27, %28, %cst_15 {dimension_numbers = #tpu.dot_dimension_numbers<[1], [1], [0], [0], [0, 0, 1, 0], [], []>} : vector<128x32xbf16>, vector<32x32xbf16>, vector<128x32xf32> -> vector<128x32xf32>
    %30 = arith.addf %29, %1 : vector<128x32xf32>
    %cst_16 = arith.constant dense<0xFF800000> : vector<128xf32>
    %31 = vector.multi_reduction <maximumf>, %30, %cst_16 [1] : vector<128x32xf32> to vector<128xf32>
    %32 = vector.shape_cast %31 : vector<128xf32> to vector<128x1xf32>
    %33 = vector.broadcast %32 : vector<128x1xf32> to vector<128x32xf32>
    %34 = arith.subf %30, %33 : vector<128x32xf32>
    %35 = math.exp %34 : vector<128x32xf32>
    %cst_17 = arith.constant dense<0.000000e+00> : vector<128xf32>
    %36 = vector.multi_reduction <add>, %35, %cst_17 [1] : vector<128x32xf32> to vector<128xf32>
    %37 = vector.shape_cast %36 : vector<128xf32> to vector<128x1xf32>
    %38 = tpu.reciprocal %37 {approx = true} : vector<128x1xf32> -> vector<128x1xf32>
    %39 = arith.truncf %35 : vector<128x32xf32> to vector<128x32xbf16>
    %40 = arith.truncf %24 : vector<32x32xf32> to vector<32x32xbf16>
    %cst_18 = arith.constant dense<0.000000e+00> : vector<128x32xf32>
    %41 = tpu.matmul %39, %40, %cst_18 {dimension_numbers = #tpu.dot_dimension_numbers<[1], [0], [0], [1], [0, 0, 1, 1], [], []>} : vector<128x32xbf16>, vector<32x32xbf16>, vector<128x32xf32> -> vector<128x32xf32>
    %42 = vector.broadcast %38 : vector<128x1xf32> to vector<128x32xf32>
    %43 = arith.mulf %0, %42 : vector<128x32xf32>
    %44 = arith.mulf %41, %43 : vector<128x32xf32>
    %45 = vector.extract_strided_slice %44 {offsets = [0, 0], sizes = [32, 32], strides = [1, 1]} : vector<128x32xf32> to vector<32x32xf32>
    %46 = vector.extract_strided_slice %44 {offsets = [32, 0], sizes = [32, 32], strides = [1, 1]} : vector<128x32xf32> to vector<32x32xf32>
    %47 = arith.addf %45, %46 : vector<32x32xf32>
    %48 = vector.extract_strided_slice %44 {offsets = [64, 0], sizes = [32, 32], strides = [1, 1]} : vector<128x32xf32> to vector<32x32xf32>
    %49 = arith.addf %47, %48 : vector<32x32xf32>
    %50 = vector.extract_strided_slice %44 {offsets = [96, 0], sizes = [32, 32], strides = [1, 1]} : vector<128x32xf32> to vector<32x32xf32>
    %51 = arith.addf %49, %50 : vector<32x32xf32>
    %52 = arith.truncf %51 : vector<32x32xf32> to vector<32x32xbf16>
    %c0_19 = arith.constant 0 : index
    %c32_20 = arith.constant 32 : index
    %c0_21 = arith.constant 0 : index
    %53 = vector.load %arg2[%c0_19, %c32_20, %c0_21] : memref<2x160x96xbf16, #tpu.memory_space<vmem>>, vector<1x32x32xbf16>
    %54 = vector.shape_cast %53 : vector<1x32x32xbf16> to vector<32x32xbf16>
    %cst_22 = arith.constant dense<0.000000e+00> : vector<32x32xf32>
    %55 = tpu.matmul %52, %54, %cst_22 {dimension_numbers = #tpu.dot_dimension_numbers<[1], [0], [0], [1], [0, 0, 1, 1], [], []>} : vector<32x32xbf16>, vector<32x32xbf16>, vector<32x32xf32> -> vector<32x32xf32>
    %56 = vector.extract_strided_slice %14 {offsets = [1, 0], sizes = [1, 32], strides = [1, 1]} : vector<8x96xf32> to vector<1x32xf32>
    %57 = vector.broadcast %56 : vector<1x32xf32> to vector<32x32xf32>
    %58 = arith.addf %55, %57 : vector<32x32xf32>
    %59 = arith.addf %13, %58 : vector<32x32xf32>
    %60 = vector.extract_strided_slice %14 {offsets = [2, 0], sizes = [1, 32], strides = [1, 1]} : vector<8x96xf32> to vector<1x32xf32>
    %61 = vector.extract_strided_slice %14 {offsets = [3, 0], sizes = [1, 32], strides = [1, 1]} : vector<8x96xf32> to vector<1x32xf32>
    %cst_23 = arith.constant dense<0.000000e+00> : vector<32xf32>
    %62 = vector.multi_reduction <add>, %59, %cst_23 [1] : vector<32x32xf32> to vector<32xf32>
    %63 = vector.shape_cast %62 : vector<32xf32> to vector<32x1xf32>
    %cst_24 = arith.constant 3.200000e+01 : f32
    %64 = vector.broadcast %cst_24 : f32 to vector<32x1xf32>
    %65 = arith.divf %63, %64 : vector<32x1xf32>
    %66 = vector.broadcast %65 : vector<32x1xf32> to vector<32x32xf32>
    %67 = arith.subf %59, %66 : vector<32x32xf32>
    %68 = arith.mulf %67, %67 : vector<32x32xf32>
    %cst_25 = arith.constant dense<0.000000e+00> : vector<32xf32>
    %69 = vector.multi_reduction <add>, %68, %cst_25 [1] : vector<32x32xf32> to vector<32xf32>
    %70 = vector.shape_cast %69 : vector<32xf32> to vector<32x1xf32>
    %cst_26 = arith.constant 3.200000e+01 : f32
    %71 = vector.broadcast %cst_26 : f32 to vector<32x1xf32>
    %72 = arith.divf %70, %71 : vector<32x1xf32>
    %73 = vector.broadcast %65 : vector<32x1xf32> to vector<32x32xf32>
    %74 = arith.subf %59, %73 : vector<32x32xf32>
    %cst_27 = arith.constant 9.99999974E-6 : f32
    %75 = vector.broadcast %cst_27 : f32 to vector<32x1xf32>
    %76 = arith.addf %72, %75 : vector<32x1xf32>
    %77 = math.rsqrt %76 : vector<32x1xf32>
    %78 = vector.broadcast %77 : vector<32x1xf32> to vector<32x32xf32>
    %79 = arith.mulf %74, %78 : vector<32x32xf32>
    %80 = vector.broadcast %60 : vector<1x32xf32> to vector<32x32xf32>
    %81 = arith.mulf %79, %80 : vector<32x32xf32>
    %82 = vector.broadcast %61 : vector<1x32xf32> to vector<32x32xf32>
    %83 = arith.addf %81, %82 : vector<32x32xf32>
    %84 = arith.truncf %83 : vector<32x32xf32> to vector<32x32xbf16>
    %c0_28 = arith.constant 0 : index
    %c64 = arith.constant 64 : index
    %c0_29 = arith.constant 0 : index
    %85 = vector.load %arg2[%c0_28, %c64, %c0_29] : memref<2x160x96xbf16, #tpu.memory_space<vmem>>, vector<1x32x64xbf16>
    %86 = vector.shape_cast %85 : vector<1x32x64xbf16> to vector<32x64xbf16>
    %cst_30 = arith.constant dense<0.000000e+00> : vector<32x64xf32>
    %87 = tpu.matmul %84, %86, %cst_30 {dimension_numbers = #tpu.dot_dimension_numbers<[1], [0], [0], [1], [0, 0, 1, 1], [], []>} : vector<32x32xbf16>, vector<32x64xbf16>, vector<32x64xf32> -> vector<32x64xf32>
    %88 = vector.extract_strided_slice %14 {offsets = [4, 0], sizes = [1, 64], strides = [1, 1]} : vector<8x96xf32> to vector<1x64xf32>
    %89 = vector.broadcast %88 : vector<1x64xf32> to vector<32x64xf32>
    %90 = arith.addf %87, %89 : vector<32x64xf32>
    %cst_31 = arith.constant 0.000000e+00 : f32
    %91 = vector.broadcast %cst_31 : f32 to vector<32x64xf32>
    %92 = arith.maximumf %90, %91 : vector<32x64xf32>
    %93 = arith.truncf %92 : vector<32x64xf32> to vector<32x64xbf16>
    %c0_32 = arith.constant 0 : index
    %c96 = arith.constant 96 : index
    %c0_33 = arith.constant 0 : index
    %94 = vector.load %arg2[%c0_32, %c96, %c0_33] : memref<2x160x96xbf16, #tpu.memory_space<vmem>>, vector<1x64x32xbf16>
    %95 = vector.shape_cast %94 : vector<1x64x32xbf16> to vector<64x32xbf16>
    %cst_34 = arith.constant dense<0.000000e+00> : vector<32x32xf32>
    %96 = tpu.matmul %93, %95, %cst_34 {dimension_numbers = #tpu.dot_dimension_numbers<[1], [0], [0], [1], [0, 0, 1, 1], [], []>} : vector<32x64xbf16>, vector<64x32xbf16>, vector<32x32xf32> -> vector<32x32xf32>
    %97 = vector.extract_strided_slice %14 {offsets = [5, 0], sizes = [1, 32], strides = [1, 1]} : vector<8x96xf32> to vector<1x32xf32>
    %98 = vector.broadcast %97 : vector<1x32xf32> to vector<32x32xf32>
    %99 = arith.addf %96, %98 : vector<32x32xf32>
    %100 = arith.addf %83, %99 : vector<32x32xf32>
    %101 = vector.extract_strided_slice %14 {offsets = [6, 0], sizes = [1, 32], strides = [1, 1]} : vector<8x96xf32> to vector<1x32xf32>
    %102 = vector.extract_strided_slice %14 {offsets = [7, 0], sizes = [1, 32], strides = [1, 1]} : vector<8x96xf32> to vector<1x32xf32>
    %cst_35 = arith.constant dense<0.000000e+00> : vector<32xf32>
    %103 = vector.multi_reduction <add>, %100, %cst_35 [1] : vector<32x32xf32> to vector<32xf32>
    %104 = vector.shape_cast %103 : vector<32xf32> to vector<32x1xf32>
    %cst_36 = arith.constant 3.200000e+01 : f32
    %105 = vector.broadcast %cst_36 : f32 to vector<32x1xf32>
    %106 = arith.divf %104, %105 : vector<32x1xf32>
    %107 = vector.broadcast %106 : vector<32x1xf32> to vector<32x32xf32>
    %108 = arith.subf %100, %107 : vector<32x32xf32>
    %109 = arith.mulf %108, %108 : vector<32x32xf32>
    %cst_37 = arith.constant dense<0.000000e+00> : vector<32xf32>
    %110 = vector.multi_reduction <add>, %109, %cst_37 [1] : vector<32x32xf32> to vector<32xf32>
    %111 = vector.shape_cast %110 : vector<32xf32> to vector<32x1xf32>
    %cst_38 = arith.constant 3.200000e+01 : f32
    %112 = vector.broadcast %cst_38 : f32 to vector<32x1xf32>
    %113 = arith.divf %111, %112 : vector<32x1xf32>
    %114 = vector.broadcast %106 : vector<32x1xf32> to vector<32x32xf32>
    %115 = arith.subf %100, %114 : vector<32x32xf32>
    %cst_39 = arith.constant 9.99999974E-6 : f32
    %116 = vector.broadcast %cst_39 : f32 to vector<32x1xf32>
    %117 = arith.addf %113, %116 : vector<32x1xf32>
    %118 = math.rsqrt %117 : vector<32x1xf32>
    %119 = vector.broadcast %118 : vector<32x1xf32> to vector<32x32xf32>
    %120 = arith.mulf %115, %119 : vector<32x32xf32>
    %121 = vector.broadcast %101 : vector<1x32xf32> to vector<32x32xf32>
    %122 = arith.mulf %120, %121 : vector<32x32xf32>
    %123 = vector.broadcast %102 : vector<1x32xf32> to vector<32x32xf32>
    %124 = arith.addf %122, %123 : vector<32x32xf32>
    %c8 = arith.constant 8 : index
    %c0_40 = arith.constant 0 : index
    %125 = vector.load %arg3[%c8, %c0_40] : memref<280x96xf32, #tpu.memory_space<vmem>>, vector<8x96xf32>
    %126 = arith.truncf %124 : vector<32x32xf32> to vector<32x32xbf16>
    %c1 = arith.constant 1 : index
    %c0_41 = arith.constant 0 : index
    %c0_42 = arith.constant 0 : index
    %127 = vector.load %arg2[%c1, %c0_41, %c0_42] : memref<2x160x96xbf16, #tpu.memory_space<vmem>>, vector<1x32x96xbf16>
    %128 = vector.shape_cast %127 : vector<1x32x96xbf16> to vector<32x96xbf16>
    %cst_43 = arith.constant dense<0.000000e+00> : vector<32x96xf32>
    %129 = tpu.matmul %126, %128, %cst_43 {dimension_numbers = #tpu.dot_dimension_numbers<[1], [0], [0], [1], [0, 0, 1, 1], [], []>} : vector<32x32xbf16>, vector<32x96xbf16>, vector<32x96xf32> -> vector<32x96xf32>
    %130 = vector.extract_strided_slice %125 {offsets = [0, 0], sizes = [1, 96], strides = [1, 1]} : vector<8x96xf32> to vector<1x96xf32>
    %131 = vector.broadcast %130 : vector<1x96xf32> to vector<32x96xf32>
    %132 = arith.addf %129, %131 : vector<32x96xf32>
    %133 = vector.extract_strided_slice %132 {offsets = [0, 0], sizes = [32, 32], strides = [1, 1]} : vector<32x96xf32> to vector<32x32xf32>
    %134 = vector.extract_strided_slice %132 {offsets = [0, 32], sizes = [32, 32], strides = [1, 1]} : vector<32x96xf32> to vector<32x32xf32>
    %135 = vector.extract_strided_slice %132 {offsets = [0, 64], sizes = [32, 32], strides = [1, 1]} : vector<32x96xf32> to vector<32x32xf32>
    %136 = tpu.concatenate %133, %133, %133, %133 in 0 : vector<32x32xf32>, vector<32x32xf32>, vector<32x32xf32>, vector<32x32xf32> -> vector<128x32xf32>
    %137 = arith.mulf %136, %0 : vector<128x32xf32>
    %138 = arith.truncf %137 : vector<128x32xf32> to vector<128x32xbf16>
    %139 = arith.truncf %134 : vector<32x32xf32> to vector<32x32xbf16>
    %cst_44 = arith.constant dense<0.000000e+00> : vector<128x32xf32>
    %140 = tpu.matmul %138, %139, %cst_44 {dimension_numbers = #tpu.dot_dimension_numbers<[1], [1], [0], [0], [0, 0, 1, 0], [], []>} : vector<128x32xbf16>, vector<32x32xbf16>, vector<128x32xf32> -> vector<128x32xf32>
    %141 = arith.addf %140, %1 : vector<128x32xf32>
    %cst_45 = arith.constant dense<0xFF800000> : vector<128xf32>
    %142 = vector.multi_reduction <maximumf>, %141, %cst_45 [1] : vector<128x32xf32> to vector<128xf32>
    %143 = vector.shape_cast %142 : vector<128xf32> to vector<128x1xf32>
    %144 = vector.broadcast %143 : vector<128x1xf32> to vector<128x32xf32>
    %145 = arith.subf %141, %144 : vector<128x32xf32>
    %146 = math.exp %145 : vector<128x32xf32>
    %cst_46 = arith.constant dense<0.000000e+00> : vector<128xf32>
    %147 = vector.multi_reduction <add>, %146, %cst_46 [1] : vector<128x32xf32> to vector<128xf32>
    %148 = vector.shape_cast %147 : vector<128xf32> to vector<128x1xf32>
    %149 = tpu.reciprocal %148 {approx = true} : vector<128x1xf32> -> vector<128x1xf32>
    %150 = arith.truncf %146 : vector<128x32xf32> to vector<128x32xbf16>
    %151 = arith.truncf %135 : vector<32x32xf32> to vector<32x32xbf16>
    %cst_47 = arith.constant dense<0.000000e+00> : vector<128x32xf32>
    %152 = tpu.matmul %150, %151, %cst_47 {dimension_numbers = #tpu.dot_dimension_numbers<[1], [0], [0], [1], [0, 0, 1, 1], [], []>} : vector<128x32xbf16>, vector<32x32xbf16>, vector<128x32xf32> -> vector<128x32xf32>
    %153 = vector.broadcast %149 : vector<128x1xf32> to vector<128x32xf32>
    %154 = arith.mulf %0, %153 : vector<128x32xf32>
    %155 = arith.mulf %152, %154 : vector<128x32xf32>
    %156 = vector.extract_strided_slice %155 {offsets = [0, 0], sizes = [32, 32], strides = [1, 1]} : vector<128x32xf32> to vector<32x32xf32>
    %157 = vector.extract_strided_slice %155 {offsets = [32, 0], sizes = [32, 32], strides = [1, 1]} : vector<128x32xf32> to vector<32x32xf32>
    %158 = arith.addf %156, %157 : vector<32x32xf32>
    %159 = vector.extract_strided_slice %155 {offsets = [64, 0], sizes = [32, 32], strides = [1, 1]} : vector<128x32xf32> to vector<32x32xf32>
    %160 = arith.addf %158, %159 : vector<32x32xf32>
    %161 = vector.extract_strided_slice %155 {offsets = [96, 0], sizes = [32, 32], strides = [1, 1]} : vector<128x32xf32> to vector<32x32xf32>
    %162 = arith.addf %160, %161 : vector<32x32xf32>
    %163 = arith.truncf %162 : vector<32x32xf32> to vector<32x32xbf16>
    %c1_48 = arith.constant 1 : index
    %c32_49 = arith.constant 32 : index
    %c0_50 = arith.constant 0 : index
    %164 = vector.load %arg2[%c1_48, %c32_49, %c0_50] : memref<2x160x96xbf16, #tpu.memory_space<vmem>>, vector<1x32x32xbf16>
    %165 = vector.shape_cast %164 : vector<1x32x32xbf16> to vector<32x32xbf16>
    %cst_51 = arith.constant dense<0.000000e+00> : vector<32x32xf32>
    %166 = tpu.matmul %163, %165, %cst_51 {dimension_numbers = #tpu.dot_dimension_numbers<[1], [0], [0], [1], [0, 0, 1, 1], [], []>} : vector<32x32xbf16>, vector<32x32xbf16>, vector<32x32xf32> -> vector<32x32xf32>
    %167 = vector.extract_strided_slice %125 {offsets = [1, 0], sizes = [1, 32], strides = [1, 1]} : vector<8x96xf32> to vector<1x32xf32>
    %168 = vector.broadcast %167 : vector<1x32xf32> to vector<32x32xf32>
    %169 = arith.addf %166, %168 : vector<32x32xf32>
    %170 = arith.addf %124, %169 : vector<32x32xf32>
    %171 = vector.extract_strided_slice %125 {offsets = [2, 0], sizes = [1, 32], strides = [1, 1]} : vector<8x96xf32> to vector<1x32xf32>
    %172 = vector.extract_strided_slice %125 {offsets = [3, 0], sizes = [1, 32], strides = [1, 1]} : vector<8x96xf32> to vector<1x32xf32>
    %cst_52 = arith.constant dense<0.000000e+00> : vector<32xf32>
    %173 = vector.multi_reduction <add>, %170, %cst_52 [1] : vector<32x32xf32> to vector<32xf32>
    %174 = vector.shape_cast %173 : vector<32xf32> to vector<32x1xf32>
    %cst_53 = arith.constant 3.200000e+01 : f32
    %175 = vector.broadcast %cst_53 : f32 to vector<32x1xf32>
    %176 = arith.divf %174, %175 : vector<32x1xf32>
    %177 = vector.broadcast %176 : vector<32x1xf32> to vector<32x32xf32>
    %178 = arith.subf %170, %177 : vector<32x32xf32>
    %179 = arith.mulf %178, %178 : vector<32x32xf32>
    %cst_54 = arith.constant dense<0.000000e+00> : vector<32xf32>
    %180 = vector.multi_reduction <add>, %179, %cst_54 [1] : vector<32x32xf32> to vector<32xf32>
    %181 = vector.shape_cast %180 : vector<32xf32> to vector<32x1xf32>
    %cst_55 = arith.constant 3.200000e+01 : f32
    %182 = vector.broadcast %cst_55 : f32 to vector<32x1xf32>
    %183 = arith.divf %181, %182 : vector<32x1xf32>
    %184 = vector.broadcast %176 : vector<32x1xf32> to vector<32x32xf32>
    %185 = arith.subf %170, %184 : vector<32x32xf32>
    %cst_56 = arith.constant 9.99999974E-6 : f32
    %186 = vector.broadcast %cst_56 : f32 to vector<32x1xf32>
    %187 = arith.addf %183, %186 : vector<32x1xf32>
    %188 = math.rsqrt %187 : vector<32x1xf32>
    %189 = vector.broadcast %188 : vector<32x1xf32> to vector<32x32xf32>
    %190 = arith.mulf %185, %189 : vector<32x32xf32>
    %191 = vector.broadcast %171 : vector<1x32xf32> to vector<32x32xf32>
    %192 = arith.mulf %190, %191 : vector<32x32xf32>
    %193 = vector.broadcast %172 : vector<1x32xf32> to vector<32x32xf32>
    %194 = arith.addf %192, %193 : vector<32x32xf32>
    %195 = arith.truncf %194 : vector<32x32xf32> to vector<32x32xbf16>
    %c1_57 = arith.constant 1 : index
    %c64_58 = arith.constant 64 : index
    %c0_59 = arith.constant 0 : index
    %196 = vector.load %arg2[%c1_57, %c64_58, %c0_59] : memref<2x160x96xbf16, #tpu.memory_space<vmem>>, vector<1x32x64xbf16>
    %197 = vector.shape_cast %196 : vector<1x32x64xbf16> to vector<32x64xbf16>
    %cst_60 = arith.constant dense<0.000000e+00> : vector<32x64xf32>
    %198 = tpu.matmul %195, %197, %cst_60 {dimension_numbers = #tpu.dot_dimension_numbers<[1], [0], [0], [1], [0, 0, 1, 1], [], []>} : vector<32x32xbf16>, vector<32x64xbf16>, vector<32x64xf32> -> vector<32x64xf32>
    %199 = vector.extract_strided_slice %125 {offsets = [4, 0], sizes = [1, 64], strides = [1, 1]} : vector<8x96xf32> to vector<1x64xf32>
    %200 = vector.broadcast %199 : vector<1x64xf32> to vector<32x64xf32>
    %201 = arith.addf %198, %200 : vector<32x64xf32>
    %cst_61 = arith.constant 0.000000e+00 : f32
    %202 = vector.broadcast %cst_61 : f32 to vector<32x64xf32>
    %203 = arith.maximumf %201, %202 : vector<32x64xf32>
    %204 = arith.truncf %203 : vector<32x64xf32> to vector<32x64xbf16>
    %c1_62 = arith.constant 1 : index
    %c96_63 = arith.constant 96 : index
    %c0_64 = arith.constant 0 : index
    %205 = vector.load %arg2[%c1_62, %c96_63, %c0_64] : memref<2x160x96xbf16, #tpu.memory_space<vmem>>, vector<1x64x32xbf16>
    %206 = vector.shape_cast %205 : vector<1x64x32xbf16> to vector<64x32xbf16>
    %cst_65 = arith.constant dense<0.000000e+00> : vector<32x32xf32>
    %207 = tpu.matmul %204, %206, %cst_65 {dimension_numbers = #tpu.dot_dimension_numbers<[1], [0], [0], [1], [0, 0, 1, 1], [], []>} : vector<32x64xbf16>, vector<64x32xbf16>, vector<32x32xf32> -> vector<32x32xf32>
    %208 = vector.extract_strided_slice %125 {offsets = [5, 0], sizes = [1, 32], strides = [1, 1]} : vector<8x96xf32> to vector<1x32xf32>
    %209 = vector.broadcast %208 : vector<1x32xf32> to vector<32x32xf32>
    %210 = arith.addf %207, %209 : vector<32x32xf32>
    %211 = arith.addf %194, %210 : vector<32x32xf32>
    %212 = vector.extract_strided_slice %125 {offsets = [6, 0], sizes = [1, 32], strides = [1, 1]} : vector<8x96xf32> to vector<1x32xf32>
    %213 = vector.extract_strided_slice %125 {offsets = [7, 0], sizes = [1, 32], strides = [1, 1]} : vector<8x96xf32> to vector<1x32xf32>
    %cst_66 = arith.constant dense<0.000000e+00> : vector<32xf32>
    %214 = vector.multi_reduction <add>, %211, %cst_66 [1] : vector<32x32xf32> to vector<32xf32>
    %215 = vector.shape_cast %214 : vector<32xf32> to vector<32x1xf32>
    %cst_67 = arith.constant 3.200000e+01 : f32
    %216 = vector.broadcast %cst_67 : f32 to vector<32x1xf32>
    %217 = arith.divf %215, %216 : vector<32x1xf32>
    %218 = vector.broadcast %217 : vector<32x1xf32> to vector<32x32xf32>
    %219 = arith.subf %211, %218 : vector<32x32xf32>
    %220 = arith.mulf %219, %219 : vector<32x32xf32>
    %cst_68 = arith.constant dense<0.000000e+00> : vector<32xf32>
    %221 = vector.multi_reduction <add>, %220, %cst_68 [1] : vector<32x32xf32> to vector<32xf32>
    %222 = vector.shape_cast %221 : vector<32xf32> to vector<32x1xf32>
    %cst_69 = arith.constant 3.200000e+01 : f32
    %223 = vector.broadcast %cst_69 : f32 to vector<32x1xf32>
    %224 = arith.divf %222, %223 : vector<32x1xf32>
    %225 = vector.broadcast %217 : vector<32x1xf32> to vector<32x32xf32>
    %226 = arith.subf %211, %225 : vector<32x32xf32>
    %cst_70 = arith.constant 9.99999974E-6 : f32
    %227 = vector.broadcast %cst_70 : f32 to vector<32x1xf32>
    %228 = arith.addf %224, %227 : vector<32x1xf32>
    %229 = math.rsqrt %228 : vector<32x1xf32>
    %230 = vector.broadcast %229 : vector<32x1xf32> to vector<32x32xf32>
    %231 = arith.mulf %226, %230 : vector<32x32xf32>
    %232 = vector.broadcast %212 : vector<1x32xf32> to vector<32x32xf32>
    %233 = arith.mulf %231, %232 : vector<32x32xf32>
    %234 = vector.broadcast %213 : vector<1x32xf32> to vector<32x32xf32>
    %235 = arith.addf %233, %234 : vector<32x32xf32>
    %c0_71 = arith.constant 0 : index
    %c0_72 = arith.constant 0 : index
    %236 = vector.load %arg5[%c0_71, %c0_72] : memref<56x32xf32, #tpu.memory_space<vmem>>, vector<32x32xf32>
    tpu.vector_store %arg5[%c0_71, %c0_72], %235 {strides = array<i32>} : memref<56x32xf32, #tpu.memory_space<vmem>>, vector<32x32xf32>,
    %c32_73 = arith.constant 32 : index
    %c0_74 = arith.constant 0 : index
    %237 = vector.load %arg5[%c32_73, %c0_74] : memref<56x32xf32, #tpu.memory_space<vmem>>, vector<16x32xf32>
    tpu.vector_store %arg5[%c32_73, %c0_74], %9 {strides = array<i32>} : memref<56x32xf32, #tpu.memory_space<vmem>>, vector<16x32xf32>,
    %c272 = arith.constant 272 : index
    %c0_75 = arith.constant 0 : index
    %238 = vector.load %arg3[%c272, %c0_75] : memref<280x96xf32, #tpu.memory_space<vmem>>, vector<8x32xf32>
    %c48 = arith.constant 48 : index
    %c0_76 = arith.constant 0 : index
    %239 = vector.load %arg5[%c48, %c0_76] : memref<56x32xf32, #tpu.memory_space<vmem>>, vector<8x32xf32>
    tpu.vector_store %arg5[%c48, %c0_76], %238 {strides = array<i32>} : memref<56x32xf32, #tpu.memory_space<vmem>>, vector<8x32xf32>,
    %c144 = arith.constant 144 : index
    %c0_77 = arith.constant 0 : index
    %240 = vector.load %arg3[%c144, %c0_77] : memref<280x96xf32, #tpu.memory_space<vmem>>, vector<48x56xf32>
    %c0_78 = arith.constant 0 : index
    %c0_79 = arith.constant 0 : index
    %241 = vector.load %arg5[%c0_78, %c0_79] : memref<56x32xf32, #tpu.memory_space<vmem>>, vector<56x32xf32>
    %cst_80 = arith.constant dense<0.000000e+00> : vector<48x32xf32>
    %242 = tpu.matmul %240, %241, %cst_80 {dimension_numbers = #tpu.dot_dimension_numbers<[1], [0], [0], [1], [0, 0, 1, 1], [], []>} : vector<48x56xf32>, vector<56x32xf32>, vector<48x32xf32> -> vector<48x32xf32>
    %cst_81 = arith.constant 0.000000e+00 : f32
    %243 = vector.broadcast %cst_81 : f32 to vector<48x32xf32>
    %244 = arith.maximumf %242, %243 : vector<48x32xf32>
    %c192 = arith.constant 192 : index
    %c0_82 = arith.constant 0 : index
    %245 = vector.load %arg3[%c192, %c0_82] : memref<280x96xf32, #tpu.memory_space<vmem>>, vector<4x48xf32>
    %cst_83 = arith.constant dense<0.000000e+00> : vector<4x32xf32>
    %246 = tpu.matmul %245, %244, %cst_83 {dimension_numbers = #tpu.dot_dimension_numbers<[1], [0], [0], [1], [0, 0, 1, 1], [], []>} : vector<4x48xf32>, vector<48x32xf32>, vector<4x32xf32> -> vector<4x32xf32>
    %247 = arith.mulf %246, %246 : vector<4x32xf32>
    %cst_84 = arith.constant dense<0.000000e+00> : vector<4xf32>
    %248 = vector.multi_reduction <add>, %247, %cst_84 [1] : vector<4x32xf32> to vector<4xf32>
    %249 = vector.shape_cast %248 : vector<4xf32> to vector<4x1xf32>
    %cst_85 = arith.constant 3.200000e+01 : f32
    %250 = vector.broadcast %cst_85 : f32 to vector<4x1xf32>
    %251 = arith.divf %249, %250 : vector<4x1xf32>
    %cst_86 = arith.constant 1.1920929E-7 : f32
    %252 = vector.broadcast %cst_86 : f32 to vector<4x1xf32>
    %253 = arith.addf %251, %252 : vector<4x1xf32>
    %254 = math.rsqrt %253 : vector<4x1xf32>
    %255 = vector.broadcast %254 : vector<4x1xf32> to vector<4x32xf32>
    %256 = arith.mulf %246, %255 : vector<4x32xf32>
    %257 = vector.broadcast %4 : vector<1x32xf32> to vector<4x32xf32>
    %258 = arith.mulf %256, %257 : vector<4x32xf32>
    %c232 = arith.constant 232 : index
    %c0_87 = arith.constant 0 : index
    %259 = vector.load %arg3[%c232, %c0_87] : memref<280x96xf32, #tpu.memory_space<vmem>>, vector<32x8xf32>
    %cst_88 = arith.constant dense<0.000000e+00> : vector<4x8xf32>
    %260 = tpu.matmul %258, %259, %cst_88 {dimension_numbers = #tpu.dot_dimension_numbers<[1], [0], [0], [1], [0, 0, 1, 1], [], []>} : vector<4x32xf32>, vector<32x8xf32>, vector<4x8xf32> -> vector<4x8xf32>
    %261 = vector.broadcast %5 : vector<1x8xf32> to vector<4x8xf32>
    %262 = arith.addf %260, %261 : vector<4x8xf32>
    %c0_89 = arith.constant 0 : index
    %c0_90 = arith.constant 0 : index
    %c0_91 = arith.constant 0 : index
    %263 = vector.load %arg4[%c0_89, %c0_90, %c0_91] : memref<1x4x8xf32, #tpu.memory_space<vmem>>, vector<1x4x8xf32>
    %264 = vector.shape_cast %263 : vector<1x4x8xf32> to vector<4x8xf32>
    %265 = vector.shape_cast %262 : vector<4x8xf32> to vector<1x4x8xf32>
    tpu.vector_store %arg4[%c0_89, %c0_90, %c0_91], %265 {strides = array<i32>} : memref<1x4x8xf32, #tpu.memory_space<vmem>>, vector<1x4x8xf32>,
    return
  }
  func.func @transform_0(%arg0: i32) -> (i32, i32, i32) {
    %c0_i32 = arith.constant 0 : i32
    %c0_i32_0 = arith.constant 0 : i32
    %c0_i32_1 = arith.constant 0 : i32
    return %arg0, %c0_i32, %c0_i32_0 : i32, i32, i32
  }
  func.func @transform_1(%arg0: i32) -> (i32, i32, i32) {
    %c0_i32 = arith.constant 0 : i32
    %c0_i32_0 = arith.constant 0 : i32
    %c0_i32_1 = arith.constant 0 : i32
    %c0_i32_2 = arith.constant 0 : i32
    return %c0_i32, %c0_i32_0, %c0_i32_1 : i32, i32, i32
  }
  func.func @transform_2(%arg0: i32) -> (i32, i32) {
    %c0_i32 = arith.constant 0 : i32
    %c0_i32_0 = arith.constant 0 : i32
    %c0_i32_1 = arith.constant 0 : i32
    return %c0_i32, %c0_i32_0 : i32, i32
  }
  func.func @transform_3(%arg0: i32) -> (i32, i32, i32) {
    %c0_i32 = arith.constant 0 : i32
    %c0_i32_0 = arith.constant 0 : i32
    %c0_i32_1 = arith.constant 0 : i32
    return %arg0, %c0_i32, %c0_i32_0 : i32, i32, i32
  }
}

</mosaic_0001>

<llo_original>
// kernel: integral_special_transformer.1
$region0: #{integral_special_transformer.1}
  #allocation0 [shape = 'u32[]', space=smem, size = 0x4, offset = 0x4, fixed_abs, tag = 'smem constant byte address 0x4 - core index']
  #allocation1 [shape = 'u32[144,128]{1,0:T(1,128)}', space=vmem, size = 0x12000, scoped, tag = 'internal scratch']
  #allocation2 [shape = 'f32[56,32]{1,0:T(8,128)}', space=vmem, size = 0x7000, scoped, tag = 'scratch operand']
  %s0 = inlined_call_operand.vmem [shape: f32[2,48,32], index: 0, kind: input, shape index: {}]
  %s1 = inlined_call_operand.vmem [shape: bf16[2,160,96], index: 1, kind: input, shape index: {}]
  %s2 = inlined_call_operand.hbm [shape: f32[280,96], index: 2, kind: input, shape index: {}]
  %s3 = inlined_call_operand.hbm [shape: f32[2,4,8], index: 3, kind: output, shape index: {}]
  %s4 = sld [smem:[#allocation0]]
  $region49: #{integral_special_transformer.1} parent=0
    _
  %s6 = ssub.s32 1, %s4
  %s7 = scalar_select 0, %s6, %s4
  $region1: #{integral_special_transformer.1} parent=0
    #allocation3 [shape = 'u8[143360]{0}', space=vmem, size = 0x23000, scoped, tag = 'input window, operand 2, single buffered']
    #allocation4 [shape = 's32[2]{0}', space=sflag, size = 0x8, scoped, tag = 'scoped memory for integral_special_transformer.1']
    #allocation5 [shape = 's32[2]{0}', space=sflag, size = 0x8, scoped, tag = 'scoped memory for integral_special_transformer.1']
    #allocation6 [shape = 'u8[4096]{0}', space=vmem, size = 0x1000, scoped, tag = 'output window, operand 0']
    %8 = vsyncpa [#allocation4], 0
    %9 = vsyncpa [#allocation5], 0
    %s10 = scalar_lea.sflag [#allocation5], 1
    %11 = vsyncpa %s10, 0
    loop: start=0, step=1, limit=4
    $region2: #{integral_special_transformer.1} parent=1 // loop_pre_header
      _
    $region3: #{integral_special_transformer.1} parent=1 // loop_header
      %s13 = sphi 0, %s17
      %p14 = scmp.ge.s32.totalorder %s13, 4
      %s23 = sphi 0, %s25
      %s26 = sphi 0, %s23
      %s27 = sphi 0, %s26
      %s43 = sphi 0, %s27
      %s47 = sphi 0, %s47
      %s49 = sphi 0, %s47
      %s50 = sphi 0, %s49
      %s64 = sphi 0, %s50
      %s68 = sphi 0, %s68
      %s70 = sphi 0, %s68
      %s71 = sphi 0, %s70
      %s85 = sphi 0, %s71
      %s91 = sphi 0, %s93
      %s94 = sphi 0, %s91
      %s95 = sphi 0, %s94
      %s111 = sphi 0, %s95
    $region4: #{integral_special_transformer.1} parent=1 // loop_header_branch
      %16 = sbr.rel (%p14) target = $region8
    $region5: #{integral_special_transformer.1} parent=1 // loop_body
      %s18 = ssub.s32 %s13, 1
      %s19 = ssub.s32 %s13, 2
      %s20 = sadd.s32 %s13, 1
      %s21 = ssub.s32 %s13, %s20
      %p22 = scmp.eq.s32.totalorder %s21, 0
      %s24 = sadd.s32 %s23, 1
      %s25 = scalar_select %p22, %s23, %s24
      %p28 = pneg %p22
      %p29 = scmp.eq.s32.totalorder %s13, 1
      %p30 = por %p28, %p29
      %p31 = scmp.ne.s32.totalorder %s23, %s26
      %p32 = scmp.eq.s32.totalorder %s13, 0
      %p33 = por %p31, %p32
      %p34 = scmp.ne.s32.totalorder %s23, %s26
      %p35 = scmp.eq.s32.totalorder %s18, 1
      %p36 = por %p34, %p35
      %p37 = scmp.ne.s32.totalorder %s26, %s27
      %p38 = scmp.eq.s32.totalorder %s18, 0
      %p39 = por %p37, %p38
      %p40 = scmp.ne.s32.totalorder %s26, %s27
      %p41 = scmp.eq.s32.totalorder %s19, 1
      %p42 = por %p40, %p41
      %p44 = scmp.ne.s32.totalorder %s27, %s43
      %p45 = scmp.eq.s32.totalorder %s19, 0
      %p46 = por %p44, %p45
      %s48 = sadd.s32 %s47, 1
      %p51 = scmp.eq.s32.totalorder %s13, 1
      %p52 = scmp.ne.s32.totalorder %s47, %s49
      %p53 = scmp.eq.s32.totalorder %s13, 0
      %p54 = por %p52, %p53
      %p55 = scmp.ne.s32.totalorder %s47, %s49
      %p56 = scmp.eq.s32.totalorder %s18, 1
      %p57 = por %p55, %p56
      %p58 = scmp.ne.s32.totalorder %s49, %s50
      %p59 = scmp.eq.s32.totalorder %s18, 0
      %p60 = por %p58, %p59
      %p61 = scmp.ne.s32.totalorder %s49, %s50
      %p62 = scmp.eq.s32.totalorder %s19, 1
      %p63 = por %p61, %p62
      %p65 = scmp.ne.s32.totalorder %s50, %s64
      %p66 = scmp.eq.s32.totalorder %s19, 0
      %p67 = por %p65, %p66
      %s69 = sadd.s32 %s68, 1
      %p72 = scmp.eq.s32.totalorder %s13, 1
      %p73 = scmp.ne.s32.totalorder %s68, %s70
      %p74 = scmp.eq.s32.totalorder %s13, 0
      %p75 = por %p73, %p74
      %p76 = scmp.ne.s32.totalorder %s68, %s70
      %p77 = scmp.eq.s32.totalorder %s18, 1
      %p78 = por %p76, %p77
      %p79 = scmp.ne.s32.totalorder %s70, %s71
      %p80 = scmp.eq.s32.totalorder %s18, 0
      %p81 = por %p79, %p80
      %p82 = scmp.ne.s32.totalorder %s70, %s71
      %p83 = scmp.eq.s32.totalorder %s19, 1
      %p84 = por %p82, %p83
      %p86 = scmp.ne.s32.totalorder %s71, %s85
      %p87 = scmp.eq.s32.totalorder %s19, 0
      %p88 = por %p86, %p87
      %s89 = ssub.s32 %s13, %s20
      %p90 = scmp.eq.s32.totalorder %s89, 0
      %s92 = sadd.s32 %s91, 1
      %s93 = scalar_select %p90, %s91, %s92
      %p96 = pneg %p90
      %p97 = scmp.eq.s32.totalorder %s13, 1
      %p98 = por %p96, %p97
      %p99 = scmp.ne.s32.totalorder %s91, %s94
      %p100 = scmp.eq.s32.totalorder %s13, 0
      %p101 = por %p99, %p100
      %p102 = scmp.ne.s32.totalorder %s91, %s94
      %p103 = scmp.eq.s32.totalorder %s18, 1
      %p104 = por %p102, %p103
      %p105 = scmp.ne.s32.totalorder %s94, %s95
      %p106 = scmp.eq.s32.totalorder %s18, 0
      %p107 = por %p105, %p106
      %p108 = scmp.ne.s32.totalorder %s94, %s95
      %p109 = scmp.eq.s32.totalorder %s19, 1
      %p110 = por %p108, %p109
      %p112 = scmp.ne.s32.totalorder %s95, %s111
      %p113 = scmp.eq.s32.totalorder %s19, 0
      %p114 = por %p112, %p113
      %p115 = scmp.le.s32.totalorder 1, %s13
      %p116 = scmp.lt.s32.totalorder %s13, 3
      %p117 = pnand %p115, %p116
      %p118 = pneg %p117
      // Predicated region
      $region9: #{integral_special_transformer.1} parent=5 // pred_check
        _
      $region10: #{integral_special_transformer.1} parent=5 // pred_check_branch
        %120 = sbr.rel (%p117) target = $region12
      $region11: #{integral_special_transformer.1} parent=5 // pred_region
        %s121 = ssub.s32 %s13, 1
        // Predicated region
        $region13: #{integral_special_transformer.1} parent=11 // pred_check
          %p122 = pneg %p60
        $region14: #{integral_special_transformer.1} parent=11 // pred_check_branch
          %124 = sbr.rel (%p122) target = $region16
        $region15: #{integral_special_transformer.1} parent=11 // pred_region
          _
        $region16: #{integral_special_transformer.1} parent=11 // pred_fallthru
          _
        // Predicated region
        $region17: #{integral_special_transformer.1} parent=11 // pred_check
          %p125 = pneg %p81
        $region18: #{integral_special_transformer.1} parent=11 // pred_check_branch
          %127 = sbr.rel (%p125) target = $region20
        $region19: #{integral_special_transformer.1} parent=11 // pred_region
          %s129 = ssub.s32 4480, 4480
          %130 = vsyncadd [#allocation4], %s129
          %s131 = sshll.u32 [#allocation3], 4
          %s132 = int_to_ptr.vmem [resolvable:$true] %s131
          %137 = dma.hbm_to_vmem [thread:$0]  %s2, 4480, %s132, [#allocation4], 128, 128, 8
        $region20: #{integral_special_transformer.1} parent=11 // pred_fallthru
          _
      $region12: #{integral_special_transformer.1} parent=5 // pred_fallthru
        _
      %p138 = scmp.lt.s32.totalorder %s13, 2
      // Predicated region
      $region21: #{integral_special_transformer.1} parent=5 // pred_check
        %p139 = pneg %p138
      $region22: #{integral_special_transformer.1} parent=5 // pred_check_branch
        %141 = sbr.rel (%p139) target = $region24
      $region23: #{integral_special_transformer.1} parent=5 // pred_region
        // Predicated region
        $region25: #{integral_special_transformer.1} parent=23 // pred_check
          %p142 = pneg %p33
        $region26: #{integral_special_transformer.1} parent=23 // pred_check_branch
          %144 = sbr.rel (%p142) target = $region28
        $region27: #{integral_special_transformer.1} parent=23 // pred_region
          %p145 = scmp.lt.s32.totalorder %s13, 1
          %s146 = scalar_select %p145, %s13, 1
          %s147 = smul.addr %s146, 6
          %s148 = smul.addr %s147, 8
          %s149 = scalar_lea.vmem %s0, %s148
        $region28: #{integral_special_transformer.1} parent=23 // pred_fallthru
          _
      $region24: #{integral_special_transformer.1} parent=5 // pred_fallthru
        _
      %p150 = scmp.le.s32.totalorder 1, %s13
      %p151 = scmp.lt.s32.totalorder %s13, 3
      %p152 = pnand %p150, %p151
      %p153 = pneg %p152
      // Predicated region
      $region29: #{integral_special_transformer.1} parent=5 // pred_check
        _
      $region30: #{integral_special_transformer.1} parent=5 // pred_check_branch
        %155 = sbr.rel (%p152) target = $region32
      $region31: #{integral_special_transformer.1} parent=5 // pred_region
        %s156 = ssub.s32 %s13, 1
        // Predicated region
        $region33: #{integral_special_transformer.1} parent=31 // pred_check
          %p157 = pneg %p81
        $region34: #{integral_special_transformer.1} parent=31 // pred_check_branch
          %159 = sbr.rel (%p157) target = $region36
        $region35: #{integral_special_transformer.1} parent=31 // pred_region
          %160 = dma.done [#allocation4], 4480
        $region36: #{integral_special_transformer.1} parent=31 // pred_fallthru
          _
        %p161 = scmp.lt.s32.totalorder %s18, 1
        %s162 = scalar_select %p161, %s18, 1
        %s163 = smul.addr %s162, 6
        %s164 = smul.addr %s163, 8
        %s165 = scalar_lea.vmem %s0, %s164
        %p166 = pneg %p39
        %p167 = pneg %p36
        %p168 = pneg %p60
        %p169 = pneg %p57
        %p170 = pneg %p81
        %p171 = pneg %p78
        %p172 = pneg %p107
        %p173 = pneg %p104
        %s174 = sand.u32 %s94, 1
        %s175 = scalar_lea.sflag [#allocation5], %s174
        %s176 = sand.u32 %s94, 1
        %s177 = smul.addr %s176, 4
        %s178 = scalar_lea.vmem [#allocation6], %s177
        %p179 = scmp.lt.s32.totalorder %s18, 1
        %s180 = scalar_select %p179, %s18, 1
        %s181 = smul.addr %s180, 6
        %s182 = smul.addr %s181, 8
        %s183 = scalar_lea.vmem %s0, %s182
        %v185 = vld [vmem:[#allocation3 + $0x10] sm:$0xff]
        %v186 = vld [vmem:[#allocation3 + $0x18] sm:$0xff]
        %v187 = vld [vmem:[#allocation3 + $0x20] sm:$0xff]
        %v188 = vld [vmem:[#allocation3 + $0x28] sm:$0xff]
        %v189 = vld [vmem:[#allocation3 + $0x30] sm:$0xff]
        %v190 = vld [vmem:[#allocation3 + $0x38] sm:$0xff]
        %v191 = vld [vmem:[#allocation3 + $0x40] sm:$0xff]
        %v192 = vld [vmem:[#allocation3 + $0x48] sm:$0xff]
        %v193 = vld [vmem:[#allocation3 + $0x50] sm:$0xff]
        %v194 = vld [vmem:[#allocation3 + $0x58] sm:$0xff]
        %v195 = vld [vmem:[#allocation3 + $0x60] sm:$0xff]
        %v196 = vld [vmem:[#allocation3 + $0x68] sm:$0xff]
        %v197 = vld [vmem:[#allocation3 + $0x70] sm:$0xff]
        %v198 = vld [vmem:[#allocation3 + $0x78] sm:$0xff]
        %v199 = vld [vmem:[#allocation3 + $0x80] sm:$0xff]
        %v200 = vld [vmem:[#allocation3 + $0x88] sm:$0xff]
        %v201 = vld [vmem:[#allocation3 + $0x108] sm:$0xff]
        %v202 = vld [vmem:[%s183] sm:$0xff]
        %v203 = vld [vmem:[%s183 + $0x8] sm:$0xff]
        %v204 = vld [vmem:[%s183 + $0x10] sm:$0xff]
        %v205 = vld [vmem:[%s183 + $0x18] sm:$0xff]
        %v206 = vld [vmem:[%s183 + $0x20] sm:$0xff]
        %v207 = vld [vmem:[%s183 + $0x28] sm:$0xff]
        %v208 = vld [vmem:[#allocation3 + $0xc8] sm:$0xff]
        %v209 = vld [vmem:[#allocation3 + $0xd0] sm:$0xff]
        %v210 = vld [vmem:[#allocation3 + $0xd8] sm:$0xff]
        %v211 = vld [vmem:[#allocation3 + $0xe0] sm:$0xff]
        %v212 = vlaneseq
        %v213 = vshrl.u32 %v212, 7
        %v214 = vsub.s32 0, %v213
        %v215 = vrot.slane %v201, %v214
        %vm216 = vcmask 261120
        %v218 = vsel %vm216, %v202, 0
        %v221 = vsel %vm216, %v203, 0
        %v224 = vsel %vm216, %v204, 0
        %v227 = vsel %vm216, %v205, 0
        %229 = vmatprep.subr.mxu0 0.0
        %230 = vmatpush1.msra.mxu0 0.0
        %231 = vmatprep.subr.mxu0 0.0
        %232 = vmatpush1.msra.mxu0 0.0
        %233 = vmatprep.subr.mxu0 0.0
        %234 = vmatpush1.msra.mxu0 0.0
        %235 = vmatprep.subr.mxu0 0.0
        %236 = vmatpush1.msra.mxu0 0.0
        %237 = vmatprep.subr.mxu0 0.0
        %238 = vmatpush1.msra.mxu0 0.0
        %239 = vmatprep.subr.mxu0 0.0
        %240 = vmatpush1.msra.mxu0 0.0
        %241 = vmatprep.subr.mxu0 0.0
        %242 = vmatpush1.msra.mxu0 0.0
        %243 = vmatprep.subr.mxu0 0.0
        %244 = vmatpush1.msra.mxu0 0.0
        %245 = vmatprep.subr.mxu0 0.0
        %246 = vmatpush1.msra.mxu0 0.0
        %247 = vmatprep.subr.mxu0 0.0
        %248 = vmatpush1.msra.mxu0 0.0
        %249 = vmatprep.subr.mxu0 0.0
        %250 = vmatpush1.msra.mxu0 0.0
        %251 = vmatprep.subr.mxu0 0.0
        %252 = vmatpush1.msra.mxu0 0.0
        %253 = vmatprep.subr.mxu0 0.0
        %254 = vmatpush1.msra.mxu0 %v211
        %255 = vmatprep.subr.mxu0 0.0
        %256 = vmatpush1.msra.mxu0 %v210
        %257 = vmatprep.subr.mxu0 0.0
        %258 = vmatpush1.msra.mxu0 %v209
        %259 = vmatprep.subr.mxu0 0.0
        %260 = vmatpush1.msra.mxu0 %v208
        %261 = vmatprep.subr.mxu0 0.0
        %262 = vmatpush2.msra.mxu0 0.0
        %263 = vmatprep.subr.mxu0 0.0
        %264 = vmatpush2.msra.mxu0 0.0
        %265 = vmatprep.subr.mxu0 0.0
        %266 = vmatpush2.msra.mxu0 0.0
        %267 = vmatprep.subr.mxu0 0.0
        %268 = vmatpush2.msra.mxu0 0.0
        %269 = vmatprep.subr.mxu0 0.0
        %270 = vmatpush2.msra.mxu0 0.0
        %271 = vmatprep.subr.mxu0 0.0
        %272 = vmatpush2.msra.mxu0 0.0
        %273 = vmatprep.subr.mxu0 0.0
        %274 = vmatpush2.msra.mxu0 0.0
        %275 = vmatprep.subr.mxu0 0.0
        %276 = vmatpush2.msra.mxu0 0.0
        %277 = vmatprep.subr.mxu0 0.0
        %278 = vmatpush2.msra.mxu0 0.0
        %279 = vmatprep.subr.mxu0 0.0
        %280 = vmatpush2.msra.mxu0 0.0
        %281 = vmatprep.subr.mxu0 0.0
        %282 = vmatpush2.msra.mxu0 0.0
        %283 = vmatprep.subr.mxu0 0.0
        %284 = vmatpush2.msra.mxu0 0.0
        %285 = vmatprep.subr.mxu0 0.0
        %286 = vmatpush2.msra.mxu0 0.0
        %287 = vmatprep.subr.mxu0 0.0
        %288 = vmatpush2.msra.mxu0 0.0
        %289 = vmatprep.subr.mxu0 0.0
        %290 = vmatpush2.msra.mxu0 0.0
        %291 = vmatprep.subr.mxu0 0.0
        %292 = vmatpush2.msra.mxu0 0.0
        %293 = vmatprep.mubr.f32.mxu0 0.0
        %294 = vmatmul.mubr.f32.gmra.mxu0 %v218
        %v295 = vpop.f32.mrf.mxu0
        %v296 = vadd.f32 %v215, %v295
        %v297 = vpop.f32.mrf.mxu0
        %298 = vmatprep.mubr.f32.mxu0 0.0
        %299 = vmatmul.mubr.f32.gmra.mxu0 %v221
        %v300 = vpop.f32.mrf.mxu0
        %v301 = vadd.f32 %v215, %v300
        %v302 = vpop.f32.mrf.mxu0
        %303 = vmatprep.mubr.f32.mxu0 0.0
        %304 = vmatmul.mubr.f32.gmra.mxu0 %v224
        %v305 = vpop.f32.mrf.mxu0
        %v306 = vadd.f32 %v215, %v305
        %v307 = vpop.f32.mrf.mxu0
        %308 = vmatprep.mubr.f32.mxu0 0.0
        %309 = vmatmul.mubr.f32.gmra.mxu0 %v227
        %v310 = vpop.f32.mrf.mxu0
        %v311 = vadd.f32 %v215, %v310
        %v312 = vpop.f32.mrf.mxu0
        %313 = vdwg.mxu0
        %v314 = vld [vmem:[#allocation3] sm:$0xff]
        %v315 = vpack.c.bf16 %v301, %v296
        %v316 = vpack.c.bf16 %v311, %v306
        %v317 = vld [vmem:[%s1] sm:$0xf]
        %v318 = vld [vmem:[%s1 + $0x4] sm:$0xf]
        %v319 = vld [vmem:[%s1 + $0x8] sm:$0xf]
        %v320 = vld [vmem:[%s1 + $0xc] sm:$0xf]
        %v321 = vlaneseq
        %v322 = vshrl.u32 %v321, 7
        %v323 = vsub.s32 0, %v322
        %v324 = vrot.slane %v314, %v323
        %v329 = vunpack.c.l.b16 %v317
        %v330 = vunpack.c.l.b16 %v318
        %v331 = vunpack.c.l.b16 %v319
        %v332 = vunpack.c.l.b16 %v320
        %v333 = vpack.c.b16 %v330, %v329
        %v334 = vpack.c.b16 %v332, %v331
        %v338 = vsel %vm216, %v315, 0
        %v341 = vsel %vm216, %v316, 0
        %343 = vmatprep.subr.bf16.mxu0 0
        %344 = vmatpush1.bf16.msra.mxu0 0
        %345 = vmatprep.subr.bf16.mxu0 0
        %346 = vmatpush1.bf16.msra.mxu0 0
        %347 = vmatprep.subr.bf16.mxu0 0
        %348 = vmatpush1.bf16.msra.mxu0 0
        %349 = vmatprep.subr.bf16.mxu0 0
        %350 = vmatpush1.bf16.msra.mxu0 0
        %351 = vmatprep.subr.bf16.mxu0 0
        %352 = vmatpush1.bf16.msra.mxu0 0
        %353 = vmatprep.subr.bf16.mxu0 0
        %354 = vmatpush1.bf16.msra.mxu0 0
        %355 = vmatprep.subr.bf16.mxu0 0
        %356 = vmatpush1.bf16.msra.mxu0 %v334
        %357 = vmatprep.subr.bf16.mxu0 0
        %358 = vmatpush1.bf16.msra.mxu0 %v333
        %359 = vmatprep.subr.bf16.mxu0 0
        %360 = vmatpush2.bf16.msra.mxu0 0
        %361 = vmatprep.subr.bf16.mxu0 0
        %362 = vmatpush2.bf16.msra.mxu0 0
        %363 = vmatprep.subr.bf16.mxu0 0
        %364 = vmatpush2.bf16.msra.mxu0 0
        %365 = vmatprep.subr.bf16.mxu0 0
        %366 = vmatpush2.bf16.msra.mxu0 0
        %367 = vmatprep.subr.bf16.mxu0 0
        %368 = vmatpush2.bf16.msra.mxu0 0
        %369 = vmatprep.subr.bf16.mxu0 0
        %370 = vmatpush2.bf16.msra.mxu0 0
        %371 = vmatprep.subr.bf16.mxu0 0
        %372 = vmatpush2.bf16.msra.mxu0 0
        %373 = vmatprep.subr.bf16.mxu0 0
        %374 = vmatpush2.bf16.msra.mxu0 0
        %375 = vmatprep.mubr.bf16.mxu0 0
        %376 = vmatmul.mubr.bf16.gmra.mxu0 %v338
        %v377 = vpop.f32.mrf.mxu0
        %v378 = vadd.f32 %v324, %v377
        %v379 = vpop.f32.mrf.mxu0
        %v380 = vpop.f32.mrf.mxu0
        %v381 = vadd.f32 %v324, %v380
        %v382 = vpop.f32.mrf.mxu0
        %383 = vmatprep.mubr.bf16.mxu0 0
        %384 = vmatmul.mubr.bf16.gmra.mxu0 %v341
        %v385 = vpop.f32.mrf.mxu0
        %v386 = vadd.f32 %v324, %v385
        %v387 = vpop.f32.mrf.mxu0
        %v388 = vpop.f32.mrf.mxu0
        %v389 = vadd.f32 %v324, %v388
        %v390 = vpop.f32.mrf.mxu0
        %391 = vdwg.mxu0
        %v392 = vmul.f32 %v378, %v185
        %v393 = vmul.f32 %v381, %v186
        %v394 = vmul.f32 %v386, %v187
        %v395 = vmul.f32 %v389, %v188
        %v396 = vmul.f32 %v378, %v189
        %v397 = vmul.f32 %v381, %v190
        %v398 = vmul.f32 %v386, %v191
        %v399 = vmul.f32 %v389, %v192
        %v400 = vmul.f32 %v378, %v193
        %v401 = vmul.f32 %v381, %v194
        %v402 = vmul.f32 %v386, %v195
        %v403 = vmul.f32 %v389, %v196
        %v404 = vmul.f32 %v378, %v197
        %v405 = vmul.f32 %v381, %v198
        %v406 = vmul.f32 %v386, %v199
        %v407 = vmul.f32 %v389, %v200
        %v408 = vpack.c.bf16 %v393, %v392
        %v409 = vpack.c.bf16 %v395, %v394
        %v410 = vpack.c.bf16 %v397, %v396
        %v411 = vpack.c.bf16 %v399, %v398
        %v412 = vpack.c.bf16 %v401, %v400
        %v413 = vpack.c.bf16 %v403, %v402
        %v414 = vpack.c.bf16 %v405, %v404
        %v415 = vpack.c.bf16 %v407, %v406
        %v416 = vpack.c.bf16 %v381, %v378
        %v417 = vpack.c.bf16 %v389, %v386
        %420 = vrot.lane.b32.xlu0 %v416, 96
        %v421 = vpop.permute.xlu0 %420
        %422 = vrot.lane.b32.xlu0 %v417, 96
        %v423 = vpop.permute.xlu0 %422
        %440 = vrot.lane.b32.xlu0 %v185, 96
        %v441 = vpop.permute.xlu0 %440
        %442 = vrot.lane.b32.xlu0 %v186, 96
        %v443 = vpop.permute.xlu0 %442
        %444 = vrot.lane.b32.xlu0 %v187, 96
        %v445 = vpop.permute.xlu0 %444
        %446 = vrot.lane.b32.xlu0 %v188, 96
        %v447 = vpop.permute.xlu0 %446
        %448 = vrot.lane.b32.xlu0 %v189, 96
        %v449 = vpop.permute.xlu0 %448
        %450 = vrot.lane.b32.xlu0 %v190, 96
        %v451 = vpop.permute.xlu0 %450
        %452 = vrot.lane.b32.xlu0 %v191, 96
        %v453 = vpop.permute.xlu0 %452
        %454 = vrot.lane.b32.xlu0 %v192, 96
        %v455 = vpop.permute.xlu0 %454
        %456 = vrot.lane.b32.xlu0 %v193, 96
        %v457 = vpop.permute.xlu0 %456
        %458 = vrot.lane.b32.xlu0 %v194, 96
        %v459 = vpop.permute.xlu0 %458
        %460 = vrot.lane.b32.xlu0 %v195, 96
        %v461 = vpop.permute.xlu0 %460
        %462 = vrot.lane.b32.xlu0 %v196, 96
        %v463 = vpop.permute.xlu0 %462
        %464 = vrot.lane.b32.xlu0 %v197, 96
        %v465 = vpop.permute.xlu0 %464
        %466 = vrot.lane.b32.xlu0 %v198, 96
        %v467 = vpop.permute.xlu0 %466
        %468 = vrot.lane.b32.xlu0 %v199, 96
        %v469 = vpop.permute.xlu0 %468
        %470 = vrot.lane.b32.xlu0 %v200, 96
        %v471 = vpop.permute.xlu0 %470
        %v489 = vsel %vm216, %v408, 0
        %v492 = vsel %vm216, %v409, 0
        %v495 = vsel %vm216, %v410, 0
        %v498 = vsel %vm216, %v411, 0
        %v501 = vsel %vm216, %v412, 0
        %v504 = vsel %vm216, %v413, 0
        %v507 = vsel %vm216, %v414, 0
        %v510 = vsel %vm216, %v415, 0
        %v513 = vsel %vm216, %v421, 0
        %v516 = vsel %vm216, %v423, 0
        %518 = vmatprep.subr.bf16.mxu0 0
        %519 = vmatpush1.bf16.xpose.msra.mxu0 0
        %520 = vmatprep.subr.bf16.mxu0 0
        %521 = vmatpush1.bf16.xpose.msra.mxu0 0
        %522 = vmatprep.subr.bf16.mxu0 0
        %523 = vmatpush1.bf16.xpose.msra.mxu0 0
        %524 = vmatprep.subr.bf16.mxu0 0
        %525 = vmatpush1.bf16.xpose.msra.mxu0 0
        %526 = vmatprep.subr.bf16.mxu0 0
        %527 = vmatpush1.bf16.xpose.msra.mxu0 0
        %528 = vmatprep.subr.bf16.mxu0 0
        %529 = vmatpush1.bf16.xpose.msra.mxu0 0
        %530 = vmatprep.subr.bf16.mxu0 0
        %531 = vmatpush1.bf16.xpose.msra.mxu0 %v516
        %532 = vmatprep.subr.bf16.mxu0 0
        %533 = vmatpush1.bf16.xpose.msra.mxu0 %v513
        %534 = vmatprep.subr.bf16.mxu0 0
        %535 = vmatpush2.bf16.xpose.msra.mxu0 0
        %536 = vmatprep.subr.bf16.mxu0 0
        %537 = vmatpush2.bf16.xpose.msra.mxu0 0
        %538 = vmatprep.subr.bf16.mxu0 0
        %539 = vmatpush2.bf16.xpose.msra.mxu0 0
        %540 = vmatprep.subr.bf16.mxu0 0
        %541 = vmatpush2.bf16.xpose.msra.mxu0 0
        %542 = vmatprep.subr.bf16.mxu0 0
        %543 = vmatpush2.bf16.xpose.msra.mxu0 0
        %544 = vmatprep.subr.bf16.mxu0 0
        %545 = vmatpush2.bf16.xpose.msra.mxu0 0
        %546 = vmatprep.subr.bf16.mxu0 0
        %547 = vmatpush2.bf16.xpose.msra.mxu0 0
        %548 = vmatprep.subr.bf16.mxu0 0
        %549 = vmatpush2.bf16.xpose.msra.mxu0 0
        %550 = vmatprep.mubr.bf16.mxu0 0
        %551 = vmatmul.mubr.bf16.gmra.mxu0 %v489
        %v552 = vpop.f32.mrf.mxu0
        %v553 = vadd.f32 %v441, %v552
        %v554 = vpop.f32.mrf.mxu0
        %v555 = vpop.f32.mrf.mxu0
        %v556 = vadd.f32 %v443, %v555
        %v557 = vpop.f32.mrf.mxu0
        %558 = vmatprep.mubr.bf16.mxu0 0
        %559 = vmatmul.mubr.bf16.gmra.mxu0 %v492
        %v560 = vpop.f32.mrf.mxu0
        %v561 = vadd.f32 %v445, %v560
        %v562 = vpop.f32.mrf.mxu0
        %v563 = vpop.f32.mrf.mxu0
        %v564 = vadd.f32 %v447, %v563
        %v565 = vpop.f32.mrf.mxu0
        %566 = vmatprep.mubr.bf16.mxu0 0
        %567 = vmatmul.mubr.bf16.gmra.mxu0 %v495
        %v568 = vpop.f32.mrf.mxu0
        %v569 = vadd.f32 %v449, %v568
        %v570 = vpop.f32.mrf.mxu0
        %v571 = vpop.f32.mrf.mxu0
        %v572 = vadd.f32 %v451, %v571
        %v573 = vpop.f32.mrf.mxu0
        %574 = vmatprep.mubr.bf16.mxu0 0
        %575 = vmatmul.mubr.bf16.gmra.mxu0 %v498
        %v576 = vpop.f32.mrf.mxu0
        %v577 = vadd.f32 %v453, %v576
        %v578 = vpop.f32.mrf.mxu0
        %v579 = vpop.f32.mrf.mxu0
        %v580 = vadd.f32 %v455, %v579
        %v581 = vpop.f32.mrf.mxu0
        %582 = vmatprep.mubr.bf16.mxu0 0
        %583 = vmatmul.mubr.bf16.gmra.mxu0 %v501
        %v584 = vpop.f32.mrf.mxu0
        %v585 = vadd.f32 %v457, %v584
        %v586 = vpop.f32.mrf.mxu0
        %v587 = vpop.f32.mrf.mxu0
        %v588 = vadd.f32 %v459, %v587
        %v589 = vpop.f32.mrf.mxu0
        %590 = vmatprep.mubr.bf16.mxu0 0
        %591 = vmatmul.mubr.bf16.gmra.mxu0 %v504
        %v592 = vpop.f32.mrf.mxu0
        %v593 = vadd.f32 %v461, %v592
        %v594 = vpop.f32.mrf.mxu0
        %v595 = vpop.f32.mrf.mxu0
        %v596 = vadd.f32 %v463, %v595
        %v597 = vpop.f32.mrf.mxu0
        %598 = vmatprep.mubr.bf16.mxu0 0
        %599 = vmatmul.mubr.bf16.gmra.mxu0 %v507
        %v600 = vpop.f32.mrf.mxu0
        %v601 = vadd.f32 %v465, %v600
        %v602 = vpop.f32.mrf.mxu0
        %v603 = vpop.f32.mrf.mxu0
        %v604 = vadd.f32 %v467, %v603
        %v605 = vpop.f32.mrf.mxu0
        %606 = vmatprep.mubr.bf16.mxu0 0
        %607 = vmatmul.mubr.bf16.gmra.mxu0 %v510
        %v608 = vpop.f32.mrf.mxu0
        %v609 = vadd.f32 %v469, %v608
        %v610 = vpop.f32.mrf.mxu0
        %v611 = vpop.f32.mrf.mxu0
        %v612 = vadd.f32 %v471, %v611
        %v613 = vpop.f32.mrf.mxu0
        %614 = vdwg.mxu0
        %v615 = vsel %vm216, %v553, -inf
        %616 = vmax.xlane.f32.xlu0 %v615
        %v617 = vpop.xlane.xlu0 %616
        %v618 = vsel %vm216, %v556, -inf
        %619 = vmax.xlane.f32.xlu0 %v618
        %v620 = vpop.xlane.xlu0 %619
        %v621 = vsel %vm216, %v561, -inf
        %622 = vmax.xlane.f32.xlu0 %v621
        %v623 = vpop.xlane.xlu0 %622
        %v624 = vsel %vm216, %v564, -inf
        %625 = vmax.xlane.f32.xlu0 %v624
        %v626 = vpop.xlane.xlu0 %625
        %v627 = vsel %vm216, %v569, -inf
        %628 = vmax.xlane.f32.xlu0 %v627
        %v629 = vpop.xlane.xlu0 %628
        %v630 = vsel %vm216, %v572, -inf
        %631 = vmax.xlane.f32.xlu0 %v630
        %v632 = vpop.xlane.xlu0 %631
        %v633 = vsel %vm216, %v577, -inf
        %634 = vmax.xlane.f32.xlu0 %v633
        %v635 = vpop.xlane.xlu0 %634
        %v636 = vsel %vm216, %v580, -inf
        %637 = vmax.xlane.f32.xlu0 %v636
        %v638 = vpop.xlane.xlu0 %637
        %v639 = vsel %vm216, %v585, -inf
        %640 = vmax.xlane.f32.xlu0 %v639
        %v641 = vpop.xlane.xlu0 %640
        %v642 = vsel %vm216, %v588, -inf
        %643 = vmax.xlane.f32.xlu0 %v642
        %v644 = vpop.xlane.xlu0 %643
        %v645 = vsel %vm216, %v593, -inf
        %646 = vmax.xlane.f32.xlu0 %v645
        %v647 = vpop.xlane.xlu0 %646
        %v648 = vsel %vm216, %v596, -inf
        %649 = vmax.xlane.f32.xlu0 %v648
        %v650 = vpop.xlane.xlu0 %649
        %v651 = vsel %vm216, %v601, -inf
        %652 = vmax.xlane.f32.xlu0 %v651
        %v653 = vpop.xlane.xlu0 %652
        %v654 = vsel %vm216, %v604, -inf
        %655 = vmax.xlane.f32.xlu0 %v654
        %v656 = vpop.xlane.xlu0 %655
        %v657 = vsel %vm216, %v609, -inf
        %658 = vmax.xlane.f32.xlu0 %v657
        %v659 = vpop.xlane.xlu0 %658
        %v660 = vsel %vm216, %v612, -inf
        %661 = vmax.xlane.f32.xlu0 %v660
        %v662 = vpop.xlane.xlu0 %661
        %v663 = vsub.f32 %v553, %v617
        %v664 = vsub.f32 %v556, %v620
        %v665 = vsub.f32 %v561, %v623
        %v666 = vsub.f32 %v564, %v626
        %v667 = vsub.f32 %v569, %v629
        %v668 = vsub.f32 %v572, %v632
        %v669 = vsub.f32 %v577, %v635
        %v670 = vsub.f32 %v580, %v638
        %v671 = vsub.f32 %v585, %v641
        %v672 = vsub.f32 %v588, %v644
        %v673 = vsub.f32 %v593, %v647
        %v674 = vsub.f32 %v596, %v650
        %v675 = vsub.f32 %v601, %v653
        %v676 = vsub.f32 %v604, %v656
        %v677 = vsub.f32 %v609, %v659
        %v678 = vsub.f32 %v612, %v662
        %v679 = vmul.f32 %v663, 1.442695
        %v680 = vpow.pop %v679
        %v681 = vmul.f32 %v664, 1.442695
        %v682 = vpow.pop %v681
        %v683 = vmul.f32 %v665, 1.442695
        %v684 = vpow.pop %v683
        %v685 = vmul.f32 %v666, 1.442695
        %v686 = vpow.pop %v685
        %v687 = vmul.f32 %v667, 1.442695
        %v688 = vpow.pop %v687
        %v689 = vmul.f32 %v668, 1.442695
        %v690 = vpow.pop %v689
        %v691 = vmul.f32 %v669, 1.442695
        %v692 = vpow.pop %v691
        %v693 = vmul.f32 %v670, 1.442695
        %v694 = vpow.pop %v693
        %v695 = vmul.f32 %v671, 1.442695
        %v696 = vpow.pop %v695
        %v697 = vmul.f32 %v672, 1.442695
        %v698 = vpow.pop %v697
        %v699 = vmul.f32 %v673, 1.442695
        %v700 = vpow.pop %v699
        %v701 = vmul.f32 %v674, 1.442695
        %v702 = vpow.pop %v701
        %v703 = vmul.f32 %v675, 1.442695
        %v704 = vpow.pop %v703
        %v705 = vmul.f32 %v676, 1.442695
        %v706 = vpow.pop %v705
        %v707 = vmul.f32 %v677, 1.442695
        %v708 = vpow.pop %v707
        %v709 = vmul.f32 %v678, 1.442695
        %v710 = vpow.pop %v709
        %v711 = vsel %vm216, %v680, 0.0
        %712 = vadd.xlane.f32.xlu0 %v711
        %v713 = vpop.xlane.xlu0 %712
        %v714 = vsel %vm216, %v682, 0.0
        %715 = vadd.xlane.f32.xlu0 %v714
        %v716 = vpop.xlane.xlu0 %715
        %v717 = vsel %vm216, %v684, 0.0
        %718 = vadd.xlane.f32.xlu0 %v717
        %v719 = vpop.xlane.xlu0 %718
        %v720 = vsel %vm216, %v686, 0.0
        %721 = vadd.xlane.f32.xlu0 %v720
        %v722 = vpop.xlane.xlu0 %721
        %v723 = vsel %vm216, %v688, 0.0
        %724 = vadd.xlane.f32.xlu0 %v723
        %v725 = vpop.xlane.xlu0 %724
        %v726 = vsel %vm216, %v690, 0.0
        %727 = vadd.xlane.f32.xlu0 %v726
        %v728 = vpop.xlane.xlu0 %727
        %v729 = vsel %vm216, %v692, 0.0
        %730 = vadd.xlane.f32.xlu0 %v729
        %v731 = vpop.xlane.xlu0 %730
        %v732 = vsel %vm216, %v694, 0.0
        %733 = vadd.xlane.f32.xlu0 %v732
        %v734 = vpop.xlane.xlu0 %733
        %v735 = vsel %vm216, %v696, 0.0
        %736 = vadd.xlane.f32.xlu0 %v735
        %v737 = vpop.xlane.xlu0 %736
        %v738 = vsel %vm216, %v698, 0.0
        %739 = vadd.xlane.f32.xlu0 %v738
        %v740 = vpop.xlane.xlu0 %739
        %v741 = vsel %vm216, %v700, 0.0
        %742 = vadd.xlane.f32.xlu0 %v741
        %v743 = vpop.xlane.xlu0 %742
        %v744 = vsel %vm216, %v702, 0.0
        %745 = vadd.xlane.f32.xlu0 %v744
        %v746 = vpop.xlane.xlu0 %745
        %v747 = vsel %vm216, %v704, 0.0
        %748 = vadd.xlane.f32.xlu0 %v747
        %v749 = vpop.xlane.xlu0 %748
        %v750 = vsel %vm216, %v706, 0.0
        %751 = vadd.xlane.f32.xlu0 %v750
        %v752 = vpop.xlane.xlu0 %751
        %v753 = vsel %vm216, %v708, 0.0
        %754 = vadd.xlane.f32.xlu0 %v753
        %v755 = vpop.xlane.xlu0 %754
        %v756 = vsel %vm216, %v710, 0.0
        %757 = vadd.xlane.f32.xlu0 %v756
        %v758 = vpop.xlane.xlu0 %757
        %v759 = vrcp.pop %v713
        %v760 = vrcp.pop %v716
        %v761 = vrcp.pop %v719
        %v762 = vrcp.pop %v722
        %v763 = vrcp.pop %v725
        %v764 = vrcp.pop %v728
        %v765 = vrcp.pop %v731
        %v766 = vrcp.pop %v734
        %v767 = vrcp.pop %v737
        %v768 = vrcp.pop %v740
        %v769 = vrcp.pop %v743
        %v770 = vrcp.pop %v746
        %v771 = vrcp.pop %v749
        %v772 = vrcp.pop %v752
        %v773 = vrcp.pop %v755
        %v774 = vrcp.pop %v758
        %v775 = vpack.c.bf16 %v682, %v680
        %v776 = vpack.c.bf16 %v686, %v684
        %v777 = vpack.c.bf16 %v690, %v688
        %v778 = vpack.c.bf16 %v694, %v692
        %v779 = vpack.c.bf16 %v698, %v696
        %v780 = vpack.c.bf16 %v702, %v700
        %v781 = vpack.c.bf16 %v706, %v704
        %v782 = vpack.c.bf16 %v710, %v708
        %783 = vrot.lane.b32.xlu0 %v416, 64
        %v784 = vpop.permute.xlu0 %783
        %785 = vrot.lane.b32.xlu0 %v417, 64
        %v786 = vpop.permute.xlu0 %785
        %v790 = vsel %vm216, %v775, 0
        %v793 = vsel %vm216, %v776, 0
        %v796 = vsel %vm216, %v777, 0
        %v799 = vsel %vm216, %v778, 0
        %v802 = vsel %vm216, %v779, 0
        %v805 = vsel %vm216, %v780, 0
        %v808 = vsel %vm216, %v781, 0
        %v811 = vsel %vm216, %v782, 0
        %813 = vmatprep.subr.bf16.mxu0 0
        %814 = vmatpush1.bf16.msra.mxu0 0
        %815 = vmatprep.subr.bf16.mxu0 0
        %816 = vmatpush1.bf16.msra.mxu0 0
        %817 = vmatprep.subr.bf16.mxu0 0
        %818 = vmatpush1.bf16.msra.mxu0 0
        %819 = vmatprep.subr.bf16.mxu0 0
        %820 = vmatpush1.bf16.msra.mxu0 0
        %821 = vmatprep.subr.bf16.mxu0 0
        %822 = vmatpush1.bf16.msra.mxu0 0
        %823 = vmatprep.subr.bf16.mxu0 0
        %824 = vmatpush1.bf16.msra.mxu0 0
        %825 = vmatprep.subr.bf16.mxu0 0
        %826 = vmatpush1.bf16.msra.mxu0 %v786
        %827 = vmatprep.subr.bf16.mxu0 0
        %828 = vmatpush1.bf16.msra.mxu0 %v784
        %829 = vmatprep.subr.bf16.mxu0 0
        %830 = vmatpush2.bf16.msra.mxu0 0
        %831 = vmatprep.subr.bf16.mxu0 0
        %832 = vmatpush2.bf16.msra.mxu0 0
        %833 = vmatprep.subr.bf16.mxu0 0
        %834 = vmatpush2.bf16.msra.mxu0 0
        %835 = vmatprep.subr.bf16.mxu0 0
        %836 = vmatpush2.bf16.msra.mxu0 0
        %837 = vmatprep.subr.bf16.mxu0 0
        %838 = vmatpush2.bf16.msra.mxu0 0
        %839 = vmatprep.subr.bf16.mxu0 0
        %840 = vmatpush2.bf16.msra.mxu0 0
        %841 = vmatprep.subr.bf16.mxu0 0
        %842 = vmatpush2.bf16.msra.mxu0 0
        %843 = vmatprep.subr.bf16.mxu0 0
        %844 = vmatpush2.bf16.msra.mxu0 0
        %845 = vmatprep.mubr.bf16.mxu0 0
        %846 = vmatmul.mubr.bf16.gmra.mxu0 %v790
        %v847 = vpop.f32.mrf.mxu0
        %v848 = vadd.f32 0.0, %v847
        %v849 = vpop.f32.mrf.mxu0
        %v850 = vpop.f32.mrf.mxu0
        %v851 = vadd.f32 0.0, %v850
        %v852 = vpop.f32.mrf.mxu0
        %853 = vmatprep.mubr.bf16.mxu0 0
        %854 = vmatmul.mubr.bf16.gmra.mxu0 %v793
        %v855 = vpop.f32.mrf.mxu0
        %v856 = vadd.f32 0.0, %v855
        %v857 = vpop.f32.mrf.mxu0
        %v858 = vpop.f32.mrf.mxu0
        %v859 = vadd.f32 0.0, %v858
        %v860 = vpop.f32.mrf.mxu0
        %861 = vmatprep.mubr.bf16.mxu0 0
        %862 = vmatmul.mubr.bf16.gmra.mxu0 %v796
        %v863 = vpop.f32.mrf.mxu0
        %v864 = vadd.f32 0.0, %v863
        %v865 = vpop.f32.mrf.mxu0
        %v866 = vpop.f32.mrf.mxu0
        %v867 = vadd.f32 0.0, %v866
        %v868 = vpop.f32.mrf.mxu0
        %869 = vmatprep.mubr.bf16.mxu0 0
        %870 = vmatmul.mubr.bf16.gmra.mxu0 %v799
        %v871 = vpop.f32.mrf.mxu0
        %v872 = vadd.f32 0.0, %v871
        %v873 = vpop.f32.mrf.mxu0
        %v874 = vpop.f32.mrf.mxu0
        %v875 = vadd.f32 0.0, %v874
        %v876 = vpop.f32.mrf.mxu0
        %877 = vmatprep.mubr.bf16.mxu0 0
        %878 = vmatmul.mubr.bf16.gmra.mxu0 %v802
        %v879 = vpop.f32.mrf.mxu0
        %v880 = vadd.f32 0.0, %v879
        %v881 = vpop.f32.mrf.mxu0
        %v882 = vpop.f32.mrf.mxu0
        %v883 = vadd.f32 0.0, %v882
        %v884 = vpop.f32.mrf.mxu0
        %885 = vmatprep.mubr.bf16.mxu0 0
        %886 = vmatmul.mubr.bf16.gmra.mxu0 %v805
        %v887 = vpop.f32.mrf.mxu0
        %v888 = vadd.f32 0.0, %v887
        %v889 = vpop.f32.mrf.mxu0
        %v890 = vpop.f32.mrf.mxu0
        %v891 = vadd.f32 0.0, %v890
        %v892 = vpop.f32.mrf.mxu0
        %893 = vmatprep.mubr.bf16.mxu0 0
        %894 = vmatmul.mubr.bf16.gmra.mxu0 %v808
        %v895 = vpop.f32.mrf.mxu0
        %v896 = vadd.f32 0.0, %v895
        %v897 = vpop.f32.mrf.mxu0
        %v898 = vpop.f32.mrf.mxu0
        %v899 = vadd.f32 0.0, %v898
        %v900 = vpop.f32.mrf.mxu0
        %901 = vmatprep.mubr.bf16.mxu0 0
        %902 = vmatmul.mubr.bf16.gmra.mxu0 %v811
        %v903 = vpop.f32.mrf.mxu0
        %v904 = vadd.f32 0.0, %v903
        %v905 = vpop.f32.mrf.mxu0
        %v906 = vpop.f32.mrf.mxu0
        %v907 = vadd.f32 0.0, %v906
        %v908 = vpop.f32.mrf.mxu0
        %909 = vdwg.mxu0
        %v910 = vmul.f32 %v185, %v759
        %v911 = vmul.f32 %v186, %v760
        %v912 = vmul.f32 %v187, %v761
        %v913 = vmul.f32 %v188, %v762
        %v914 = vmul.f32 %v189, %v763
        %v915 = vmul.f32 %v190, %v764
        %v916 = vmul.f32 %v191, %v765
        %v917 = vmul.f32 %v192, %v766
        %v918 = vmul.f32 %v193, %v767
        %v919 = vmul.f32 %v194, %v768
        %v920 = vmul.f32 %v195, %v769
        %v921 = vmul.f32 %v196, %v770
        %v922 = vmul.f32 %v197, %v771
        %v923 = vmul.f32 %v198, %v772
        %v924 = vmul.f32 %v199, %v773
        %v925 = vmul.f32 %v200, %v774
        %v926 = vmul.f32 %v848, %v910
        %v927 = vmul.f32 %v851, %v911
        %v928 = vmul.f32 %v856, %v912
        %v929 = vmul.f32 %v859, %v913
        %v930 = vmul.f32 %v864, %v914
        %v931 = vmul.f32 %v867, %v915
        %v932 = vmul.f32 %v872, %v916
        %v933 = vmul.f32 %v875, %v917
        %v934 = vmul.f32 %v880, %v918
        %v935 = vmul.f32 %v883, %v919
        %v936 = vmul.f32 %v888, %v920
        %v937 = vmul.f32 %v891, %v921
        %v938 = vmul.f32 %v896, %v922
        %v939 = vmul.f32 %v899, %v923
        %v940 = vmul.f32 %v904, %v924
        %v941 = vmul.f32 %v907, %v925
        %v942 = vadd.f32 %v926, %v930
        %v943 = vadd.f32 %v927, %v931
        %v944 = vadd.f32 %v928, %v932
        %v945 = vadd.f32 %v929, %v933
        %v946 = vadd.f32 %v942, %v934
        %v947 = vadd.f32 %v943, %v935
        %v948 = vadd.f32 %v944, %v936
        %v949 = vadd.f32 %v945, %v937
        %v950 = vadd.f32 %v946, %v938
        %v951 = vadd.f32 %v947, %v939
        %v952 = vadd.f32 %v948, %v940
        %v953 = vadd.f32 %v949, %v941
        %v954 = vpack.c.bf16 %v951, %v950
        %v955 = vpack.c.bf16 %v953, %v952
        %v956 = vld [vmem:[%s1 + $0x10] sm:$0xf]
        %v957 = vld [vmem:[%s1 + $0x14] sm:$0xf]
        %v958 = vld [vmem:[%s1 + $0x18] sm:$0xf]
        %v959 = vld [vmem:[%s1 + $0x1c] sm:$0xf]
        %v960 = vlaneseq
        %v961 = vshrl.u32 %v960, 7
        %v962 = vsub.s32 1, %v961
        %v963 = vrot.slane %v314, %v962
        %v968 = vunpack.c.l.b16 %v956
        %v969 = vunpack.c.l.b16 %v957
        %v970 = vunpack.c.l.b16 %v958
        %v971 = vunpack.c.l.b16 %v959
        %v972 = vpack.c.b16 %v969, %v968
        %v973 = vpack.c.b16 %v971, %v970
        %v977 = vsel %vm216, %v954, 0
        %v980 = vsel %vm216, %v955, 0
        %982 = vmatprep.subr.bf16.mxu0 0
        %983 = vmatpush1.bf16.msra.mxu0 0
        %984 = vmatprep.subr.bf16.mxu0 0
        %985 = vmatpush1.bf16.msra.mxu0 0
        %986 = vmatprep.subr.bf16.mxu0 0
        %987 = vmatpush1.bf16.msra.mxu0 0
        %988 = vmatprep.subr.bf16.mxu0 0
        %989 = vmatpush1.bf16.msra.mxu0 0
        %990 = vmatprep.subr.bf16.mxu0 0
        %991 = vmatpush1.bf16.msra.mxu0 0
        %992 = vmatprep.subr.bf16.mxu0 0
        %993 = vmatpush1.bf16.msra.mxu0 0
        %994 = vmatprep.subr.bf16.mxu0 0
        %995 = vmatpush1.bf16.msra.mxu0 %v973
        %996 = vmatprep.subr.bf16.mxu0 0
        %997 = vmatpush1.bf16.msra.mxu0 %v972
        %998 = vmatprep.subr.bf16.mxu0 0
        %999 = vmatpush2.bf16.msra.mxu0 0
        %1000 = vmatprep.subr.bf16.mxu0 0
        %1001 = vmatpush2.bf16.msra.mxu0 0
        %1002 = vmatprep.subr.bf16.mxu0 0
        %1003 = vmatpush2.bf16.msra.mxu0 0
        %1004 = vmatprep.subr.bf16.mxu0 0
        %1005 = vmatpush2.bf16.msra.mxu0 0
        %1006 = vmatprep.subr.bf16.mxu0 0
        %1007 = vmatpush2.bf16.msra.mxu0 0
        %1008 = vmatprep.subr.bf16.mxu0 0
        %1009 = vmatpush2.bf16.msra.mxu0 0
        %1010 = vmatprep.subr.bf16.mxu0 0
        %1011 = vmatpush2.bf16.msra.mxu0 0
        %1012 = vmatprep.subr.bf16.mxu0 0
        %1013 = vmatpush2.bf16.msra.mxu0 0
        %1014 = vmatprep.mubr.bf16.mxu0 0
        %1015 = vmatmul.mubr.bf16.gmra.mxu0 %v977
        %v1016 = vpop.f32.mrf.mxu0
        %v1017 = vadd.f32 %v963, %v1016
        %v1018 = vpop.f32.mrf.mxu0
        %v1019 = vpop.f32.mrf.mxu0
        %v1020 = vadd.f32 %v963, %v1019
        %v1021 = vpop.f32.mrf.mxu0
        %1022 = vmatprep.mubr.bf16.mxu0 0
        %1023 = vmatmul.mubr.bf16.gmra.mxu0 %v980
        %v1024 = vpop.f32.mrf.mxu0
        %v1025 = vadd.f32 %v963, %v1024
        %v1026 = vpop.f32.mrf.mxu0
        %v1027 = vpop.f32.mrf.mxu0
        %v1028 = vadd.f32 %v963, %v1027
        %v1029 = vpop.f32.mrf.mxu0
        %1030 = vdwg.mxu0
        %v1031 = vadd.f32 %v296, %v1017
        %v1032 = vadd.f32 %v301, %v1020
        %v1033 = vadd.f32 %v306, %v1025
        %v1034 = vadd.f32 %v311, %v1028
        %v1035 = vsel %vm216, %v1031, 0.0
        %1036 = vadd.xlane.f32.xlu0 %v1035
        %v1037 = vpop.xlane.xlu0 %1036
        %v1038 = vsel %vm216, %v1032, 0.0
        %1039 = vadd.xlane.f32.xlu0 %v1038
        %v1040 = vpop.xlane.xlu0 %1039
        %v1041 = vsel %vm216, %v1033, 0.0
        %1042 = vadd.xlane.f32.xlu0 %v1041
        %v1043 = vpop.xlane.xlu0 %1042
        %v1044 = vsel %vm216, %v1034, 0.0
        %1045 = vadd.xlane.f32.xlu0 %v1044
        %v1046 = vpop.xlane.xlu0 %1045
        %v1047 = vrcp.pop 32.0
        %v1048 = vmul.f32 %v1037, %v1047
        %v1049 = vmul.f32 %v1040, %v1047
        %v1050 = vmul.f32 %v1043, %v1047
        %v1051 = vmul.f32 %v1046, %v1047
        %v1052 = vsub.f32 %v1031, %v1048
        %v1053 = vsub.f32 %v1032, %v1049
        %v1054 = vsub.f32 %v1033, %v1050
        %v1055 = vsub.f32 %v1034, %v1051
        %v1056 = vmul.f32 %v1052, %v1052
        %v1057 = vmul.f32 %v1053, %v1053
        %v1058 = vmul.f32 %v1054, %v1054
        %v1059 = vmul.f32 %v1055, %v1055
        %v1060 = vsel %vm216, %v1056, 0.0
        %1061 = vadd.xlane.f32.xlu0 %v1060
        %v1062 = vpop.xlane.xlu0 %1061
        %v1063 = vsel %vm216, %v1057, 0.0
        %1064 = vadd.xlane.f32.xlu0 %v1063
        %v1065 = vpop.xlane.xlu0 %1064
        %v1066 = vsel %vm216, %v1058, 0.0
        %1067 = vadd.xlane.f32.xlu0 %v1066
        %v1068 = vpop.xlane.xlu0 %1067
        %v1069 = vsel %vm216, %v1059, 0.0
        %1070 = vadd.xlane.f32.xlu0 %v1069
        %v1071 = vpop.xlane.xlu0 %1070
        %v1072 = vmul.f32 %v1062, %v1047
        %v1073 = vmul.f32 %v1065, %v1047
        %v1074 = vmul.f32 %v1068, %v1047
        %v1075 = vmul.f32 %v1071, %v1047
        %v1076 = vadd.f32 %v1072, 1e-05
        %v1077 = vadd.f32 %v1073, 1e-05
        %v1078 = vadd.f32 %v1074, 1e-05
        %v1079 = vadd.f32 %v1075, 1e-05
        %v1080 = vrsqrt.pop %v1076
        %v1081 = vrsqrt.pop %v1077
        %v1082 = vrsqrt.pop %v1078
        %v1083 = vrsqrt.pop %v1079
        %v1084 = vmul.f32 %v1052, %v1080
        %v1085 = vmul.f32 %v1053, %v1081
        %v1086 = vmul.f32 %v1054, %v1082
        %v1087 = vmul.f32 %v1055, %v1083
        %v1088 = vlaneseq
        %v1089 = vshrl.u32 %v1088, 7
        %v1090 = vsub.s32 2, %v1089
        %v1091 = vrot.slane %v314, %v1090
        %v1092 = vmul.f32 %v1084, %v1091
        %v1093 = vmul.f32 %v1085, %v1091
        %v1094 = vmul.f32 %v1086, %v1091
        %v1095 = vmul.f32 %v1087, %v1091
        %v1096 = vlaneseq
        %v1097 = vshrl.u32 %v1096, 7
        %v1098 = vsub.s32 3, %v1097
        %v1099 = vrot.slane %v314, %v1098
        %v1100 = vadd.f32 %v1092, %v1099
        %v1101 = vadd.f32 %v1093, %v1099
        %v1102 = vadd.f32 %v1094, %v1099
        %v1103 = vadd.f32 %v1095, %v1099
        %v1104 = vpack.c.bf16 %v1101, %v1100
        %v1105 = vpack.c.bf16 %v1103, %v1102
        %v1106 = vld [vmem:[%s1 + $0x20] sm:$0xf]
        %v1107 = vld [vmem:[%s1 + $0x24] sm:$0xf]
        %v1108 = vld [vmem:[%s1 + $0x28] sm:$0xf]
        %v1109 = vld [vmem:[%s1 + $0x2c] sm:$0xf]
        %v1110 = vlaneseq
        %v1111 = vshrl.u32 %v1110, 7
        %v1112 = vsub.s32 4, %v1111
        %v1113 = vrot.slane %v314, %v1112
        %v1118 = vunpack.c.l.b16 %v1106
        %v1119 = vunpack.c.l.b16 %v1107
        %v1120 = vunpack.c.l.b16 %v1108
        %v1121 = vunpack.c.l.b16 %v1109
        %v1122 = vpack.c.b16 %v1119, %v1118
        %v1123 = vpack.c.b16 %v1121, %v1120
        %v1127 = vsel %vm216, %v1104, 0
        %v1130 = vsel %vm216, %v1105, 0
        %1132 = vmatprep.subr.bf16.mxu0 0
        %1133 = vmatpush1.bf16.msra.mxu0 0
        %1134 = vmatprep.subr.bf16.mxu0 0
        %1135 = vmatpush1.bf16.msra.mxu0 0
        %1136 = vmatprep.subr.bf16.mxu0 0
        %1137 = vmatpush1.bf16.msra.mxu0 0
        %1138 = vmatprep.subr.bf16.mxu0 0
        %1139 = vmatpush1.bf16.msra.mxu0 0
        %1140 = vmatprep.subr.bf16.mxu0 0
        %1141 = vmatpush1.bf16.msra.mxu0 0
        %1142 = vmatprep.subr.bf16.mxu0 0
        %1143 = vmatpush1.bf16.msra.mxu0 0
        %1144 = vmatprep.subr.bf16.mxu0 0
        %1145 = vmatpush1.bf16.msra.mxu0 %v1123
        %1146 = vmatprep.subr.bf16.mxu0 0
        %1147 = vmatpush1.bf16.msra.mxu0 %v1122
        %1148 = vmatprep.subr.bf16.mxu0 0
        %1149 = vmatpush2.bf16.msra.mxu0 0
        %1150 = vmatprep.subr.bf16.mxu0 0
        %1151 = vmatpush2.bf16.msra.mxu0 0
        %1152 = vmatprep.subr.bf16.mxu0 0
        %1153 = vmatpush2.bf16.msra.mxu0 0
        %1154 = vmatprep.subr.bf16.mxu0 0
        %1155 = vmatpush2.bf16.msra.mxu0 0
        %1156 = vmatprep.subr.bf16.mxu0 0
        %1157 = vmatpush2.bf16.msra.mxu0 0
        %1158 = vmatprep.subr.bf16.mxu0 0
        %1159 = vmatpush2.bf16.msra.mxu0 0
        %1160 = vmatprep.subr.bf16.mxu0 0
        %1161 = vmatpush2.bf16.msra.mxu0 0
        %1162 = vmatprep.subr.bf16.mxu0 0
        %1163 = vmatpush2.bf16.msra.mxu0 0
        %1164 = vmatprep.mubr.bf16.mxu0 0
        %1165 = vmatmul.mubr.bf16.gmra.mxu0 %v1127
        %v1166 = vpop.f32.mrf.mxu0
        %v1167 = vadd.f32 %v1113, %v1166
        %v1168 = vpop.f32.mrf.mxu0
        %v1169 = vpop.f32.mrf.mxu0
        %v1170 = vadd.f32 %v1113, %v1169
        %v1171 = vpop.f32.mrf.mxu0
        %1172 = vmatprep.mubr.bf16.mxu0 0
        %1173 = vmatmul.mubr.bf16.gmra.mxu0 %v1130
        %v1174 = vpop.f32.mrf.mxu0
        %v1175 = vadd.f32 %v1113, %v1174
        %v1176 = vpop.f32.mrf.mxu0
        %v1177 = vpop.f32.mrf.mxu0
        %v1178 = vadd.f32 %v1113, %v1177
        %v1179 = vpop.f32.mrf.mxu0
        %1180 = vdwg.mxu0
        %v1181 = vmax.f32 %v1167, 0.0
        %v1182 = vmax.f32 %v1170, 0.0
        %v1183 = vmax.f32 %v1175, 0.0
        %v1184 = vmax.f32 %v1178, 0.0
        %v1185 = vpack.c.bf16 %v1182, %v1181
        %v1186 = vpack.c.bf16 %v1184, %v1183
        %v1187 = vld [vmem:[%s1 + $0x30] sm:$0xf]
        %v1188 = vld [vmem:[%s1 + $0x34] sm:$0xf]
        %v1189 = vld [vmem:[%s1 + $0x38] sm:$0xf]
        %v1190 = vld [vmem:[%s1 + $0x3c] sm:$0xf]
        %v1191 = vld [vmem:[%s1 + $0x40] sm:$0xf]
        %v1192 = vld [vmem:[%s1 + $0x44] sm:$0xf]
        %v1193 = vld [vmem:[%s1 + $0x48] sm:$0xf]
        %v1194 = vld [vmem:[%s1 + $0x4c] sm:$0xf]
        %v1195 = vlaneseq
        %v1196 = vshrl.u32 %v1195, 7
        %v1197 = vsub.s32 5, %v1196
        %v1198 = vrot.slane %v314, %v1197
        %v1207 = vunpack.c.l.b16 %v1187
        %v1208 = vunpack.c.l.b16 %v1188
        %v1209 = vunpack.c.l.b16 %v1189
        %v1210 = vunpack.c.l.b16 %v1190
        %v1211 = vunpack.c.l.b16 %v1191
        %v1212 = vunpack.c.l.b16 %v1192
        %v1213 = vunpack.c.l.b16 %v1193
        %v1214 = vunpack.c.l.b16 %v1194
        %v1215 = vpack.c.b16 %v1208, %v1207
        %v1216 = vpack.c.b16 %v1210, %v1209
        %v1217 = vpack.c.b16 %v1212, %v1211
        %v1218 = vpack.c.b16 %v1214, %v1213
        %vm1223 = vcmask 523264
        %v1225 = vsel %vm1223, %v1185, 0
        %v1228 = vsel %vm1223, %v1186, 0
        %1230 = vmatprep.subr.bf16.mxu0 0
        %1231 = vmatpush1.bf16.msra.mxu0 0
        %1232 = vmatprep.subr.bf16.mxu0 0
        %1233 = vmatpush1.bf16.msra.mxu0 0
        %1234 = vmatprep.subr.bf16.mxu0 0
        %1235 = vmatpush1.bf16.msra.mxu0 0
        %1236 = vmatprep.subr.bf16.mxu0 0
        %1237 = vmatpush1.bf16.msra.mxu0 0
        %1238 = vmatprep.subr.bf16.mxu0 0
        %1239 = vmatpush1.bf16.msra.mxu0 %v1218
        %1240 = vmatprep.subr.bf16.mxu0 0
        %1241 = vmatpush1.bf16.msra.mxu0 %v1217
        %1242 = vmatprep.subr.bf16.mxu0 0
        %1243 = vmatpush1.bf16.msra.mxu0 %v1216
        %1244 = vmatprep.subr.bf16.mxu0 0
        %1245 = vmatpush1.bf16.msra.mxu0 %v1215
        %1246 = vmatprep.subr.bf16.mxu0 0
        %1247 = vmatpush2.bf16.msra.mxu0 0
        %1248 = vmatprep.subr.bf16.mxu0 0
        %1249 = vmatpush2.bf16.msra.mxu0 0
        %1250 = vmatprep.subr.bf16.mxu0 0
        %1251 = vmatpush2.bf16.msra.mxu0 0
        %1252 = vmatprep.subr.bf16.mxu0 0
        %1253 = vmatpush2.bf16.msra.mxu0 0
        %1254 = vmatprep.subr.bf16.mxu0 0
        %1255 = vmatpush2.bf16.msra.mxu0 0
        %1256 = vmatprep.subr.bf16.mxu0 0
        %1257 = vmatpush2.bf16.msra.mxu0 0
        %1258 = vmatprep.subr.bf16.mxu0 0
        %1259 = vmatpush2.bf16.msra.mxu0 0
        %1260 = vmatprep.subr.bf16.mxu0 0
        %1261 = vmatpush2.bf16.msra.mxu0 0
        %1262 = vmatprep.mubr.bf16.mxu0 0
        %1263 = vmatmul.mubr.bf16.gmra.mxu0 %v1225
        %v1264 = vpop.f32.mrf.mxu0
        %v1265 = vadd.f32 %v1198, %v1264
        %v1266 = vpop.f32.mrf.mxu0
        %v1267 = vpop.f32.mrf.mxu0
        %v1268 = vadd.f32 %v1198, %v1267
        %v1269 = vpop.f32.mrf.mxu0
        %1270 = vmatprep.mubr.bf16.mxu0 0
        %1271 = vmatmul.mubr.bf16.gmra.mxu0 %v1228
        %v1272 = vpop.f32.mrf.mxu0
        %v1273 = vadd.f32 %v1198, %v1272
        %v1274 = vpop.f32.mrf.mxu0
        %v1275 = vpop.f32.mrf.mxu0
        %v1276 = vadd.f32 %v1198, %v1275
        %v1277 = vpop.f32.mrf.mxu0
        %1278 = vdwg.mxu0
        %v1279 = vadd.f32 %v1100, %v1265
        %v1280 = vadd.f32 %v1101, %v1268
        %v1281 = vadd.f32 %v1102, %v1273
        %v1282 = vadd.f32 %v1103, %v1276
        %v1283 = vsel %vm216, %v1279, 0.0
        %1284 = vadd.xlane.f32.xlu0 %v1283
        %v1285 = vpop.xlane.xlu0 %1284
        %v1286 = vsel %vm216, %v1280, 0.0
        %1287 = vadd.xlane.f32.xlu0 %v1286
        %v1288 = vpop.xlane.xlu0 %1287
        %v1289 = vsel %vm216, %v1281, 0.0
        %1290 = vadd.xlane.f32.xlu0 %v1289
        %v1291 = vpop.xlane.xlu0 %1290
        %v1292 = vsel %vm216, %v1282, 0.0
        %1293 = vadd.xlane.f32.xlu0 %v1292
        %v1294 = vpop.xlane.xlu0 %1293
        %v1295 = vmul.f32 %v1285, %v1047
        %v1296 = vmul.f32 %v1288, %v1047
        %v1297 = vmul.f32 %v1291, %v1047
        %v1298 = vmul.f32 %v1294, %v1047
        %v1299 = vsub.f32 %v1279, %v1295
        %v1300 = vsub.f32 %v1280, %v1296
        %v1301 = vsub.f32 %v1281, %v1297
        %v1302 = vsub.f32 %v1282, %v1298
        %v1303 = vmul.f32 %v1299, %v1299
        %v1304 = vmul.f32 %v1300, %v1300
        %v1305 = vmul.f32 %v1301, %v1301
        %v1306 = vmul.f32 %v1302, %v1302
        %v1307 = vsel %vm216, %v1303, 0.0
        %1308 = vadd.xlane.f32.xlu0 %v1307
        %v1309 = vpop.xlane.xlu0 %1308
        %v1310 = vsel %vm216, %v1304, 0.0
        %1311 = vadd.xlane.f32.xlu0 %v1310
        %v1312 = vpop.xlane.xlu0 %1311
        %v1313 = vsel %vm216, %v1305, 0.0
        %1314 = vadd.xlane.f32.xlu0 %v1313
        %v1315 = vpop.xlane.xlu0 %1314
        %v1316 = vsel %vm216, %v1306, 0.0
        %1317 = vadd.xlane.f32.xlu0 %v1316
        %v1318 = vpop.xlane.xlu0 %1317
        %v1319 = vmul.f32 %v1309, %v1047
        %v1320 = vmul.f32 %v1312, %v1047
        %v1321 = vmul.f32 %v1315, %v1047
        %v1322 = vmul.f32 %v1318, %v1047
        %v1323 = vadd.f32 %v1319, 1e-05
        %v1324 = vadd.f32 %v1320, 1e-05
        %v1325 = vadd.f32 %v1321, 1e-05
        %v1326 = vadd.f32 %v1322, 1e-05
        %v1327 = vrsqrt.pop %v1323
        %v1328 = vrsqrt.pop %v1324
        %v1329 = vrsqrt.pop %v1325
        %v1330 = vrsqrt.pop %v1326
        %v1331 = vmul.f32 %v1299, %v1327
        %v1332 = vmul.f32 %v1300, %v1328
        %v1333 = vmul.f32 %v1301, %v1329
        %v1334 = vmul.f32 %v1302, %v1330
        %v1335 = vlaneseq
        %v1336 = vshrl.u32 %v1335, 7
        %v1337 = vsub.s32 6, %v1336
        %v1338 = vrot.slane %v314, %v1337
        %v1339 = vmul.f32 %v1331, %v1338
        %v1340 = vmul.f32 %v1332, %v1338
        %v1341 = vmul.f32 %v1333, %v1338
        %v1342 = vmul.f32 %v1334, %v1338
        %v1343 = vlaneseq
        %v1344 = vshrl.u32 %v1343, 7
        %v1345 = vsub.s32 7, %v1344
        %v1346 = vrot.slane %v314, %v1345
        %v1347 = vadd.f32 %v1339, %v1346
        %v1348 = vadd.f32 %v1340, %v1346
        %v1349 = vadd.f32 %v1341, %v1346
        %v1350 = vadd.f32 %v1342, %v1346
        %v1351 = vld [vmem:[#allocation3 + $0x8] sm:$0xff]
        %v1352 = vpack.c.bf16 %v1348, %v1347
        %v1353 = vpack.c.bf16 %v1350, %v1349
        %s1354 = scalar_lea.vmem %s1, 80
        %v1355 = vld [vmem:[%s1354] sm:$0xf]
        %v1356 = vld [vmem:[%s1354 + $0x4] sm:$0xf]
        %v1357 = vld [vmem:[%s1354 + $0x8] sm:$0xf]
        %v1358 = vld [vmem:[%s1354 + $0xc] sm:$0xf]
        %v1359 = vlaneseq
        %v1360 = vshrl.u32 %v1359, 7
        %v1361 = vsub.s32 0, %v1360
        %v1362 = vrot.slane %v1351, %v1361
        %v1367 = vunpack.c.l.b16 %v1355
        %v1368 = vunpack.c.l.b16 %v1356
        %v1369 = vunpack.c.l.b16 %v1357
        %v1370 = vunpack.c.l.b16 %v1358
        %v1371 = vpack.c.b16 %v1368, %v1367
        %v1372 = vpack.c.b16 %v1370, %v1369
        %v1376 = vsel %vm216, %v1352, 0
        %v1379 = vsel %vm216, %v1353, 0
        %1381 = vmatprep.subr.bf16.mxu0 0
        %1382 = vmatpush1.bf16.msra.mxu0 0
        %1383 = vmatprep.subr.bf16.mxu0 0
        %1384 = vmatpush1.bf16.msra.mxu0 0
        %1385 = vmatprep.subr.bf16.mxu0 0
        %1386 = vmatpush1.bf16.msra.mxu0 0
        %1387 = vmatprep.subr.bf16.mxu0 0
        %1388 = vmatpush1.bf16.msra.mxu0 0
        %1389 = vmatprep.subr.bf16.mxu0 0
        %1390 = vmatpush1.bf16.msra.mxu0 0
        %1391 = vmatprep.subr.bf16.mxu0 0
        %1392 = vmatpush1.bf16.msra.mxu0 0
        %1393 = vmatprep.subr.bf16.mxu0 0
        %1394 = vmatpush1.bf16.msra.mxu0 %v1372
        %1395 = vmatprep.subr.bf16.mxu0 0
        %1396 = vmatpush1.bf16.msra.mxu0 %v1371
        %1397 = vmatprep.subr.bf16.mxu0 0
        %1398 = vmatpush2.bf16.msra.mxu0 0
        %1399 = vmatprep.subr.bf16.mxu0 0
        %1400 = vmatpush2.bf16.msra.mxu0 0
        %1401 = vmatprep.subr.bf16.mxu0 0
        %1402 = vmatpush2.bf16.msra.mxu0 0
        %1403 = vmatprep.subr.bf16.mxu0 0
        %1404 = vmatpush2.bf16.msra.mxu0 0
        %1405 = vmatprep.subr.bf16.mxu0 0
        %1406 = vmatpush2.bf16.msra.mxu0 0
        %1407 = vmatprep.subr.bf16.mxu0 0
        %1408 = vmatpush2.bf16.msra.mxu0 0
        %1409 = vmatprep.subr.bf16.mxu0 0
        %1410 = vmatpush2.bf16.msra.mxu0 0
        %1411 = vmatprep.subr.bf16.mxu0 0
        %1412 = vmatpush2.bf16.msra.mxu0 0
        %1413 = vmatprep.mubr.bf16.mxu0 0
        %1414 = vmatmul.mubr.bf16.gmra.mxu0 %v1376
        %v1415 = vpop.f32.mrf.mxu0
        %v1416 = vadd.f32 %v1362, %v1415
        %v1417 = vpop.f32.mrf.mxu0
        %v1418 = vpop.f32.mrf.mxu0
        %v1419 = vadd.f32 %v1362, %v1418
        %v1420 = vpop.f32.mrf.mxu0
        %1421 = vmatprep.mubr.bf16.mxu0 0
        %1422 = vmatmul.mubr.bf16.gmra.mxu0 %v1379
        %v1423 = vpop.f32.mrf.mxu0
        %v1424 = vadd.f32 %v1362, %v1423
        %v1425 = vpop.f32.mrf.mxu0
        %v1426 = vpop.f32.mrf.mxu0
        %v1427 = vadd.f32 %v1362, %v1426
        %v1428 = vpop.f32.mrf.mxu0
        %1429 = vdwg.mxu0
        %v1430 = vmul.f32 %v1416, %v185
        %v1431 = vmul.f32 %v1419, %v186
        %v1432 = vmul.f32 %v1424, %v187
        %v1433 = vmul.f32 %v1427, %v188
        %v1434 = vmul.f32 %v1416, %v189
        %v1435 = vmul.f32 %v1419, %v190
        %v1436 = vmul.f32 %v1424, %v191
        %v1437 = vmul.f32 %v1427, %v192
        %v1438 = vmul.f32 %v1416, %v193
        %v1439 = vmul.f32 %v1419, %v194
        %v1440 = vmul.f32 %v1424, %v195
        %v1441 = vmul.f32 %v1427, %v196
        %v1442 = vmul.f32 %v1416, %v197
        %v1443 = vmul.f32 %v1419, %v198
        %v1444 = vmul.f32 %v1424, %v199
        %v1445 = vmul.f32 %v1427, %v200
        %v1446 = vpack.c.bf16 %v1431, %v1430
        %v1447 = vpack.c.bf16 %v1433, %v1432
        %v1448 = vpack.c.bf16 %v1435, %v1434
        %v1449 = vpack.c.bf16 %v1437, %v1436
        %v1450 = vpack.c.bf16 %v1439, %v1438
        %v1451 = vpack.c.bf16 %v1441, %v1440
        %v1452 = vpack.c.bf16 %v1443, %v1442
        %v1453 = vpack.c.bf16 %v1445, %v1444
        %v1454 = vpack.c.bf16 %v1419, %v1416
        %v1455 = vpack.c.bf16 %v1427, %v1424
        %1458 = vrot.lane.b32.xlu0 %v1454, 96
        %v1459 = vpop.permute.xlu0 %1458
        %1460 = vrot.lane.b32.xlu0 %v1455, 96
        %v1461 = vpop.permute.xlu0 %1460
        %v1463 = vsel %vm216, %v1446, 0
        %v1466 = vsel %vm216, %v1447, 0
        %v1469 = vsel %vm216, %v1448, 0
        %v1472 = vsel %vm216, %v1449, 0
        %v1475 = vsel %vm216, %v1450, 0
        %v1478 = vsel %vm216, %v1451, 0
        %v1481 = vsel %vm216, %v1452, 0
        %v1484 = vsel %vm216, %v1453, 0
        %v1487 = vsel %vm216, %v1459, 0
        %v1490 = vsel %vm216, %v1461, 0
        %1492 = vmatprep.subr.bf16.mxu0 0
        %1493 = vmatpush1.bf16.xpose.msra.mxu0 0
        %1494 = vmatprep.subr.bf16.mxu0 0
        %1495 = vmatpush1.bf16.xpose.msra.mxu0 0
        %1496 = vmatprep.subr.bf16.mxu0 0
        %1497 = vmatpush1.bf16.xpose.msra.mxu0 0
        %1498 = vmatprep.subr.bf16.mxu0 0
        %1499 = vmatpush1.bf16.xpose.msra.mxu0 0
        %1500 = vmatprep.subr.bf16.mxu0 0
        %1501 = vmatpush1.bf16.xpose.msra.mxu0 0
        %1502 = vmatprep.subr.bf16.mxu0 0
        %1503 = vmatpush1.bf16.xpose.msra.mxu0 0
        %1504 = vmatprep.subr.bf16.mxu0 0
        %1505 = vmatpush1.bf16.xpose.msra.mxu0 %v1490
        %1506 = vmatprep.subr.bf16.mxu0 0
        %1507 = vmatpush1.bf16.xpose.msra.mxu0 %v1487
        %1508 = vmatprep.subr.bf16.mxu0 0
        %1509 = vmatpush2.bf16.xpose.msra.mxu0 0
        %1510 = vmatprep.subr.bf16.mxu0 0
        %1511 = vmatpush2.bf16.xpose.msra.mxu0 0
        %1512 = vmatprep.subr.bf16.mxu0 0
        %1513 = vmatpush2.bf16.xpose.msra.mxu0 0
        %1514 = vmatprep.subr.bf16.mxu0 0
        %1515 = vmatpush2.bf16.xpose.msra.mxu0 0
        %1516 = vmatprep.subr.bf16.mxu0 0
        %1517 = vmatpush2.bf16.xpose.msra.mxu0 0
        %1518 = vmatprep.subr.bf16.mxu0 0
        %1519 = vmatpush2.bf16.xpose.msra.mxu0 0
        %1520 = vmatprep.subr.bf16.mxu0 0
        %1521 = vmatpush2.bf16.xpose.msra.mxu0 0
        %1522 = vmatprep.subr.bf16.mxu0 0
        %1523 = vmatpush2.bf16.xpose.msra.mxu0 0
        %1524 = vmatprep.mubr.bf16.mxu0 0
        %1525 = vmatmul.mubr.bf16.gmra.mxu0 %v1463
        %v1526 = vpop.f32.mrf.mxu0
        %v1527 = vadd.f32 %v441, %v1526
        %v1528 = vpop.f32.mrf.mxu0
        %v1529 = vpop.f32.mrf.mxu0
        %v1530 = vadd.f32 %v443, %v1529
        %v1531 = vpop.f32.mrf.mxu0
        %1532 = vmatprep.mubr.bf16.mxu0 0
        %1533 = vmatmul.mubr.bf16.gmra.mxu0 %v1466
        %v1534 = vpop.f32.mrf.mxu0
        %v1535 = vadd.f32 %v445, %v1534
        %v1536 = vpop.f32.mrf.mxu0
        %v1537 = vpop.f32.mrf.mxu0
        %v1538 = vadd.f32 %v447, %v1537
        %v1539 = vpop.f32.mrf.mxu0
        %1540 = vmatprep.mubr.bf16.mxu0 0
        %1541 = vmatmul.mubr.bf16.gmra.mxu0 %v1469
        %v1542 = vpop.f32.mrf.mxu0
        %v1543 = vadd.f32 %v449, %v1542
        %v1544 = vpop.f32.mrf.mxu0
        %v1545 = vpop.f32.mrf.mxu0
        %v1546 = vadd.f32 %v451, %v1545
        %v1547 = vpop.f32.mrf.mxu0
        %1548 = vmatprep.mubr.bf16.mxu0 0
        %1549 = vmatmul.mubr.bf16.gmra.mxu0 %v1472
        %v1550 = vpop.f32.mrf.mxu0
        %v1551 = vadd.f32 %v453, %v1550
        %v1552 = vpop.f32.mrf.mxu0
        %v1553 = vpop.f32.mrf.mxu0
        %v1554 = vadd.f32 %v455, %v1553
        %v1555 = vpop.f32.mrf.mxu0
        %1556 = vmatprep.mubr.bf16.mxu0 0
        %1557 = vmatmul.mubr.bf16.gmra.mxu0 %v1475
        %v1558 = vpop.f32.mrf.mxu0
        %v1559 = vadd.f32 %v457, %v1558
        %v1560 = vpop.f32.mrf.mxu0
        %v1561 = vpop.f32.mrf.mxu0
        %v1562 = vadd.f32 %v459, %v1561
        %v1563 = vpop.f32.mrf.mxu0
        %1564 = vmatprep.mubr.bf16.mxu0 0
        %1565 = vmatmul.mubr.bf16.gmra.mxu0 %v1478
        %v1566 = vpop.f32.mrf.mxu0
        %v1567 = vadd.f32 %v461, %v1566
        %v1568 = vpop.f32.mrf.mxu0
        %v1569 = vpop.f32.mrf.mxu0
        %v1570 = vadd.f32 %v463, %v1569
        %v1571 = vpop.f32.mrf.mxu0
        %1572 = vmatprep.mubr.bf16.mxu0 0
        %1573 = vmatmul.mubr.bf16.gmra.mxu0 %v1481
        %v1574 = vpop.f32.mrf.mxu0
        %v1575 = vadd.f32 %v465, %v1574
        %v1576 = vpop.f32.mrf.mxu0
        %v1577 = vpop.f32.mrf.mxu0
        %v1578 = vadd.f32 %v467, %v1577
        %v1579 = vpop.f32.mrf.mxu0
        %1580 = vmatprep.mubr.bf16.mxu0 0
        %1581 = vmatmul.mubr.bf16.gmra.mxu0 %v1484
        %v1582 = vpop.f32.mrf.mxu0
        %v1583 = vadd.f32 %v469, %v1582
        %v1584 = vpop.f32.mrf.mxu0
        %v1585 = vpop.f32.mrf.mxu0
        %v1586 = vadd.f32 %v471, %v1585
        %v1587 = vpop.f32.mrf.mxu0
        %1588 = vdwg.mxu0
        %v1589 = vsel %vm216, %v1527, -inf
        %1590 = vmax.xlane.f32.xlu0 %v1589
        %v1591 = vpop.xlane.xlu0 %1590
        %v1592 = vsel %vm216, %v1530, -inf
        %1593 = vmax.xlane.f32.xlu0 %v1592
        %v1594 = vpop.xlane.xlu0 %1593
        %v1595 = vsel %vm216, %v1535, -inf
        %1596 = vmax.xlane.f32.xlu0 %v1595
        %v1597 = vpop.xlane.xlu0 %1596
        %v1598 = vsel %vm216, %v1538, -inf
        %1599 = vmax.xlane.f32.xlu0 %v1598
        %v1600 = vpop.xlane.xlu0 %1599
        %v1601 = vsel %vm216, %v1543, -inf
        %1602 = vmax.xlane.f32.xlu0 %v1601
        %v1603 = vpop.xlane.xlu0 %1602
        %v1604 = vsel %vm216, %v1546, -inf
        %1605 = vmax.xlane.f32.xlu0 %v1604
        %v1606 = vpop.xlane.xlu0 %1605
        %v1607 = vsel %vm216, %v1551, -inf
        %1608 = vmax.xlane.f32.xlu0 %v1607
        %v1609 = vpop.xlane.xlu0 %1608
        %v1610 = vsel %vm216, %v1554, -inf
        %1611 = vmax.xlane.f32.xlu0 %v1610
        %v1612 = vpop.xlane.xlu0 %1611
        %v1613 = vsel %vm216, %v1559, -inf
        %1614 = vmax.xlane.f32.xlu0 %v1613
        %v1615 = vpop.xlane.xlu0 %1614
        %v1616 = vsel %vm216, %v1562, -inf
        %1617 = vmax.xlane.f32.xlu0 %v1616
        %v1618 = vpop.xlane.xlu0 %1617
        %v1619 = vsel %vm216, %v1567, -inf
        %1620 = vmax.xlane.f32.xlu0 %v1619
        %v1621 = vpop.xlane.xlu0 %1620
        %v1622 = vsel %vm216, %v1570, -inf
        %1623 = vmax.xlane.f32.xlu0 %v1622
        %v1624 = vpop.xlane.xlu0 %1623
        %v1625 = vsel %vm216, %v1575, -inf
        %1626 = vmax.xlane.f32.xlu0 %v1625
        %v1627 = vpop.xlane.xlu0 %1626
        %v1628 = vsel %vm216, %v1578, -inf
        %1629 = vmax.xlane.f32.xlu0 %v1628
        %v1630 = vpop.xlane.xlu0 %1629
        %v1631 = vsel %vm216, %v1583, -inf
        %1632 = vmax.xlane.f32.xlu0 %v1631
        %v1633 = vpop.xlane.xlu0 %1632
        %v1634 = vsel %vm216, %v1586, -inf
        %1635 = vmax.xlane.f32.xlu0 %v1634
        %v1636 = vpop.xlane.xlu0 %1635
        %v1637 = vsub.f32 %v1527, %v1591
        %v1638 = vsub.f32 %v1530, %v1594
        %v1639 = vsub.f32 %v1535, %v1597
        %v1640 = vsub.f32 %v1538, %v1600
        %v1641 = vsub.f32 %v1543, %v1603
        %v1642 = vsub.f32 %v1546, %v1606
        %v1643 = vsub.f32 %v1551, %v1609
        %v1644 = vsub.f32 %v1554, %v1612
        %v1645 = vsub.f32 %v1559, %v1615
        %v1646 = vsub.f32 %v1562, %v1618
        %v1647 = vsub.f32 %v1567, %v1621
        %v1648 = vsub.f32 %v1570, %v1624
        %v1649 = vsub.f32 %v1575, %v1627
        %v1650 = vsub.f32 %v1578, %v1630
        %v1651 = vsub.f32 %v1583, %v1633
        %v1652 = vsub.f32 %v1586, %v1636
        %v1653 = vmul.f32 %v1637, 1.442695
        %v1654 = vpow.pop %v1653
        %v1655 = vmul.f32 %v1638, 1.442695
        %v1656 = vpow.pop %v1655
        %v1657 = vmul.f32 %v1639, 1.442695
        %v1658 = vpow.pop %v1657
        %v1659 = vmul.f32 %v1640, 1.442695
        %v1660 = vpow.pop %v1659
        %v1661 = vmul.f32 %v1641, 1.442695
        %v1662 = vpow.pop %v1661
        %v1663 = vmul.f32 %v1642, 1.442695
        %v1664 = vpow.pop %v1663
        %v1665 = vmul.f32 %v1643, 1.442695
        %v1666 = vpow.pop %v1665
        %v1667 = vmul.f32 %v1644, 1.442695
        %v1668 = vpow.pop %v1667
        %v1669 = vmul.f32 %v1645, 1.442695
        %v1670 = vpow.pop %v1669
        %v1671 = vmul.f32 %v1646, 1.442695
        %v1672 = vpow.pop %v1671
        %v1673 = vmul.f32 %v1647, 1.442695
        %v1674 = vpow.pop %v1673
        %v1675 = vmul.f32 %v1648, 1.442695
        %v1676 = vpow.pop %v1675
        %v1677 = vmul.f32 %v1649, 1.442695
        %v1678 = vpow.pop %v1677
        %v1679 = vmul.f32 %v1650, 1.442695
        %v1680 = vpow.pop %v1679
        %v1681 = vmul.f32 %v1651, 1.442695
        %v1682 = vpow.pop %v1681
        %v1683 = vmul.f32 %v1652, 1.442695
        %v1684 = vpow.pop %v1683
        %v1685 = vsel %vm216, %v1654, 0.0
        %1686 = vadd.xlane.f32.xlu0 %v1685
        %v1687 = vpop.xlane.xlu0 %1686
        %v1688 = vsel %vm216, %v1656, 0.0
        %1689 = vadd.xlane.f32.xlu0 %v1688
        %v1690 = vpop.xlane.xlu0 %1689
        %v1691 = vsel %vm216, %v1658, 0.0
        %1692 = vadd.xlane.f32.xlu0 %v1691
        %v1693 = vpop.xlane.xlu0 %1692
        %v1694 = vsel %vm216, %v1660, 0.0
        %1695 = vadd.xlane.f32.xlu0 %v1694
        %v1696 = vpop.xlane.xlu0 %1695
        %v1697 = vsel %vm216, %v1662, 0.0
        %1698 = vadd.xlane.f32.xlu0 %v1697
        %v1699 = vpop.xlane.xlu0 %1698
        %v1700 = vsel %vm216, %v1664, 0.0
        %1701 = vadd.xlane.f32.xlu0 %v1700
        %v1702 = vpop.xlane.xlu0 %1701
        %v1703 = vsel %vm216, %v1666, 0.0
        %1704 = vadd.xlane.f32.xlu0 %v1703
        %v1705 = vpop.xlane.xlu0 %1704
        %v1706 = vsel %vm216, %v1668, 0.0
        %1707 = vadd.xlane.f32.xlu0 %v1706
        %v1708 = vpop.xlane.xlu0 %1707
        %v1709 = vsel %vm216, %v1670, 0.0
        %1710 = vadd.xlane.f32.xlu0 %v1709
        %v1711 = vpop.xlane.xlu0 %1710
        %v1712 = vsel %vm216, %v1672, 0.0
        %1713 = vadd.xlane.f32.xlu0 %v1712
        %v1714 = vpop.xlane.xlu0 %1713
        %v1715 = vsel %vm216, %v1674, 0.0
        %1716 = vadd.xlane.f32.xlu0 %v1715
        %v1717 = vpop.xlane.xlu0 %1716
        %v1718 = vsel %vm216, %v1676, 0.0
        %1719 = vadd.xlane.f32.xlu0 %v1718
        %v1720 = vpop.xlane.xlu0 %1719
        %v1721 = vsel %vm216, %v1678, 0.0
        %1722 = vadd.xlane.f32.xlu0 %v1721
        %v1723 = vpop.xlane.xlu0 %1722
        %v1724 = vsel %vm216, %v1680, 0.0
        %1725 = vadd.xlane.f32.xlu0 %v1724
        %v1726 = vpop.xlane.xlu0 %1725
        %v1727 = vsel %vm216, %v1682, 0.0
        %1728 = vadd.xlane.f32.xlu0 %v1727
        %v1729 = vpop.xlane.xlu0 %1728
        %v1730 = vsel %vm216, %v1684, 0.0
        %1731 = vadd.xlane.f32.xlu0 %v1730
        %v1732 = vpop.xlane.xlu0 %1731
        %v1733 = vrcp.pop %v1687
        %v1734 = vrcp.pop %v1690
        %v1735 = vrcp.pop %v1693
        %v1736 = vrcp.pop %v1696
        %v1737 = vrcp.pop %v1699
        %v1738 = vrcp.pop %v1702
        %v1739 = vrcp.pop %v1705
        %v1740 = vrcp.pop %v1708
        %v1741 = vrcp.pop %v1711
        %v1742 = vrcp.pop %v1714
        %v1743 = vrcp.pop %v1717
        %v1744 = vrcp.pop %v1720
        %v1745 = vrcp.pop %v1723
        %v1746 = vrcp.pop %v1726
        %v1747 = vrcp.pop %v1729
        %v1748 = vrcp.pop %v1732
        %v1749 = vpack.c.bf16 %v1656, %v1654
        %v1750 = vpack.c.bf16 %v1660, %v1658
        %v1751 = vpack.c.bf16 %v1664, %v1662
        %v1752 = vpack.c.bf16 %v1668, %v1666
        %v1753 = vpack.c.bf16 %v1672, %v1670
        %v1754 = vpack.c.bf16 %v1676, %v1674
        %v1755 = vpack.c.bf16 %v1680, %v1678
        %v1756 = vpack.c.bf16 %v1684, %v1682
        %1757 = vrot.lane.b32.xlu0 %v1454, 64
        %v1758 = vpop.permute.xlu0 %1757
        %1759 = vrot.lane.b32.xlu0 %v1455, 64
        %v1760 = vpop.permute.xlu0 %1759
        %v1764 = vsel %vm216, %v1749, 0
        %v1767 = vsel %vm216, %v1750, 0
        %v1770 = vsel %vm216, %v1751, 0
        %v1773 = vsel %vm216, %v1752, 0
        %v1776 = vsel %vm216, %v1753, 0
        %v1779 = vsel %vm216, %v1754, 0
        %v1782 = vsel %vm216, %v1755, 0
        %v1785 = vsel %vm216, %v1756, 0
        %1787 = vmatprep.subr.bf16.mxu0 0
        %1788 = vmatpush1.bf16.msra.mxu0 0
        %1789 = vmatprep.subr.bf16.mxu0 0
        %1790 = vmatpush1.bf16.msra.mxu0 0
        %1791 = vmatprep.subr.bf16.mxu0 0
        %1792 = vmatpush1.bf16.msra.mxu0 0
        %1793 = vmatprep.subr.bf16.mxu0 0
        %1794 = vmatpush1.bf16.msra.mxu0 0
        %1795 = vmatprep.subr.bf16.mxu0 0
        %1796 = vmatpush1.bf16.msra.mxu0 0
        %1797 = vmatprep.subr.bf16.mxu0 0
        %1798 = vmatpush1.bf16.msra.mxu0 0
        %1799 = vmatprep.subr.bf16.mxu0 0
        %1800 = vmatpush1.bf16.msra.mxu0 %v1760
        %1801 = vmatprep.subr.bf16.mxu0 0
        %1802 = vmatpush1.bf16.msra.mxu0 %v1758
        %1803 = vmatprep.subr.bf16.mxu0 0
        %1804 = vmatpush2.bf16.msra.mxu0 0
        %1805 = vmatprep.subr.bf16.mxu0 0
        %1806 = vmatpush2.bf16.msra.mxu0 0
        %1807 = vmatprep.subr.bf16.mxu0 0
        %1808 = vmatpush2.bf16.msra.mxu0 0
        %1809 = vmatprep.subr.bf16.mxu0 0
        %1810 = vmatpush2.bf16.msra.mxu0 0
        %1811 = vmatprep.subr.bf16.mxu0 0
        %1812 = vmatpush2.bf16.msra.mxu0 0
        %1813 = vmatprep.subr.bf16.mxu0 0
        %1814 = vmatpush2.bf16.msra.mxu0 0
        %1815 = vmatprep.subr.bf16.mxu0 0
        %1816 = vmatpush2.bf16.msra.mxu0 0
        %1817 = vmatprep.subr.bf16.mxu0 0
        %1818 = vmatpush2.bf16.msra.mxu0 0
        %1819 = vmatprep.mubr.bf16.mxu0 0
        %1820 = vmatmul.mubr.bf16.gmra.mxu0 %v1764
        %v1821 = vpop.f32.mrf.mxu0
        %v1822 = vadd.f32 0.0, %v1821
        %v1823 = vpop.f32.mrf.mxu0
        %v1824 = vpop.f32.mrf.mxu0
        %v1825 = vadd.f32 0.0, %v1824
        %v1826 = vpop.f32.mrf.mxu0
        %1827 = vmatprep.mubr.bf16.mxu0 0
        %1828 = vmatmul.mubr.bf16.gmra.mxu0 %v1767
        %v1829 = vpop.f32.mrf.mxu0
        %v1830 = vadd.f32 0.0, %v1829
        %v1831 = vpop.f32.mrf.mxu0
        %v1832 = vpop.f32.mrf.mxu0
        %v1833 = vadd.f32 0.0, %v1832
        %v1834 = vpop.f32.mrf.mxu0
        %1835 = vmatprep.mubr.bf16.mxu0 0
        %1836 = vmatmul.mubr.bf16.gmra.mxu0 %v1770
        %v1837 = vpop.f32.mrf.mxu0
        %v1838 = vadd.f32 0.0, %v1837
        %v1839 = vpop.f32.mrf.mxu0
        %v1840 = vpop.f32.mrf.mxu0
        %v1841 = vadd.f32 0.0, %v1840
        %v1842 = vpop.f32.mrf.mxu0
        %1843 = vmatprep.mubr.bf16.mxu0 0
        %1844 = vmatmul.mubr.bf16.gmra.mxu0 %v1773
        %v1845 = vpop.f32.mrf.mxu0
        %v1846 = vadd.f32 0.0, %v1845
        %v1847 = vpop.f32.mrf.mxu0
        %v1848 = vpop.f32.mrf.mxu0
        %v1849 = vadd.f32 0.0, %v1848
        %v1850 = vpop.f32.mrf.mxu0
        %1851 = vmatprep.mubr.bf16.mxu0 0
        %1852 = vmatmul.mubr.bf16.gmra.mxu0 %v1776
        %v1853 = vpop.f32.mrf.mxu0
        %v1854 = vadd.f32 0.0, %v1853
        %v1855 = vpop.f32.mrf.mxu0
        %v1856 = vpop.f32.mrf.mxu0
        %v1857 = vadd.f32 0.0, %v1856
        %v1858 = vpop.f32.mrf.mxu0
        %1859 = vmatprep.mubr.bf16.mxu0 0
        %1860 = vmatmul.mubr.bf16.gmra.mxu0 %v1779
        %v1861 = vpop.f32.mrf.mxu0
        %v1862 = vadd.f32 0.0, %v1861
        %v1863 = vpop.f32.mrf.mxu0
        %v1864 = vpop.f32.mrf.mxu0
        %v1865 = vadd.f32 0.0, %v1864
        %v1866 = vpop.f32.mrf.mxu0
        %1867 = vmatprep.mubr.bf16.mxu0 0
        %1868 = vmatmul.mubr.bf16.gmra.mxu0 %v1782
        %v1869 = vpop.f32.mrf.mxu0
        %v1870 = vadd.f32 0.0, %v1869
        %v1871 = vpop.f32.mrf.mxu0
        %v1872 = vpop.f32.mrf.mxu0
        %v1873 = vadd.f32 0.0, %v1872
        %v1874 = vpop.f32.mrf.mxu0
        %1875 = vmatprep.mubr.bf16.mxu0 0
        %1876 = vmatmul.mubr.bf16.gmra.mxu0 %v1785
        %v1877 = vpop.f32.mrf.mxu0
        %v1878 = vadd.f32 0.0, %v1877
        %v1879 = vpop.f32.mrf.mxu0
        %v1880 = vpop.f32.mrf.mxu0
        %v1881 = vadd.f32 0.0, %v1880
        %v1882 = vpop.f32.mrf.mxu0
        %1883 = vdwg.mxu0
        %v1884 = vmul.f32 %v185, %v1733
        %v1885 = vmul.f32 %v186, %v1734
        %v1886 = vmul.f32 %v187, %v1735
        %v1887 = vmul.f32 %v188, %v1736
        %v1888 = vmul.f32 %v189, %v1737
        %v1889 = vmul.f32 %v190, %v1738
        %v1890 = vmul.f32 %v191, %v1739
        %v1891 = vmul.f32 %v192, %v1740
        %v1892 = vmul.f32 %v193, %v1741
        %v1893 = vmul.f32 %v194, %v1742
        %v1894 = vmul.f32 %v195, %v1743
        %v1895 = vmul.f32 %v196, %v1744
        %v1896 = vmul.f32 %v197, %v1745
        %v1897 = vmul.f32 %v198, %v1746
        %v1898 = vmul.f32 %v199, %v1747
        %v1899 = vmul.f32 %v200, %v1748
        %v1900 = vmul.f32 %v1822, %v1884
        %v1901 = vmul.f32 %v1825, %v1885
        %v1902 = vmul.f32 %v1830, %v1886
        %v1903 = vmul.f32 %v1833, %v1887
        %v1904 = vmul.f32 %v1838, %v1888
        %v1905 = vmul.f32 %v1841, %v1889
        %v1906 = vmul.f32 %v1846, %v1890
        %v1907 = vmul.f32 %v1849, %v1891
        %v1908 = vmul.f32 %v1854, %v1892
        %v1909 = vmul.f32 %v1857, %v1893
        %v1910 = vmul.f32 %v1862, %v1894
        %v1911 = vmul.f32 %v1865, %v1895
        %v1912 = vmul.f32 %v1870, %v1896
        %v1913 = vmul.f32 %v1873, %v1897
        %v1914 = vmul.f32 %v1878, %v1898
        %v1915 = vmul.f32 %v1881, %v1899
        %v1916 = vadd.f32 %v1900, %v1904
        %v1917 = vadd.f32 %v1901, %v1905
        %v1918 = vadd.f32 %v1902, %v1906
        %v1919 = vadd.f32 %v1903, %v1907
        %v1920 = vadd.f32 %v1916, %v1908
        %v1921 = vadd.f32 %v1917, %v1909
        %v1922 = vadd.f32 %v1918, %v1910
        %v1923 = vadd.f32 %v1919, %v1911
        %v1924 = vadd.f32 %v1920, %v1912
        %v1925 = vadd.f32 %v1921, %v1913
        %v1926 = vadd.f32 %v1922, %v1914
        %v1927 = vadd.f32 %v1923, %v1915
        %v1928 = vpack.c.bf16 %v1925, %v1924
        %v1929 = vpack.c.bf16 %v1927, %v1926
        %v1930 = vld [vmem:[%s1354 + $0x10] sm:$0xf]
        %v1931 = vld [vmem:[%s1354 + $0x14] sm:$0xf]
        %v1932 = vld [vmem:[%s1354 + $0x18] sm:$0xf]
        %v1933 = vld [vmem:[%s1354 + $0x1c] sm:$0xf]
        %v1934 = vlaneseq
        %v1935 = vshrl.u32 %v1934, 7
        %v1936 = vsub.s32 1, %v1935
        %v1937 = vrot.slane %v1351, %v1936
        %v1942 = vunpack.c.l.b16 %v1930
        %v1943 = vunpack.c.l.b16 %v1931
        %v1944 = vunpack.c.l.b16 %v1932
        %v1945 = vunpack.c.l.b16 %v1933
        %v1946 = vpack.c.b16 %v1943, %v1942
        %v1947 = vpack.c.b16 %v1945, %v1944
        %v1951 = vsel %vm216, %v1928, 0
        %v1954 = vsel %vm216, %v1929, 0
        %1956 = vmatprep.subr.bf16.mxu0 0
        %1957 = vmatpush1.bf16.msra.mxu0 0
        %1958 = vmatprep.subr.bf16.mxu0 0
        %1959 = vmatpush1.bf16.msra.mxu0 0
        %1960 = vmatprep.subr.bf16.mxu0 0
        %1961 = vmatpush1.bf16.msra.mxu0 0
        %1962 = vmatprep.subr.bf16.mxu0 0
        %1963 = vmatpush1.bf16.msra.mxu0 0
        %1964 = vmatprep.subr.bf16.mxu0 0
        %1965 = vmatpush1.bf16.msra.mxu0 0
        %1966 = vmatprep.subr.bf16.mxu0 0
        %1967 = vmatpush1.bf16.msra.mxu0 0
        %1968 = vmatprep.subr.bf16.mxu0 0
        %1969 = vmatpush1.bf16.msra.mxu0 %v1947
        %1970 = vmatprep.subr.bf16.mxu0 0
        %1971 = vmatpush1.bf16.msra.mxu0 %v1946
        %1972 = vmatprep.subr.bf16.mxu0 0
        %1973 = vmatpush2.bf16.msra.mxu0 0
        %1974 = vmatprep.subr.bf16.mxu0 0
        %1975 = vmatpush2.bf16.msra.mxu0 0
        %1976 = vmatprep.subr.bf16.mxu0 0
        %1977 = vmatpush2.bf16.msra.mxu0 0
        %1978 = vmatprep.subr.bf16.mxu0 0
        %1979 = vmatpush2.bf16.msra.mxu0 0
        %1980 = vmatprep.subr.bf16.mxu0 0
        %1981 = vmatpush2.bf16.msra.mxu0 0
        %1982 = vmatprep.subr.bf16.mxu0 0
        %1983 = vmatpush2.bf16.msra.mxu0 0
        %1984 = vmatprep.subr.bf16.mxu0 0
        %1985 = vmatpush2.bf16.msra.mxu0 0
        %1986 = vmatprep.subr.bf16.mxu0 0
        %1987 = vmatpush2.bf16.msra.mxu0 0
        %1988 = vmatprep.mubr.bf16.mxu0 0
        %1989 = vmatmul.mubr.bf16.gmra.mxu0 %v1951
        %v1990 = vpop.f32.mrf.mxu0
        %v1991 = vadd.f32 %v1937, %v1990
        %v1992 = vpop.f32.mrf.mxu0
        %v1993 = vpop.f32.mrf.mxu0
        %v1994 = vadd.f32 %v1937, %v1993
        %v1995 = vpop.f32.mrf.mxu0
        %1996 = vmatprep.mubr.bf16.mxu0 0
        %1997 = vmatmul.mubr.bf16.gmra.mxu0 %v1954
        %v1998 = vpop.f32.mrf.mxu0
        %v1999 = vadd.f32 %v1937, %v1998
        %v2000 = vpop.f32.mrf.mxu0
        %v2001 = vpop.f32.mrf.mxu0
        %v2002 = vadd.f32 %v1937, %v2001
        %v2003 = vpop.f32.mrf.mxu0
        %2004 = vdwg.mxu0
        %v2005 = vadd.f32 %v1347, %v1991
        %v2006 = vadd.f32 %v1348, %v1994
        %v2007 = vadd.f32 %v1349, %v1999
        %v2008 = vadd.f32 %v1350, %v2002
        %v2009 = vsel %vm216, %v2005, 0.0
        %2010 = vadd.xlane.f32.xlu0 %v2009
        %v2011 = vpop.xlane.xlu0 %2010
        %v2012 = vsel %vm216, %v2006, 0.0
        %2013 = vadd.xlane.f32.xlu0 %v2012
        %v2014 = vpop.xlane.xlu0 %2013
        %v2015 = vsel %vm216, %v2007, 0.0
        %2016 = vadd.xlane.f32.xlu0 %v2015
        %v2017 = vpop.xlane.xlu0 %2016
        %v2018 = vsel %vm216, %v2008, 0.0
        %2019 = vadd.xlane.f32.xlu0 %v2018
        %v2020 = vpop.xlane.xlu0 %2019
        %v2021 = vmul.f32 %v2011, %v1047
        %v2022 = vmul.f32 %v2014, %v1047
        %v2023 = vmul.f32 %v2017, %v1047
        %v2024 = vmul.f32 %v2020, %v1047
        %v2025 = vsub.f32 %v2005, %v2021
        %v2026 = vsub.f32 %v2006, %v2022
        %v2027 = vsub.f32 %v2007, %v2023
        %v2028 = vsub.f32 %v2008, %v2024
        %v2029 = vmul.f32 %v2025, %v2025
        %v2030 = vmul.f32 %v2026, %v2026
        %v2031 = vmul.f32 %v2027, %v2027
        %v2032 = vmul.f32 %v2028, %v2028
        %v2033 = vsel %vm216, %v2029, 0.0
        %2034 = vadd.xlane.f32.xlu0 %v2033
        %v2035 = vpop.xlane.xlu0 %2034
        %v2036 = vsel %vm216, %v2030, 0.0
        %2037 = vadd.xlane.f32.xlu0 %v2036
        %v2038 = vpop.xlane.xlu0 %2037
        %v2039 = vsel %vm216, %v2031, 0.0
        %2040 = vadd.xlane.f32.xlu0 %v2039
        %v2041 = vpop.xlane.xlu0 %2040
        %v2042 = vsel %vm216, %v2032, 0.0
        %2043 = vadd.xlane.f32.xlu0 %v2042
        %v2044 = vpop.xlane.xlu0 %2043
        %v2045 = vmul.f32 %v2035, %v1047
        %v2046 = vmul.f32 %v2038, %v1047
        %v2047 = vmul.f32 %v2041, %v1047
        %v2048 = vmul.f32 %v2044, %v1047
        %v2049 = vadd.f32 %v2045, 1e-05
        %v2050 = vadd.f32 %v2046, 1e-05
        %v2051 = vadd.f32 %v2047, 1e-05
        %v2052 = vadd.f32 %v2048, 1e-05
        %v2053 = vrsqrt.pop %v2049
        %v2054 = vrsqrt.pop %v2050
        %v2055 = vrsqrt.pop %v2051
        %v2056 = vrsqrt.pop %v2052
        %v2057 = vmul.f32 %v2025, %v2053
        %v2058 = vmul.f32 %v2026, %v2054
        %v2059 = vmul.f32 %v2027, %v2055
        %v2060 = vmul.f32 %v2028, %v2056
        %v2061 = vlaneseq
        %v2062 = vshrl.u32 %v2061, 7
        %v2063 = vsub.s32 2, %v2062
        %v2064 = vrot.slane %v1351, %v2063
        %v2065 = vmul.f32 %v2057, %v2064
        %v2066 = vmul.f32 %v2058, %v2064
        %v2067 = vmul.f32 %v2059, %v2064
        %v2068 = vmul.f32 %v2060, %v2064
        %v2069 = vlaneseq
        %v2070 = vshrl.u32 %v2069, 7
        %v2071 = vsub.s32 3, %v2070
        %v2072 = vrot.slane %v1351, %v2071
        %v2073 = vadd.f32 %v2065, %v2072
        %v2074 = vadd.f32 %v2066, %v2072
        %v2075 = vadd.f32 %v2067, %v2072
        %v2076 = vadd.f32 %v2068, %v2072
        %v2077 = vpack.c.bf16 %v2074, %v2073
        %v2078 = vpack.c.bf16 %v2076, %v2075
        %v2079 = vld [vmem:[%s1354 + $0x20] sm:$0xf]
        %v2080 = vld [vmem:[%s1354 + $0x24] sm:$0xf]
        %v2081 = vld [vmem:[%s1354 + $0x28] sm:$0xf]
        %v2082 = vld [vmem:[%s1354 + $0x2c] sm:$0xf]
        %v2083 = vlaneseq
        %v2084 = vshrl.u32 %v2083, 7
        %v2085 = vsub.s32 4, %v2084
        %v2086 = vrot.slane %v1351, %v2085
        %v2091 = vunpack.c.l.b16 %v2079
        %v2092 = vunpack.c.l.b16 %v2080
        %v2093 = vunpack.c.l.b16 %v2081
        %v2094 = vunpack.c.l.b16 %v2082
        %v2095 = vpack.c.b16 %v2092, %v2091
        %v2096 = vpack.c.b16 %v2094, %v2093
        %v2100 = vsel %vm216, %v2077, 0
        %v2103 = vsel %vm216, %v2078, 0
        %2105 = vmatprep.subr.bf16.mxu0 0
        %2106 = vmatpush1.bf16.msra.mxu0 0
        %2107 = vmatprep.subr.bf16.mxu0 0
        %2108 = vmatpush1.bf16.msra.mxu0 0
        %2109 = vmatprep.subr.bf16.mxu0 0
        %2110 = vmatpush1.bf16.msra.mxu0 0
        %2111 = vmatprep.subr.bf16.mxu0 0
        %2112 = vmatpush1.bf16.msra.mxu0 0
        %2113 = vmatprep.subr.bf16.mxu0 0
        %2114 = vmatpush1.bf16.msra.mxu0 0
        %2115 = vmatprep.subr.bf16.mxu0 0
        %2116 = vmatpush1.bf16.msra.mxu0 0
        %2117 = vmatprep.subr.bf16.mxu0 0
        %2118 = vmatpush1.bf16.msra.mxu0 %v2096
        %2119 = vmatprep.subr.bf16.mxu0 0
        %2120 = vmatpush1.bf16.msra.mxu0 %v2095
        %2121 = vmatprep.subr.bf16.mxu0 0
        %2122 = vmatpush2.bf16.msra.mxu0 0
        %2123 = vmatprep.subr.bf16.mxu0 0
        %2124 = vmatpush2.bf16.msra.mxu0 0
        %2125 = vmatprep.subr.bf16.mxu0 0
        %2126 = vmatpush2.bf16.msra.mxu0 0
        %2127 = vmatprep.subr.bf16.mxu0 0
        %2128 = vmatpush2.bf16.msra.mxu0 0
        %2129 = vmatprep.subr.bf16.mxu0 0
        %2130 = vmatpush2.bf16.msra.mxu0 0
        %2131 = vmatprep.subr.bf16.mxu0 0
        %2132 = vmatpush2.bf16.msra.mxu0 0
        %2133 = vmatprep.subr.bf16.mxu0 0
        %2134 = vmatpush2.bf16.msra.mxu0 0
        %2135 = vmatprep.subr.bf16.mxu0 0
        %2136 = vmatpush2.bf16.msra.mxu0 0
        %2137 = vmatprep.mubr.bf16.mxu0 0
        %2138 = vmatmul.mubr.bf16.gmra.mxu0 %v2100
        %v2139 = vpop.f32.mrf.mxu0
        %v2140 = vadd.f32 %v2086, %v2139
        %v2141 = vpop.f32.mrf.mxu0
        %v2142 = vpop.f32.mrf.mxu0
        %v2143 = vadd.f32 %v2086, %v2142
        %v2144 = vpop.f32.mrf.mxu0
        %2145 = vmatprep.mubr.bf16.mxu0 0
        %2146 = vmatmul.mubr.bf16.gmra.mxu0 %v2103
        %v2147 = vpop.f32.mrf.mxu0
        %v2148 = vadd.f32 %v2086, %v2147
        %v2149 = vpop.f32.mrf.mxu0
        %v2150 = vpop.f32.mrf.mxu0
        %v2151 = vadd.f32 %v2086, %v2150
        %v2152 = vpop.f32.mrf.mxu0
        %2153 = vdwg.mxu0
        %v2154 = vmax.f32 %v2140, 0.0
        %v2155 = vmax.f32 %v2143, 0.0
        %v2156 = vmax.f32 %v2148, 0.0
        %v2157 = vmax.f32 %v2151, 0.0
        %v2158 = vpack.c.bf16 %v2155, %v2154
        %v2159 = vpack.c.bf16 %v2157, %v2156
        %v2160 = vld [vmem:[%s1354 + $0x30] sm:$0xf]
        %v2161 = vld [vmem:[%s1354 + $0x34] sm:$0xf]
        %v2162 = vld [vmem:[%s1354 + $0x38] sm:$0xf]
        %v2163 = vld [vmem:[%s1354 + $0x3c] sm:$0xf]
        %v2164 = vld [vmem:[%s1354 + $0x40] sm:$0xf]
        %v2165 = vld [vmem:[%s1354 + $0x44] sm:$0xf]
        %v2166 = vld [vmem:[%s1354 + $0x48] sm:$0xf]
        %v2167 = vld [vmem:[%s1354 + $0x4c] sm:$0xf]
        %v2168 = vlaneseq
        %v2169 = vshrl.u32 %v2168, 7
        %v2170 = vsub.s32 5, %v2169
        %v2171 = vrot.slane %v1351, %v2170
        %v2180 = vunpack.c.l.b16 %v2160
        %v2181 = vunpack.c.l.b16 %v2161
        %v2182 = vunpack.c.l.b16 %v2162
        %v2183 = vunpack.c.l.b16 %v2163
        %v2184 = vunpack.c.l.b16 %v2164
        %v2185 = vunpack.c.l.b16 %v2165
        %v2186 = vunpack.c.l.b16 %v2166
        %v2187 = vunpack.c.l.b16 %v2167
        %v2188 = vpack.c.b16 %v2181, %v2180
        %v2189 = vpack.c.b16 %v2183, %v2182
        %v2190 = vpack.c.b16 %v2185, %v2184
        %v2191 = vpack.c.b16 %v2187, %v2186
        %v2197 = vsel %vm1223, %v2158, 0
        %v2200 = vsel %vm1223, %v2159, 0
        %2202 = vmatprep.subr.bf16.mxu0 0
        %2203 = vmatpush1.bf16.msra.mxu0 0
        %2204 = vmatprep.subr.bf16.mxu0 0
        %2205 = vmatpush1.bf16.msra.mxu0 0
        %2206 = vmatprep.subr.bf16.mxu0 0
        %2207 = vmatpush1.bf16.msra.mxu0 0
        %2208 = vmatprep.subr.bf16.mxu0 0
        %2209 = vmatpush1.bf16.msra.mxu0 0
        %2210 = vmatprep.subr.bf16.mxu0 0
        %2211 = vmatpush1.bf16.msra.mxu0 %v2191
        %2212 = vmatprep.subr.bf16.mxu0 0
        %2213 = vmatpush1.bf16.msra.mxu0 %v2190
        %2214 = vmatprep.subr.bf16.mxu0 0
        %2215 = vmatpush1.bf16.msra.mxu0 %v2189
        %2216 = vmatprep.subr.bf16.mxu0 0
        %2217 = vmatpush1.bf16.msra.mxu0 %v2188
        %2218 = vmatprep.subr.bf16.mxu0 0
        %2219 = vmatpush2.bf16.msra.mxu0 0
        %2220 = vmatprep.subr.bf16.mxu0 0
        %2221 = vmatpush2.bf16.msra.mxu0 0
        %2222 = vmatprep.subr.bf16.mxu0 0
        %2223 = vmatpush2.bf16.msra.mxu0 0
        %2224 = vmatprep.subr.bf16.mxu0 0
        %2225 = vmatpush2.bf16.msra.mxu0 0
        %2226 = vmatprep.subr.bf16.mxu0 0
        %2227 = vmatpush2.bf16.msra.mxu0 0
        %2228 = vmatprep.subr.bf16.mxu0 0
        %2229 = vmatpush2.bf16.msra.mxu0 0
        %2230 = vmatprep.subr.bf16.mxu0 0
        %2231 = vmatpush2.bf16.msra.mxu0 0
        %2232 = vmatprep.subr.bf16.mxu0 0
        %2233 = vmatpush2.bf16.msra.mxu0 0
        %2234 = vmatprep.mubr.bf16.mxu0 0
        %2235 = vmatmul.mubr.bf16.gmra.mxu0 %v2197
        %v2236 = vpop.f32.mrf.mxu0
        %v2237 = vadd.f32 %v2171, %v2236
        %v2238 = vpop.f32.mrf.mxu0
        %v2239 = vpop.f32.mrf.mxu0
        %v2240 = vadd.f32 %v2171, %v2239
        %v2241 = vpop.f32.mrf.mxu0
        %2242 = vmatprep.mubr.bf16.mxu0 0
        %2243 = vmatmul.mubr.bf16.gmra.mxu0 %v2200
        %v2244 = vpop.f32.mrf.mxu0
        %v2245 = vadd.f32 %v2171, %v2244
        %v2246 = vpop.f32.mrf.mxu0
        %v2247 = vpop.f32.mrf.mxu0
        %v2248 = vadd.f32 %v2171, %v2247
        %v2249 = vpop.f32.mrf.mxu0
        %2250 = vdwg.mxu0
        %v2251 = vadd.f32 %v2073, %v2237
        %v2252 = vadd.f32 %v2074, %v2240
        %v2253 = vadd.f32 %v2075, %v2245
        %v2254 = vadd.f32 %v2076, %v2248
        %v2255 = vsel %vm216, %v2251, 0.0
        %2256 = vadd.xlane.f32.xlu0 %v2255
        %v2257 = vpop.xlane.xlu0 %2256
        %v2258 = vsel %vm216, %v2252, 0.0
        %2259 = vadd.xlane.f32.xlu0 %v2258
        %v2260 = vpop.xlane.xlu0 %2259
        %v2261 = vsel %vm216, %v2253, 0.0
        %2262 = vadd.xlane.f32.xlu0 %v2261
        %v2263 = vpop.xlane.xlu0 %2262
        %v2264 = vsel %vm216, %v2254, 0.0
        %2265 = vadd.xlane.f32.xlu0 %v2264
        %v2266 = vpop.xlane.xlu0 %2265
        %v2267 = vmul.f32 %v2257, %v1047
        %v2268 = vmul.f32 %v2260, %v1047
        %v2269 = vmul.f32 %v2263, %v1047
        %v2270 = vmul.f32 %v2266, %v1047
        %v2271 = vsub.f32 %v2251, %v2267
        %v2272 = vsub.f32 %v2252, %v2268
        %v2273 = vsub.f32 %v2253, %v2269
        %v2274 = vsub.f32 %v2254, %v2270
        %v2275 = vmul.f32 %v2271, %v2271
        %v2276 = vmul.f32 %v2272, %v2272
        %v2277 = vmul.f32 %v2273, %v2273
        %v2278 = vmul.f32 %v2274, %v2274
        %v2279 = vsel %vm216, %v2275, 0.0
        %2280 = vadd.xlane.f32.xlu0 %v2279
        %v2281 = vpop.xlane.xlu0 %2280
        %v2282 = vsel %vm216, %v2276, 0.0
        %2283 = vadd.xlane.f32.xlu0 %v2282
        %v2284 = vpop.xlane.xlu0 %2283
        %v2285 = vsel %vm216, %v2277, 0.0
        %2286 = vadd.xlane.f32.xlu0 %v2285
        %v2287 = vpop.xlane.xlu0 %2286
        %v2288 = vsel %vm216, %v2278, 0.0
        %2289 = vadd.xlane.f32.xlu0 %v2288
        %v2290 = vpop.xlane.xlu0 %2289
        %v2291 = vmul.f32 %v2281, %v1047
        %v2292 = vmul.f32 %v2284, %v1047
        %v2293 = vmul.f32 %v2287, %v1047
        %v2294 = vmul.f32 %v2290, %v1047
        %v2295 = vadd.f32 %v2291, 1e-05
        %v2296 = vadd.f32 %v2292, 1e-05
        %v2297 = vadd.f32 %v2293, 1e-05
        %v2298 = vadd.f32 %v2294, 1e-05
        %v2299 = vrsqrt.pop %v2295
        %v2300 = vrsqrt.pop %v2296
        %v2301 = vrsqrt.pop %v2297
        %v2302 = vrsqrt.pop %v2298
        %v2303 = vmul.f32 %v2271, %v2299
        %v2304 = vmul.f32 %v2272, %v2300
        %v2305 = vmul.f32 %v2273, %v2301
        %v2306 = vmul.f32 %v2274, %v2302
        %v2307 = vlaneseq
        %v2308 = vshrl.u32 %v2307, 7
        %v2309 = vsub.s32 6, %v2308
        %v2310 = vrot.slane %v1351, %v2309
        %v2311 = vmul.f32 %v2303, %v2310
        %v2312 = vmul.f32 %v2304, %v2310
        %v2313 = vmul.f32 %v2305, %v2310
        %v2314 = vmul.f32 %v2306, %v2310
        %v2315 = vlaneseq
        %v2316 = vshrl.u32 %v2315, 7
        %v2317 = vsub.s32 7, %v2316
        %v2318 = vrot.slane %v1351, %v2317
        %v2319 = vadd.f32 %v2311, %v2318
        %v2320 = vadd.f32 %v2312, %v2318
        %v2321 = vadd.f32 %v2313, %v2318
        %v2322 = vadd.f32 %v2314, %v2318
        %2323 = vst.msk [vmem:[#allocation2] sm:$0xff] %vm216, %v2319
        %2324 = vst.msk [vmem:[#allocation2 + $0x8] sm:$0xff] %vm216, %v2320
        %2325 = vst.msk [vmem:[#allocation2 + $0x10] sm:$0xff] %vm216, %v2321
        %2326 = vst.msk [vmem:[#allocation2 + $0x18] sm:$0xff] %vm216, %v2322
        %2327 = vst.msk [vmem:[#allocation2 + $0x20] sm:$0xff] %vm216, %v206
        %2328 = vst.msk [vmem:[#allocation2 + $0x28] sm:$0xff] %vm216, %v207
        %v2329 = vld [vmem:[#allocation3 + $0x110] sm:$0xff]
        %2330 = vst.msk [vmem:[#allocation2 + $0x30] sm:$0xff] %vm216, %v2329
        %v2331 = vld [vmem:[#allocation3 + $0x90] sm:$0xff]
        %v2332 = vld [vmem:[#allocation3 + $0x98] sm:$0xff]
        %v2333 = vld [vmem:[#allocation3 + $0xa0] sm:$0xff]
        %v2334 = vld [vmem:[#allocation3 + $0xa8] sm:$0xff]
        %v2335 = vld [vmem:[#allocation3 + $0xb0] sm:$0xff]
        %v2336 = vld [vmem:[#allocation3 + $0xb8] sm:$0xff]
        %v2337 = vld [vmem:[#allocation2] sm:$0xff]
        %v2338 = vld [vmem:[#allocation2 + $0x8] sm:$0xff]
        %v2339 = vld [vmem:[#allocation2 + $0x10] sm:$0xff]
        %v2340 = vld [vmem:[#allocation2 + $0x18] sm:$0xff]
        %v2341 = vld [vmem:[#allocation2 + $0x20] sm:$0xff]
        %v2342 = vld [vmem:[#allocation2 + $0x28] sm:$0xff]
        %v2343 = vld [vmem:[#allocation2 + $0x30] sm:$0xff]
        %vm2344 = vcmask 457728
        %v2346 = vsel %vm2344, %v2331, 0
        %v2349 = vsel %vm2344, %v2332, 0
        %v2352 = vsel %vm2344, %v2333, 0
        %v2355 = vsel %vm2344, %v2334, 0
        %v2358 = vsel %vm2344, %v2335, 0
        %v2361 = vsel %vm2344, %v2336, 0
        %2363 = vmatprep.subr.mxu0 0.0
        %2364 = vmatpush1.msra.mxu0 0.0
        %2365 = vmatprep.subr.mxu0 0.0
        %2366 = vmatpush1.msra.mxu0 0.0
        %2367 = vmatprep.subr.mxu0 0.0
        %2368 = vmatpush1.msra.mxu0 0.0
        %2369 = vmatprep.subr.mxu0 0.0
        %2370 = vmatpush1.msra.mxu0 0.0
        %2371 = vmatprep.subr.mxu0 0.0
        %2372 = vmatpush1.msra.mxu0 0.0
        %2373 = vmatprep.subr.mxu0 0.0
        %2374 = vmatpush1.msra.mxu0 0.0
        %2375 = vmatprep.subr.mxu0 0.0
        %2376 = vmatpush1.msra.mxu0 0.0
        %2377 = vmatprep.subr.mxu0 0.0
        %2378 = vmatpush1.msra.mxu0 0.0
        %2379 = vmatprep.subr.mxu0 0.0
        %2380 = vmatpush1.msra.mxu0 0.0
        %2381 = vmatprep.subr.mxu0 0.0
        %2382 = vmatpush1.msra.mxu0 %v2343
        %2383 = vmatprep.subr.mxu0 0.0
        %2384 = vmatpush1.msra.mxu0 %v2342
        %2385 = vmatprep.subr.mxu0 0.0
        %2386 = vmatpush1.msra.mxu0 %v2341
        %2387 = vmatprep.subr.mxu0 0.0
        %2388 = vmatpush1.msra.mxu0 %v2340
        %2389 = vmatprep.subr.mxu0 0.0
        %2390 = vmatpush1.msra.mxu0 %v2339
        %2391 = vmatprep.subr.mxu0 0.0
        %2392 = vmatpush1.msra.mxu0 %v2338
        %2393 = vmatprep.subr.mxu0 0.0
        %2394 = vmatpush1.msra.mxu0 %v2337
        %2395 = vmatprep.subr.mxu0 0.0
        %2396 = vmatpush2.msra.mxu0 0.0
        %2397 = vmatprep.subr.mxu0 0.0
        %2398 = vmatpush2.msra.mxu0 0.0
        %2399 = vmatprep.subr.mxu0 0.0
        %2400 = vmatpush2.msra.mxu0 0.0
        %2401 = vmatprep.subr.mxu0 0.0
        %2402 = vmatpush2.msra.mxu0 0.0
        %2403 = vmatprep.subr.mxu0 0.0
        %2404 = vmatpush2.msra.mxu0 0.0
        %2405 = vmatprep.subr.mxu0 0.0
        %2406 = vmatpush2.msra.mxu0 0.0
        %2407 = vmatprep.subr.mxu0 0.0
        %2408 = vmatpush2.msra.mxu0 0.0
        %2409 = vmatprep.subr.mxu0 0.0
        %2410 = vmatpush2.msra.mxu0 0.0
        %2411 = vmatprep.subr.mxu0 0.0
        %2412 = vmatpush2.msra.mxu0 0.0
        %2413 = vmatprep.subr.mxu0 0.0
        %2414 = vmatpush2.msra.mxu0 0.0
        %2415 = vmatprep.subr.mxu0 0.0
        %2416 = vmatpush2.msra.mxu0 0.0
        %2417 = vmatprep.subr.mxu0 0.0
        %2418 = vmatpush2.msra.mxu0 0.0
        %2419 = vmatprep.subr.mxu0 0.0
        %2420 = vmatpush2.msra.mxu0 0.0
        %2421 = vmatprep.subr.mxu0 0.0
        %2422 = vmatpush2.msra.mxu0 0.0
        %2423 = vmatprep.subr.mxu0 0.0
        %2424 = vmatpush2.msra.mxu0 0.0
        %2425 = vmatprep.subr.mxu0 0.0
        %2426 = vmatpush2.msra.mxu0 0.0
        %2427 = vmatprep.mubr.f32.mxu0 0.0
        %2428 = vmatmul.mubr.f32.gmra.mxu0 %v2346
        %v2429 = vpop.f32.mrf.mxu0
        %v2430 = vadd.f32 0.0, %v2429
        %v2431 = vpop.f32.mrf.mxu0
        %2432 = vmatprep.mubr.f32.mxu0 0.0
        %2433 = vmatmul.mubr.f32.gmra.mxu0 %v2349
        %v2434 = vpop.f32.mrf.mxu0
        %v2435 = vadd.f32 0.0, %v2434
        %v2436 = vpop.f32.mrf.mxu0
        %2437 = vmatprep.mubr.f32.mxu0 0.0
        %2438 = vmatmul.mubr.f32.gmra.mxu0 %v2352
        %v2439 = vpop.f32.mrf.mxu0
        %v2440 = vadd.f32 0.0, %v2439
        %v2441 = vpop.f32.mrf.mxu0
        %2442 = vmatprep.mubr.f32.mxu0 0.0
        %2443 = vmatmul.mubr.f32.gmra.mxu0 %v2355
        %v2444 = vpop.f32.mrf.mxu0
        %v2445 = vadd.f32 0.0, %v2444
        %v2446 = vpop.f32.mrf.mxu0
        %2447 = vmatprep.mubr.f32.mxu0 0.0
        %2448 = vmatmul.mubr.f32.gmra.mxu0 %v2358
        %v2449 = vpop.f32.mrf.mxu0
        %v2450 = vadd.f32 0.0, %v2449
        %v2451 = vpop.f32.mrf.mxu0
        %2452 = vmatprep.mubr.f32.mxu0 0.0
        %2453 = vmatmul.mubr.f32.gmra.mxu0 %v2361
        %v2454 = vpop.f32.mrf.mxu0
        %v2455 = vadd.f32 0.0, %v2454
        %v2456 = vpop.f32.mrf.mxu0
        %2457 = vdwg.mxu0
        %v2458 = vmax.f32 %v2430, 0.0
        %v2459 = vmax.f32 %v2435, 0.0
        %v2460 = vmax.f32 %v2440, 0.0
        %v2461 = vmax.f32 %v2445, 0.0
        %v2462 = vmax.f32 %v2450, 0.0
        %v2463 = vmax.f32 %v2455, 0.0
        %v2464 = vld [vmem:[#allocation3 + $0xc0] sm:$0xf]
        %vm2465 = vcmask 392192
        %v2467 = vsel %vm2465, %v2464, 0
        %2469 = vmatprep.subr.mxu0 0.0
        %2470 = vmatpush1.msra.mxu0 0.0
        %2471 = vmatprep.subr.mxu0 0.0
        %2472 = vmatpush1.msra.mxu0 0.0
        %2473 = vmatprep.subr.mxu0 0.0
        %2474 = vmatpush1.msra.mxu0 0.0
        %2475 = vmatprep.subr.mxu0 0.0
        %2476 = vmatpush1.msra.mxu0 0.0
        %2477 = vmatprep.subr.mxu0 0.0
        %2478 = vmatpush1.msra.mxu0 0.0
        %2479 = vmatprep.subr.mxu0 0.0
        %2480 = vmatpush1.msra.mxu0 0.0
        %2481 = vmatprep.subr.mxu0 0.0
        %2482 = vmatpush1.msra.mxu0 0.0
        %2483 = vmatprep.subr.mxu0 0.0
        %2484 = vmatpush1.msra.mxu0 0.0
        %2485 = vmatprep.subr.mxu0 0.0
        %2486 = vmatpush1.msra.mxu0 0.0
        %2487 = vmatprep.subr.mxu0 0.0
        %2488 = vmatpush1.msra.mxu0 0.0
        %2489 = vmatprep.subr.mxu0 0.0
        %2490 = vmatpush1.msra.mxu0 %v2463
        %2491 = vmatprep.subr.mxu0 0.0
        %2492 = vmatpush1.msra.mxu0 %v2462
        %2493 = vmatprep.subr.mxu0 0.0
        %2494 = vmatpush1.msra.mxu0 %v2461
        %2495 = vmatprep.subr.mxu0 0.0
        %2496 = vmatpush1.msra.mxu0 %v2460
        %2497 = vmatprep.subr.mxu0 0.0
        %2498 = vmatpush1.msra.mxu0 %v2459
        %2499 = vmatprep.subr.mxu0 0.0
        %2500 = vmatpush1.msra.mxu0 %v2458
        %2501 = vmatprep.subr.mxu0 0.0
        %2502 = vmatpush2.msra.mxu0 0.0
        %2503 = vmatprep.subr.mxu0 0.0
        %2504 = vmatpush2.msra.mxu0 0.0
        %2505 = vmatprep.subr.mxu0 0.0
        %2506 = vmatpush2.msra.mxu0 0.0
        %2507 = vmatprep.subr.mxu0 0.0
        %2508 = vmatpush2.msra.mxu0 0.0
        %2509 = vmatprep.subr.mxu0 0.0
        %2510 = vmatpush2.msra.mxu0 0.0
        %2511 = vmatprep.subr.mxu0 0.0
        %2512 = vmatpush2.msra.mxu0 0.0
        %2513 = vmatprep.subr.mxu0 0.0
        %2514 = vmatpush2.msra.mxu0 0.0
        %2515 = vmatprep.subr.mxu0 0.0
        %2516 = vmatpush2.msra.mxu0 0.0
        %2517 = vmatprep.subr.mxu0 0.0
        %2518 = vmatpush2.msra.mxu0 0.0
        %2519 = vmatprep.subr.mxu0 0.0
        %2520 = vmatpush2.msra.mxu0 0.0
        %2521 = vmatprep.subr.mxu0 0.0
        %2522 = vmatpush2.msra.mxu0 0.0
        %2523 = vmatprep.subr.mxu0 0.0
        %2524 = vmatpush2.msra.mxu0 0.0
        %2525 = vmatprep.subr.mxu0 0.0
        %2526 = vmatpush2.msra.mxu0 0.0
        %2527 = vmatprep.subr.mxu0 0.0
        %2528 = vmatpush2.msra.mxu0 0.0
        %2529 = vmatprep.subr.mxu0 0.0
        %2530 = vmatpush2.msra.mxu0 0.0
        %2531 = vmatprep.subr.mxu0 0.0
        %2532 = vmatpush2.msra.mxu0 0.0
        %2533 = vmatprep.mubr.f32.mxu0 0.0
        %2534 = vmatmul.mubr.f32.gmra.mxu0 %v2467
        %v2535 = vpop.f32.mrf.mxu0
        %v2536 = vadd.f32 0.0, %v2535
        %v2537 = vpop.f32.mrf.mxu0
        %2538 = vdwg.mxu0
        %v2539 = vmul.f32 %v2536, %v2536
        %vm2540 = vcmask 257024
        %v2541 = vsel %vm2540, %v2539, 0.0
        %2542 = vadd.xlane.f32.xlu0 %v2541
        %v2543 = vpop.xlane.xlu0 %2542
        %v2544 = vmul.f32 %v2543, %v1047
        %v2545 = vadd.f32 %v2544, 1.1920929e-07
        %v2546 = vrsqrt.pop %v2545
        %v2547 = vmul.f32 %v2536, %v2546
        %v2548 = vlaneseq
        %v2549 = vshrl.u32 %v2548, 7
        %v2550 = vsub.s32 1, %v2549
        %v2551 = vrot.slane %v201, %v2550
        %v2552 = vmul.f32 %v2547, %v2551
        %v2553 = vld [vmem:[#allocation3 + $0xe8] sm:$0xff]
        %v2554 = vld [vmem:[#allocation3 + $0xf0] sm:$0xff]
        %v2555 = vld [vmem:[#allocation3 + $0xf8] sm:$0xff]
        %v2556 = vld [vmem:[#allocation3 + $0x100] sm:$0xff]
        %v2557 = vlaneseq
        %v2558 = vshrl.u32 %v2557, 7
        %v2559 = vsub.s32 2, %v2558
        %v2560 = vrot.slane %v201, %v2559
        %v2562 = vsel %vm216, %v2552, 0
        %2564 = vmatprep.subr.mxu0 0.0
        %2565 = vmatpush1.msra.mxu0 0.0
        %2566 = vmatprep.subr.mxu0 0.0
        %2567 = vmatpush1.msra.mxu0 0.0
        %2568 = vmatprep.subr.mxu0 0.0
        %2569 = vmatpush1.msra.mxu0 0.0
        %2570 = vmatprep.subr.mxu0 0.0
        %2571 = vmatpush1.msra.mxu0 0.0
        %2572 = vmatprep.subr.mxu0 0.0
        %2573 = vmatpush1.msra.mxu0 0.0
        %2574 = vmatprep.subr.mxu0 0.0
        %2575 = vmatpush1.msra.mxu0 0.0
        %2576 = vmatprep.subr.mxu0 0.0
        %2577 = vmatpush1.msra.mxu0 0.0
        %2578 = vmatprep.subr.mxu0 0.0
        %2579 = vmatpush1.msra.mxu0 0.0
        %2580 = vmatprep.subr.mxu0 0.0
        %2581 = vmatpush1.msra.mxu0 0.0
        %2582 = vmatprep.subr.mxu0 0.0
        %2583 = vmatpush1.msra.mxu0 0.0
        %2584 = vmatprep.subr.mxu0 0.0
        %2585 = vmatpush1.msra.mxu0 0.0
        %2586 = vmatprep.subr.mxu0 0.0
        %2587 = vmatpush1.msra.mxu0 0.0
        %2588 = vmatprep.subr.mxu0 0.0
        %2589 = vmatpush1.msra.mxu0 %v2556
        %2590 = vmatprep.subr.mxu0 0.0
        %2591 = vmatpush1.msra.mxu0 %v2555
        %2592 = vmatprep.subr.mxu0 0.0
        %2593 = vmatpush1.msra.mxu0 %v2554
        %2594 = vmatprep.subr.mxu0 0.0
        %2595 = vmatpush1.msra.mxu0 %v2553
        %2596 = vmatprep.subr.mxu0 0.0
        %2597 = vmatpush2.msra.mxu0 0.0
        %2598 = vmatprep.subr.mxu0 0.0
        %2599 = vmatpush2.msra.mxu0 0.0
        %2600 = vmatprep.subr.mxu0 0.0
        %2601 = vmatpush2.msra.mxu0 0.0
        %2602 = vmatprep.subr.mxu0 0.0
        %2603 = vmatpush2.msra.mxu0 0.0
        %2604 = vmatprep.subr.mxu0 0.0
        %2605 = vmatpush2.msra.mxu0 0.0
        %2606 = vmatprep.subr.mxu0 0.0
        %2607 = vmatpush2.msra.mxu0 0.0
        %2608 = vmatprep.subr.mxu0 0.0
        %2609 = vmatpush2.msra.mxu0 0.0
        %2610 = vmatprep.subr.mxu0 0.0
        %2611 = vmatpush2.msra.mxu0 0.0
        %2612 = vmatprep.subr.mxu0 0.0
        %2613 = vmatpush2.msra.mxu0 0.0
        %2614 = vmatprep.subr.mxu0 0.0
        %2615 = vmatpush2.msra.mxu0 0.0
        %2616 = vmatprep.subr.mxu0 0.0
        %2617 = vmatpush2.msra.mxu0 0.0
        %2618 = vmatprep.subr.mxu0 0.0
        %2619 = vmatpush2.msra.mxu0 0.0
        %2620 = vmatprep.subr.mxu0 0.0
        %2621 = vmatpush2.msra.mxu0 0.0
        %2622 = vmatprep.subr.mxu0 0.0
        %2623 = vmatpush2.msra.mxu0 0.0
        %2624 = vmatprep.subr.mxu0 0.0
        %2625 = vmatpush2.msra.mxu0 0.0
        %2626 = vmatprep.subr.mxu0 0.0
        %2627 = vmatpush2.msra.mxu0 0.0
        %2628 = vmatprep.mubr.f32.mxu0 0.0
        %2629 = vmatmul.mubr.f32.gmra.mxu0 %v2562
        %v2630 = vpop.f32.mrf.mxu0
        %v2631 = vadd.f32 %v2560, %v2630
        %v2632 = vpop.f32.mrf.mxu0
        %2633 = vdwg.mxu0
        %vm2634 = vcmask 60416
        %2635 = vst.msk [vmem:[%s178] sm:$0xf] %vm2634, %v2631
        %s2636 = sand.u32 %s94, 1
        %s2637 = scalar_lea.sflag [#allocation5], %s2636
        %s2638 = sand.u32 %s94, 1
        %s2639 = smul.addr %s2638, 4
        %s2640 = scalar_lea.vmem [#allocation6], %s2639
        // Predicated region
        $region37: #{integral_special_transformer.1} parent=31 // pred_check
          %p2641 = pneg %p104
        $region38: #{integral_special_transformer.1} parent=31 // pred_check_branch
          %2643 = sbr.rel (%p2641) target = $region40
        $region39: #{integral_special_transformer.1} parent=31 // pred_region
          %s2645 = ssub.s32 64, 64
          %2646 = vsyncadd %s2637, %s2645
          %s2647 = smul.addr %s18, 64
          %s2648 = scalar_lea.hbm %s3, %s2647
          %s2650 = sshll.u32 %s2640, 4
          %s2651 = int_to_ptr.vmem [resolvable:$true] %s2650
          %2653 = dma.vmem_to_hbm [thread:$0]  %s2651, 64, %s2648, %s2637
        $region40: #{integral_special_transformer.1} parent=31 // pred_fallthru
          _
      $region32: #{integral_special_transformer.1} parent=5 // pred_fallthru
        _
      %p2654 = scmp.le.s32.totalorder 2, %s13
      // Predicated region
      $region41: #{integral_special_transformer.1} parent=5 // pred_check
        %p2655 = pneg %p2654
      $region42: #{integral_special_transformer.1} parent=5 // pred_check_branch
        %2657 = sbr.rel (%p2655) target = $region44
      $region43: #{integral_special_transformer.1} parent=5 // pred_region
        %s2658 = ssub.s32 %s13, 2
        // Predicated region
        $region45: #{integral_special_transformer.1} parent=43 // pred_check
          %p2659 = pneg %p110
        $region46: #{integral_special_transformer.1} parent=43 // pred_check_branch
          %2661 = sbr.rel (%p2659) target = $region48
        $region47: #{integral_special_transformer.1} parent=43 // pred_region
          %s2662 = sand.u32 %s95, 1
          %s2663 = scalar_lea.sflag [#allocation5], %s2662
          %s2664 = sand.u32 %s95, 1
          %s2665 = smul.addr %s2664, 4
          %s2666 = scalar_lea.vmem [#allocation6], %s2665
          %2667 = dma.done %s2663, 64
        $region48: #{integral_special_transformer.1} parent=43 // pred_fallthru
          _
      $region44: #{integral_special_transformer.1} parent=5 // pred_fallthru
        _
    $region6: #{integral_special_transformer.1} parent=1 // loop_footer
      %s17 = sadd.s32 1, %s13
    $region7: #{integral_special_transformer.1} parent=1 // loop_footer_branch
      %12 = sbr.rel target = $region3
    $region8: #{integral_special_transformer.1} parent=1 // loop_exit
      _
    %2668 = vsyncpa [#allocation4], 1
    %s2669 = scalar_lea.sflag [#allocation4], 1
    %2670 = vsyncpa %s2669, 1
    %2671 = vsyncpa [#allocation5], 1
    %s2672 = scalar_lea.sflag [#allocation5], 1
    %2673 = vsyncpa %s2672, 1

</llo_original>
